<compile_context>
chip_gen: v7x
topology: tpu7x:2x2x1
jax: 0.10.0
libtpu: 0.0.40
codegen_flags: <defaults>
</compile_context>

<pallas_src>
import math
import functools

import jax
import jax.numpy as jnp
from jax.experimental import pallas as pl
from jax.experimental.pallas import tpu as pltpu


# ----------------------------- config ---------------------------------------

MATMUL_DTYPE = jnp.bfloat16        # MXU input precision (f32 accumulation)
ACT_DTYPE = jnp.bfloat16           # inter-kernel activation storage dtype
LN_EPS = 1e-5                      # PyTorch LayerNorm default

TM, TN, TK = 512, 1024, 512        # linear-layer tiles (bf16 acts -> ~9 MiB VMEM)
TQ, TKV = 256, 512                 # flash-attention query / key-value tiles


def _vmem_limit():
    # v5e/v6e have 128 MiB physical VMEM -> allow 64 MiB scoped for bigger tiles;
    # v7x only has 64 MiB physical -> keep a 32 MiB scoped ceiling.
    try:
        info = pltpu.get_tpu_info()
        phys = getattr(info, "vmem_capacity_bytes", 0) or 0
        if phys >= 100 * 1024 * 1024:
            return 64 * 1024 * 1024
    except Exception:
        pass
    return 32 * 1024 * 1024


VMEM_LIMIT = _vmem_limit()


def _pick_tile(dim, desired, quantum):
    """Largest tile <= desired that divides dim and is a multiple of quantum,
    else the full dim (a block equal to the array dim is always legal)."""
    if dim <= desired:
        return dim
    best = None
    t = quantum
    while t <= desired:
        if dim % t == 0:
            best = t
        t += quantum
    return best if best is not None else dim


# ----------------------------- linear kernels -------------------------------

def _linear_kernel(x_ref, w_ref, b_ref, o_ref, acc_ref, *, activation, k_axis):
    k = pl.program_id(k_axis)

    @pl.when(k == 0)
    def _init():
        acc_ref[...] = jnp.zeros_like(acc_ref)

    acc_ref[...] += jnp.dot(x_ref[...].astype(MATMUL_DTYPE),
                            w_ref[...].astype(MATMUL_DTYPE),
                            preferred_element_type=jnp.float32)

    @pl.when(k == pl.num_programs(k_axis) - 1)
    def _finalize():
        y = acc_ref[...] + b_ref[...]
        if activation == "relu":
            y = jnp.maximum(y, 0.0)
        o_ref[...] = y.astype(o_ref.dtype)


def linear_tiled(x, w, b, activation=None):
    """x: [M, K] bf16, w: [K, N] bf16, b: [N] f32 -> [M, N] bf16."""
    M, K = x.shape
    N = w.shape[1]
    tm = _pick_tile(M, TM, 16)
    tn = _pick_tile(N, TN, 128)
    tk = _pick_tile(K, TK, 128)
    grid = (M // tm, N // tn, K // tk)
    return pl.pallas_call(
        functools.partial(_linear_kernel, activation=activation, k_axis=2),
        out_shape=jax.ShapeDtypeStruct((M, N), ACT_DTYPE),
        grid=grid,
        in_specs=[
            pl.BlockSpec((tm, tk), lambda i, j, k: (i, k)),
            # TODO(synk): if the weight-stream DMA is still exposed on v6e after
            # the tile enlargement, add pipeline_mode=pl.Buffered(3) here.
            pl.BlockSpec((tk, tn), lambda i, j, k: (k, j)),
            # bias depends only on the N index -> stays resident across m/k steps
            pl.BlockSpec((1, tn), lambda i, j, k: (0, j)),
        ],
        out_specs=pl.BlockSpec((tm, tn), lambda i, j, k: (i, j)),
        scratch_shapes=[pltpu.VMEM((tm, tn), jnp.float32)],
        compiler_params=pltpu.CompilerParams(
            dimension_semantics=("parallel", "parallel", "arbitrary"),
            vmem_limit_bytes=VMEM_LIMIT),
    )(x, w, b.reshape(1, N))


def qkv_linear(x, w3, b3):
    """Fused Q/K/V projection.  x: [M, E] bf16, w3: [3, E, E] bf16, b3: [3, E]
    -> [3, M, E] bf16 (stacked so the attention kernel can block-index Q/K/V
    directly from HBM without any wrapper split or transpose)."""
    M, K = x.shape
    N = w3.shape[2]
    tm = _pick_tile(M, TM, 16)
    tn = _pick_tile(N, TN, 128)
    tk = _pick_tile(K, TK, 128)
    grid = (3, M // tm, N // tn, K // tk)
    return pl.pallas_call(
        functools.partial(_linear_kernel, activation=None, k_axis=3),
        out_shape=jax.ShapeDtypeStruct((3, M, N), ACT_DTYPE),
        grid=grid,
        in_specs=[
            pl.BlockSpec((tm, tk), lambda p, i, j, k: (i, k)),
            pl.BlockSpec((None, tk, tn), lambda p, i, j, k: (p, k, j)),
            pl.BlockSpec((None, 1, tn), lambda p, i, j, k: (p, 0, j)),
        ],
        out_specs=pl.BlockSpec((None, tm, tn), lambda p, i, j, k: (p, i, j)),
        scratch_shapes=[pltpu.VMEM((tm, tn), jnp.float32)],
        compiler_params=pltpu.CompilerParams(
            dimension_semantics=("parallel", "parallel", "parallel", "arbitrary"),
            vmem_limit_bytes=VMEM_LIMIT),
    )(x, w3, b3.reshape(3, 1, N))


def _linear_addln_kernel(x_ref, w_ref, b_ref, r_ref, g_ref, bb_ref,
                         o_ref, acc_ref):
    k = pl.program_id(1)

    @pl.when(k == 0)
    def _init():
        acc_ref[...] = jnp.zeros_like(acc_ref)

    acc_ref[...] += jnp.dot(x_ref[...].astype(MATMUL_DTYPE),
                            w_ref[...].astype(MATMUL_DTYPE),
                            preferred_element_type=jnp.float32)

    @pl.when(k == pl.num_programs(1) - 1)
    def _finalize():
        # fused: bias + residual add + LayerNorm (f32 statistics)
        y = acc_ref[...] + b_ref[...] + r_ref[...].astype(jnp.float32)
        mean = jnp.mean(y, axis=-1, keepdims=True)
        var = jnp.mean(jnp.square(y - mean), axis=-1, keepdims=True)
        yhat = (y - mean) * jax.lax.rsqrt(var + LN_EPS)
        o_ref[...] = (yhat * g_ref[...] + bb_ref[...]).astype(o_ref.dtype)


def linear_add_ln(x, w, b, resid, gamma, beta):
    """LayerNorm(x @ w + b + resid) fused in one pass.  Output blocks keep the
    full feature width N (= E) since LayerNorm reduces over it."""
    M, K = x.shape
    N = w.shape[1]
    tm = _pick_tile(M, TM, 16)
    tk = _pick_tile(K, TK, 128)
    grid = (M // tm, K // tk)
    # TODO(synk): for very large E on v7x, halve tm or switch to a two-pass LN
    # so the (tm, N) resident buffers stay well under the 32 MiB scoped limit.
    return pl.pallas_call(
        _linear_addln_kernel,
        out_shape=jax.ShapeDtypeStruct((M, N), ACT_DTYPE),
        grid=grid,
        in_specs=[
            pl.BlockSpec((tm, tk), lambda i, k: (i, k)),
            pl.BlockSpec((tk, N), lambda i, k: (k, 0)),
            pl.BlockSpec((1, N), lambda i, k: (0, 0)),
            pl.BlockSpec((tm, N), lambda i, k: (i, 0)),
            pl.BlockSpec((1, N), lambda i, k: (0, 0)),
            pl.BlockSpec((1, N), lambda i, k: (0, 0)),
        ],
        out_specs=pl.BlockSpec((tm, N), lambda i, k: (i, 0)),
        scratch_shapes=[pltpu.VMEM((tm, N), jnp.float32)],
        compiler_params=pltpu.CompilerParams(
            dimension_semantics=("parallel", "arbitrary"),
            vmem_limit_bytes=VMEM_LIMIT),
    )(x, w, b.reshape(1, N), resid, gamma.reshape(1, N), beta.reshape(1, N))


# ----------------------------- flash attention ------------------------------

def _flash_attn_kernel(q_ref, k_ref, v_ref, mask_ref, o_ref,
                       acc_ref, m_ref, l_ref, *, heads, scale):
    """Online-softmax attention.  One (batch, q-tile) output block resident
    across the innermost kv-tile axis; per-head running stats are broadcast
    across the head's dh lanes so the final normalization + store is a single
    lane-dense elementwise pass (no concatenate, no live head-output list)."""
    ki = pl.program_id(2)
    tq, E = q_ref.shape
    dh = E // heads

    @pl.when(ki == 0)
    def _init():
        m_ref[...] = jnp.full_like(m_ref, -1e30)
        l_ref[...] = jnp.zeros_like(l_ref)
        acc_ref[...] = jnp.zeros_like(acc_ref)

    addmask = jnp.where(mask_ref[...] == 0.0, -1e9, 0.0)       # [1, tkv]

    # TODO(synk): for dh < 128 these head slabs cross vreg lane boundaries; a
    # head-major (dh >= 128-padded) packing would remove the relayouts.
    for h in range(heads):                                     # static loop
        sl = slice(h * dh, (h + 1) * dh)
        q_h = q_ref[:, sl] * scale                             # scale folded into q
        k_h = k_ref[:, sl]
        # q @ k^T without an explicit transpose: contract on the last dims.
        s = jax.lax.dot_general(q_h, k_h, (((1,), (1,)), ((), ())),
                                preferred_element_type=jnp.float32)
        s = s + addmask
        m_prev = m_ref[:, h * dh:h * dh + 1]                   # [tq, 1]
        m_new = jnp.maximum(m_prev, jnp.max(s, axis=-1, keepdims=True))
        alpha = jnp.exp(m_prev - m_new)                        # [tq, 1]
        p = jnp.exp(s - m_new)                                 # [tq, tkv]
        l_new = alpha * l_ref[:, h * dh:h * dh + 1] + jnp.sum(
            p, axis=-1, keepdims=True)
        acc_ref[:, sl] = alpha * acc_ref[:, sl] + jnp.dot(
            p.astype(MATMUL_DTYPE), v_ref[:, sl],
            preferred_element_type=jnp.float32)
        m_ref[:, sl] = jnp.broadcast_to(m_new, (tq, dh))
        l_ref[:, sl] = jnp.broadcast_to(l_new, (tq, dh))

    @pl.when(ki == pl.num_programs(2) - 1)
    def _finalize():
        o_ref[...] = (acc_ref[...] *
                      pl.reciprocal(l_ref[...], approx=True)).astype(o_ref.dtype)


def attention(qkv3, mask, heads):
    """qkv3: [3, B, S, E] bf16 (stacked Q/K/V); mask: [B, S] (1 keep / 0 mask)."""
    _, B, S, E = qkv3.shape
    scale = 1.0 / math.sqrt(E // heads)
    tq = _pick_tile(S, TQ, 16)
    tkv = _pick_tile(S, TKV, 128)
    grid = (B, S // tq, S // tkv)
    mask3 = mask.reshape(B, 1, S).astype(jnp.float32)
    return pl.pallas_call(
        functools.partial(_flash_attn_kernel, heads=heads, scale=scale),
        out_shape=jax.ShapeDtypeStruct((B, S, E), ACT_DTYPE),
        grid=grid,
        in_specs=[
            pl.BlockSpec((None, None, tq, E), lambda b, qi, ki: (0, b, qi, 0)),
            pl.BlockSpec((None, None, tkv, E), lambda b, qi, ki: (1, b, ki, 0)),
            pl.BlockSpec((None, None, tkv, E), lambda b, qi, ki: (2, b, ki, 0)),
            pl.BlockSpec((None, 1, tkv), lambda b, qi, ki: (b, 0, ki)),
        ],
        out_specs=pl.BlockSpec((None, tq, E), lambda b, qi, ki: (b, qi, 0)),
        scratch_shapes=[pltpu.VMEM((tq, E), jnp.float32),    # acc
                        pltpu.VMEM((tq, E), jnp.float32),    # running max
                        pltpu.VMEM((tq, E), jnp.float32)],   # running sum
        compiler_params=pltpu.CompilerParams(
            dimension_semantics=("parallel", "parallel", "arbitrary"),
            vmem_limit_bytes=VMEM_LIMIT),
    )(qkv3, qkv3, qkv3, mask3)


# ----------------------------- model wrapper --------------------------------

def transformer_block(x2d, mask, p, heads, B, S):
    """x2d: [B*S, E] batch-major rows (bf16)."""
    M, E = x2d.shape
    qkv3 = qkv_linear(x2d, p["wqkv"], p["bqkv"])                  # [3, M, E]
    attn = attention(qkv3.reshape(3, B, S, E), mask, heads)       # [B, S, E]
    # norm1(out_proj(attn) + query)  -- fused matmul + residual + LN
    h = linear_add_ln(attn.reshape(M, E), p["wo"], p["bo"],
                      x2d, p["ln1_g"], p["ln1_b"])
    ff1 = linear_tiled(h, p["w1"], p["b1"], activation="relu")    # [M, Ff]
    # norm2(ff2(ff1) + x)            -- fused matmul + residual + LN
    out = linear_add_ln(ff1, p["w2"], p["b2"], h, p["ln2_g"], p["ln2_b"])
    return out


def make_positional_encoding(max_len, embed_size):
    position = jnp.arange(max_len, dtype=jnp.float32)[:, None]
    div_term = jnp.exp(jnp.arange(0, embed_size, 2, dtype=jnp.float32)
                       * (-math.log(10000.0) / embed_size))
    pe = jnp.zeros((max_len, embed_size), dtype=jnp.float32)
    pe = pe.at[:, 0::2].set(jnp.sin(position * div_term))
    if embed_size % 2 == 1:
        pe = pe.at[:, 1::2].set(jnp.cos(position * div_term[:-1]))
    else:
        pe = pe.at[:, 1::2].set(jnp.cos(position * div_term))
    return pe[:, None, :]                                         # [max_len, 1, E]


def encoder_forward(tokens, mask, params, heads):
    """tokens: [S, B] int32; mask: [B, S] -> [S, B, E] f32."""
    S, B = tokens.shape
    E = params["emb"].shape[1]
    emb = params["emb"][tokens]                                   # gather: [S, B, E]
    x = emb * math.sqrt(E) + params["pe"][:S]                     # positional encoding
    # dropout -> identity in eval mode
    # switch to batch-major bf16 rows once; all per-layer kernels then run
    # transpose-free on [B*S, E] / [B, S, *] / [3, B, S, E] views.
    x2d = x.transpose(1, 0, 2).reshape(B * S, E).astype(ACT_DTYPE)
    for lp in params["layers"]:
        x2d = transformer_block(x2d, mask, lp, heads, B, S)
    out = x2d.reshape(B, S, E).transpose(1, 0, 2)                 # back to [S, B, E]
    return out.astype(jnp.float32)


def init_params(key, vocab, embed_size, num_layers, heads, forward_expansion,
                max_length):
    E = embed_size
    Ff = forward_expansion * E

    def dense(k, fan_in, fan_out):
        w = jax.random.normal(k, (fan_in, fan_out), jnp.float32) * 0.02
        return w.astype(MATMUL_DTYPE)                             # bf16 weight storage

    keys = jax.random.split(key, 1 + num_layers)
    params = {
        "emb": jax.random.normal(keys[0], (vocab, E), jnp.float32) * 0.02,
        "pe": make_positional_encoding(max_length, E),
        "layers": [],
    }
    for li in range(num_layers):
        ks = jax.random.split(keys[1 + li], 6)
        lp = {
            # stacked QKV projection weight: [3, E, E] = [Wq, Wk, Wv]
            "wqkv": jnp.stack(
                [dense(ks[0], E, E), dense(ks[1], E, E), dense(ks[2], E, E)],
                axis=0),
            "bqkv": jnp.zeros((3, E), jnp.float32),
            "wo": dense(ks[3], E, E), "bo": jnp.zeros((E,), jnp.float32),
            "ln1_g": jnp.ones((E,), jnp.float32),
            "ln1_b": jnp.zeros((E,), jnp.float32),
            "ln2_g": jnp.ones((E,), jnp.float32),
            "ln2_b": jnp.zeros((E,), jnp.float32),
            "w1": dense(ks[4], E, Ff), "b1": jnp.zeros((Ff,), jnp.float32),
            "w2": dense(ks[5], Ff, E), "b2": jnp.zeros((E,), jnp.float32),
        }
        params["layers"].append(lp)
    return params


if __name__ == "__main__":
    # small config consistent with the module
    SRC_VOCAB = 50
    EMBED = 32
    NUM_LAYERS = 2
    HEADS = 4
    FWD_EXP = 2
    MAX_LEN = 16
    SEQ = 8
    BATCH = 2

    root = jax.random.PRNGKey(0)
    k_tok, k_par = jax.random.split(root)

    tokens = jax.random.randint(k_tok, (SEQ, BATCH), 0, SRC_VOCAB, dtype=jnp.int32)
    mask = jnp.ones((BATCH, SEQ), dtype=jnp.float32)   # all-keep padding mask
    params = init_params(k_par, SRC_VOCAB, EMBED, NUM_LAYERS, HEADS, FWD_EXP,
                         MAX_LEN)

    fwd = jax.jit(encoder_forward, static_argnames=("heads",))
    out = fwd(tokens, mask, params, heads=HEADS)
    out = jax.block_until_ready(out)
    assert out.shape == (SEQ, BATCH, EMBED), out.shape
    assert bool(jnp.all(jnp.isfinite(out)))
    print("KERNEL_OK")
</pallas_src>

<mosaic_0001>
module attributes {stable_mosaic.version = 11 : i64} {
  func.func @_linear_addln_kernel(%arg0: i32, %arg1: i32, %arg2: memref<16x32xbf16, #tpu.memory_space<vmem>>, %arg3: memref<32x32xbf16, #tpu.memory_space<vmem>>, %arg4: memref<1x32xf32, #tpu.memory_space<vmem>>, %arg5: memref<16x32xbf16, #tpu.memory_space<vmem>>, %arg6: memref<1x32xf32, #tpu.memory_space<vmem>>, %arg7: memref<1x32xf32, #tpu.memory_space<vmem>>, %arg8: memref<16x32xbf16, #tpu.memory_space<vmem>>, %arg9: memref<16x32xf32, #tpu.memory_space<vmem>>) attributes {dimension_semantics = [#tpu.dimension_semantics<parallel>, #tpu.dimension_semantics<arbitrary>], iteration_bounds = array<i64: 1, 1>, scalar_prefetch = 0 : i64, scratch_operands = 1 : i64, tpu.core_type = #tpu.core_type<tc>, window_params = [{transform_indices = @transform_0, window_bounds = array<i64: 16, 32>}, {transform_indices = @transform_1, window_bounds = array<i64: 32, 32>}, {pipeline_mode = #tpu.pipeline_mode<synchronous>, transform_indices = @transform_2, window_bounds = array<i64: 1, 32>}, {transform_indices = @transform_3, window_bounds = array<i64: 16, 32>}, {pipeline_mode = #tpu.pipeline_mode<synchronous>, transform_indices = @transform_4, window_bounds = array<i64: 1, 32>}, {pipeline_mode = #tpu.pipeline_mode<synchronous>, transform_indices = @transform_5, window_bounds = array<i64: 1, 32>}, {transform_indices = @transform_6, window_bounds = array<i64: 16, 32>}]} {
    %c0_i32 = arith.constant 0 : i32
    %0 = arith.cmpi eq, %arg1, %c0_i32 : i32
    %1 = arith.extui %0 : i1 to i32
    %c0_i32_0 = arith.constant 0 : i32
    %2 = arith.cmpi ne, %1, %c0_i32_0 : i32
    scf.if %2 {
      %cst_10 = arith.constant 0.000000e+00 : f32
      %12 = vector.broadcast %cst_10 : f32 to vector<16x32xf32>
      %c0_11 = arith.constant 0 : index
      %c0_12 = arith.constant 0 : index
      %13 = vector.load %arg9[%c0_11, %c0_12] : memref<16x32xf32, #tpu.memory_space<vmem>>, vector<16x32xf32>
      tpu.vector_store %arg9[%c0_11, %c0_12], %12 {strides = array<i32>} : memref<16x32xf32, #tpu.memory_space<vmem>>, vector<16x32xf32>,
    } else {
    }
    %c0 = arith.constant 0 : index
    %c0_1 = arith.constant 0 : index
    %3 = vector.load %arg9[%c0, %c0_1] : memref<16x32xf32, #tpu.memory_space<vmem>>, vector<16x32xf32>
    %c0_2 = arith.constant 0 : index
    %c0_3 = arith.constant 0 : index
    %4 = vector.load %arg2[%c0_2, %c0_3] : memref<16x32xbf16, #tpu.memory_space<vmem>>, vector<16x32xbf16>
    %c0_4 = arith.constant 0 : index
    %c0_5 = arith.constant 0 : index
    %5 = vector.load %arg3[%c0_4, %c0_5] : memref<32x32xbf16, #tpu.memory_space<vmem>>, vector<32x32xbf16>
    %cst = arith.constant dense<0.000000e+00> : vector<16x32xf32>
    %6 = tpu.matmul %4, %5, %cst {dimension_numbers = #tpu.dot_dimension_numbers<[1], [0], [0], [1], [0, 0, 1, 1], [], []>} : vector<16x32xbf16>, vector<32x32xbf16>, vector<16x32xf32> -> vector<16x32xf32>
    %7 = arith.addf %3, %6 : vector<16x32xf32>
    %c0_6 = arith.constant 0 : index
    %c0_7 = arith.constant 0 : index
    %8 = vector.load %arg9[%c0_6, %c0_7] : memref<16x32xf32, #tpu.memory_space<vmem>>, vector<16x32xf32>
    tpu.vector_store %arg9[%c0_6, %c0_7], %7 {strides = array<i32>} : memref<16x32xf32, #tpu.memory_space<vmem>>, vector<16x32xf32>,
    %c0_i32_8 = arith.constant 0 : i32
    %9 = arith.cmpi eq, %arg1, %c0_i32_8 : i32
    %10 = arith.extui %9 : i1 to i32
    %c0_i32_9 = arith.constant 0 : i32
    %11 = arith.cmpi ne, %10, %c0_i32_9 : i32
    scf.if %11 {
      %c0_10 = arith.constant 0 : index
      %c0_11 = arith.constant 0 : index
      %12 = vector.load %arg9[%c0_10, %c0_11] : memref<16x32xf32, #tpu.memory_space<vmem>>, vector<16x32xf32>
      %c0_12 = arith.constant 0 : index
      %c0_13 = arith.constant 0 : index
      %13 = vector.load %arg4[%c0_12, %c0_13] : memref<1x32xf32, #tpu.memory_space<vmem>>, vector<1x32xf32>
      %14 = vector.broadcast %13 : vector<1x32xf32> to vector<16x32xf32>
      %15 = arith.addf %12, %14 : vector<16x32xf32>
      %c0_14 = arith.constant 0 : index
      %c0_15 = arith.constant 0 : index
      %16 = vector.load %arg5[%c0_14, %c0_15] : memref<16x32xbf16, #tpu.memory_space<vmem>>, vector<16x32xbf16>
      %17 = arith.extf %16 : vector<16x32xbf16> to vector<16x32xf32>
      %18 = arith.addf %15, %17 : vector<16x32xf32>
      %cst_16 = arith.constant dense<0.000000e+00> : vector<16xf32>
      %19 = vector.multi_reduction <add>, %18, %cst_16 [1] : vector<16x32xf32> to vector<16xf32>
      %20 = vector.shape_cast %19 : vector<16xf32> to vector<16x1xf32>
      %cst_17 = arith.constant 3.200000e+01 : f32
      %21 = vector.broadcast %cst_17 : f32 to vector<16x1xf32>
      %22 = arith.divf %20, %21 : vector<16x1xf32>
      %23 = vector.broadcast %22 : vector<16x1xf32> to vector<16x32xf32>
      %24 = arith.subf %18, %23 : vector<16x32xf32>
      %25 = arith.mulf %24, %24 : vector<16x32xf32>
      %cst_18 = arith.constant dense<0.000000e+00> : vector<16xf32>
      %26 = vector.multi_reduction <add>, %25, %cst_18 [1] : vector<16x32xf32> to vector<16xf32>
      %27 = vector.shape_cast %26 : vector<16xf32> to vector<16x1xf32>
      %cst_19 = arith.constant 3.200000e+01 : f32
      %28 = vector.broadcast %cst_19 : f32 to vector<16x1xf32>
      %29 = arith.divf %27, %28 : vector<16x1xf32>
      %30 = vector.broadcast %22 : vector<16x1xf32> to vector<16x32xf32>
      %31 = arith.subf %18, %30 : vector<16x32xf32>
      %cst_20 = arith.constant 9.99999974E-6 : f32
      %32 = vector.broadcast %cst_20 : f32 to vector<16x1xf32>
      %33 = arith.addf %29, %32 : vector<16x1xf32>
      %34 = math.rsqrt %33 : vector<16x1xf32>
      %35 = vector.broadcast %34 : vector<16x1xf32> to vector<16x32xf32>
      %36 = arith.mulf %31, %35 : vector<16x32xf32>
      %c0_21 = arith.constant 0 : index
      %c0_22 = arith.constant 0 : index
      %37 = vector.load %arg6[%c0_21, %c0_22] : memref<1x32xf32, #tpu.memory_space<vmem>>, vector<1x32xf32>
      %38 = vector.broadcast %37 : vector<1x32xf32> to vector<16x32xf32>
      %39 = arith.mulf %36, %38 : vector<16x32xf32>
      %c0_23 = arith.constant 0 : index
      %c0_24 = arith.constant 0 : index
      %40 = vector.load %arg7[%c0_23, %c0_24] : memref<1x32xf32, #tpu.memory_space<vmem>>, vector<1x32xf32>
      %41 = vector.broadcast %40 : vector<1x32xf32> to vector<16x32xf32>
      %42 = arith.addf %39, %41 : vector<16x32xf32>
      %43 = arith.truncf %42 : vector<16x32xf32> to vector<16x32xbf16>
      %c0_25 = arith.constant 0 : index
      %c0_26 = arith.constant 0 : index
      %44 = vector.load %arg8[%c0_25, %c0_26] : memref<16x32xbf16, #tpu.memory_space<vmem>>, vector<16x32xbf16>
      tpu.vector_store %arg8[%c0_25, %c0_26], %43 {strides = array<i32>} : memref<16x32xbf16, #tpu.memory_space<vmem>>, vector<16x32xbf16>,
    } else {
    }
    return
  }
  func.func @transform_0(%arg0: i32, %arg1: i32) -> (i32, i32) {
    %c0_i32 = arith.constant 0 : i32
    return %arg0, %arg1 : i32, i32
  }
  func.func @transform_1(%arg0: i32, %arg1: i32) -> (i32, i32) {
    %c0_i32 = arith.constant 0 : i32
    %c0_i32_0 = arith.constant 0 : i32
    return %arg1, %c0_i32 : i32, i32
  }
  func.func @transform_2(%arg0: i32, %arg1: i32) -> (i32, i32) {
    %c0_i32 = arith.constant 0 : i32
    %c0_i32_0 = arith.constant 0 : i32
    %c0_i32_1 = arith.constant 0 : i32
    return %c0_i32, %c0_i32_0 : i32, i32
  }
  func.func @transform_3(%arg0: i32, %arg1: i32) -> (i32, i32) {
    %c0_i32 = arith.constant 0 : i32
    %c0_i32_0 = arith.constant 0 : i32
    return %arg0, %c0_i32 : i32, i32
  }
  func.func @transform_4(%arg0: i32, %arg1: i32) -> (i32, i32) {
    %c0_i32 = arith.constant 0 : i32
    %c0_i32_0 = arith.constant 0 : i32
    %c0_i32_1 = arith.constant 0 : i32
    return %c0_i32, %c0_i32_0 : i32, i32
  }
  func.func @transform_5(%arg0: i32, %arg1: i32) -> (i32, i32) {
    %c0_i32 = arith.constant 0 : i32
    %c0_i32_0 = arith.constant 0 : i32
    %c0_i32_1 = arith.constant 0 : i32
    return %c0_i32, %c0_i32_0 : i32, i32
  }
  func.func @transform_6(%arg0: i32, %arg1: i32) -> (i32, i32) {
    %c0_i32 = arith.constant 0 : i32
    %c0_i32_0 = arith.constant 0 : i32
    return %arg0, %c0_i32 : i32, i32
  }
}

module attributes {stable_mosaic.version = 11 : i64} {
  func.func @_linear_kernel(%arg0: i32, %arg1: i32, %arg2: i32, %arg3: i32, %arg4: memref<16x32xbf16, #tpu.memory_space<vmem>>, %arg5: memref<1x32x32xbf16, #tpu.memory_space<vmem>>, %arg6: memref<1x1x32xf32, #tpu.memory_space<vmem>>, %arg7: memref<1x16x32xbf16, #tpu.memory_space<vmem>>, %arg8: memref<16x32xf32, #tpu.memory_space<vmem>>) attributes {dimension_semantics = [#tpu.dimension_semantics<parallel>, #tpu.dimension_semantics<parallel>, #tpu.dimension_semantics<parallel>, #tpu.dimension_semantics<arbitrary>], iteration_bounds = array<i64: 3, 1, 1, 1>, scalar_prefetch = 0 : i64, scratch_operands = 1 : i64, tpu.core_type = #tpu.core_type<tc>, window_params = [{transform_indices = @transform_0, window_bounds = array<i64: 16, 32>}, {transform_indices = @transform_1, window_bounds = array<i64: 1, 32, 32>}, {transform_indices = @transform_2, window_bounds = array<i64: 1, 1, 32>}, {transform_indices = @transform_3, window_bounds = array<i64: 1, 16, 32>}]} {
    %c0_i32 = arith.constant 0 : i32
    %0 = arith.cmpi eq, %arg3, %c0_i32 : i32
    %1 = arith.extui %0 : i1 to i32
    %c0_i32_0 = arith.constant 0 : i32
    %2 = arith.cmpi ne, %1, %c0_i32_0 : i32
    scf.if %2 {
      %cst_11 = arith.constant 0.000000e+00 : f32
      %13 = vector.broadcast %cst_11 : f32 to vector<16x32xf32>
      %c0_12 = arith.constant 0 : index
      %c0_13 = arith.constant 0 : index
      %14 = vector.load %arg8[%c0_12, %c0_13] : memref<16x32xf32, #tpu.memory_space<vmem>>, vector<16x32xf32>
      tpu.vector_store %arg8[%c0_12, %c0_13], %13 {strides = array<i32>} : memref<16x32xf32, #tpu.memory_space<vmem>>, vector<16x32xf32>,
    } else {
    }
    %c0 = arith.constant 0 : index
    %c0_1 = arith.constant 0 : index
    %3 = vector.load %arg8[%c0, %c0_1] : memref<16x32xf32, #tpu.memory_space<vmem>>, vector<16x32xf32>
    %c0_2 = arith.constant 0 : index
    %c0_3 = arith.constant 0 : index
    %4 = vector.load %arg4[%c0_2, %c0_3] : memref<16x32xbf16, #tpu.memory_space<vmem>>, vector<16x32xbf16>
    %c0_4 = arith.constant 0 : index
    %c0_5 = arith.constant 0 : index
    %c0_6 = arith.constant 0 : index
    %5 = vector.load %arg5[%c0_4, %c0_5, %c0_6] : memref<1x32x32xbf16, #tpu.memory_space<vmem>>, vector<1x32x32xbf16>
    %6 = vector.shape_cast %5 : vector<1x32x32xbf16> to vector<32x32xbf16>
    %cst = arith.constant dense<0.000000e+00> : vector<16x32xf32>
    %7 = tpu.matmul %4, %6, %cst {dimension_numbers = #tpu.dot_dimension_numbers<[1], [0], [0], [1], [0, 0, 1, 1], [], []>} : vector<16x32xbf16>, vector<32x32xbf16>, vector<16x32xf32> -> vector<16x32xf32>
    %8 = arith.addf %3, %7 : vector<16x32xf32>
    %c0_7 = arith.constant 0 : index
    %c0_8 = arith.constant 0 : index
    %9 = vector.load %arg8[%c0_7, %c0_8] : memref<16x32xf32, #tpu.memory_space<vmem>>, vector<16x32xf32>
    tpu.vector_store %arg8[%c0_7, %c0_8], %8 {strides = array<i32>} : memref<16x32xf32, #tpu.memory_space<vmem>>, vector<16x32xf32>,
    %c0_i32_9 = arith.constant 0 : i32
    %10 = arith.cmpi eq, %arg3, %c0_i32_9 : i32
    %11 = arith.extui %10 : i1 to i32
    %c0_i32_10 = arith.constant 0 : i32
    %12 = arith.cmpi ne, %11, %c0_i32_10 : i32
    scf.if %12 {
      %c0_11 = arith.constant 0 : index
      %c0_12 = arith.constant 0 : index
      %13 = vector.load %arg8[%c0_11, %c0_12] : memref<16x32xf32, #tpu.memory_space<vmem>>, vector<16x32xf32>
      %c0_13 = arith.constant 0 : index
      %c0_14 = arith.constant 0 : index
      %c0_15 = arith.constant 0 : index
      %14 = vector.load %arg6[%c0_13, %c0_14, %c0_15] : memref<1x1x32xf32, #tpu.memory_space<vmem>>, vector<1x1x32xf32>
      %15 = vector.shape_cast %14 : vector<1x1x32xf32> to vector<1x32xf32>
      %16 = vector.broadcast %15 : vector<1x32xf32> to vector<16x32xf32>
      %17 = arith.addf %13, %16 : vector<16x32xf32>
      %18 = arith.truncf %17 : vector<16x32xf32> to vector<16x32xbf16>
      %c0_16 = arith.constant 0 : index
      %c0_17 = arith.constant 0 : index
      %c0_18 = arith.constant 0 : index
      %19 = vector.load %arg7[%c0_16, %c0_17, %c0_18] : memref<1x16x32xbf16, #tpu.memory_space<vmem>>, vector<1x16x32xbf16>
      %20 = vector.shape_cast %19 : vector<1x16x32xbf16> to vector<16x32xbf16>
      %21 = vector.shape_cast %18 : vector<16x32xbf16> to vector<1x16x32xbf16>
      tpu.vector_store %arg7[%c0_16, %c0_17, %c0_18], %21 {strides = array<i32>} : memref<1x16x32xbf16, #tpu.memory_space<vmem>>, vector<1x16x32xbf16>,
    } else {
    }
    return
  }
  func.func @transform_0(%arg0: i32, %arg1: i32, %arg2: i32, %arg3: i32) -> (i32, i32) {
    %c0_i32 = arith.constant 0 : i32
    return %arg1, %arg3 : i32, i32
  }
  func.func @transform_1(%arg0: i32, %arg1: i32, %arg2: i32, %arg3: i32) -> (i32, i32, i32) {
    %c0_i32 = arith.constant 0 : i32
    return %arg0, %arg3, %arg2 : i32, i32, i32
  }
  func.func @transform_2(%arg0: i32, %arg1: i32, %arg2: i32, %arg3: i32) -> (i32, i32, i32) {
    %c0_i32 = arith.constant 0 : i32
    %c0_i32_0 = arith.constant 0 : i32
    return %arg0, %c0_i32, %arg2 : i32, i32, i32
  }
  func.func @transform_3(%arg0: i32, %arg1: i32, %arg2: i32, %arg3: i32) -> (i32, i32, i32) {
    %c0_i32 = arith.constant 0 : i32
    return %arg0, %arg1, %arg2 : i32, i32, i32
  }
}

module attributes {stable_mosaic.version = 11 : i64} {
  func.func @_linear_kernel(%arg0: i32, %arg1: i32, %arg2: i32, %arg3: memref<16x32xbf16, #tpu.memory_space<vmem>>, %arg4: memref<32x64xbf16, #tpu.memory_space<vmem>>, %arg5: memref<1x64xf32, #tpu.memory_space<vmem>>, %arg6: memref<16x64xbf16, #tpu.memory_space<vmem>>, %arg7: memref<16x64xf32, #tpu.memory_space<vmem>>) attributes {dimension_semantics = [#tpu.dimension_semantics<parallel>, #tpu.dimension_semantics<parallel>, #tpu.dimension_semantics<arbitrary>], iteration_bounds = array<i64: 1, 1, 1>, scalar_prefetch = 0 : i64, scratch_operands = 1 : i64, tpu.core_type = #tpu.core_type<tc>, window_params = [{transform_indices = @transform_0, window_bounds = array<i64: 16, 32>}, {transform_indices = @transform_1, window_bounds = array<i64: 32, 64>}, {transform_indices = @transform_2, window_bounds = array<i64: 1, 64>}, {transform_indices = @transform_3, window_bounds = array<i64: 16, 64>}]} {
    %c0_i32 = arith.constant 0 : i32
    %0 = arith.cmpi eq, %arg2, %c0_i32 : i32
    %1 = arith.extui %0 : i1 to i32
    %c0_i32_0 = arith.constant 0 : i32
    %2 = arith.cmpi ne, %1, %c0_i32_0 : i32
    scf.if %2 {
      %cst_10 = arith.constant 0.000000e+00 : f32
      %12 = vector.broadcast %cst_10 : f32 to vector<16x64xf32>
      %c0_11 = arith.constant 0 : index
      %c0_12 = arith.constant 0 : index
      %13 = vector.load %arg7[%c0_11, %c0_12] : memref<16x64xf32, #tpu.memory_space<vmem>>, vector<16x64xf32>
      tpu.vector_store %arg7[%c0_11, %c0_12], %12 {strides = array<i32>} : memref<16x64xf32, #tpu.memory_space<vmem>>, vector<16x64xf32>,
    } else {
    }
    %c0 = arith.constant 0 : index
    %c0_1 = arith.constant 0 : index
    %3 = vector.load %arg7[%c0, %c0_1] : memref<16x64xf32, #tpu.memory_space<vmem>>, vector<16x64xf32>
    %c0_2 = arith.constant 0 : index
    %c0_3 = arith.constant 0 : index
    %4 = vector.load %arg3[%c0_2, %c0_3] : memref<16x32xbf16, #tpu.memory_space<vmem>>, vector<16x32xbf16>
    %c0_4 = arith.constant 0 : index
    %c0_5 = arith.constant 0 : index
    %5 = vector.load %arg4[%c0_4, %c0_5] : memref<32x64xbf16, #tpu.memory_space<vmem>>, vector<32x64xbf16>
    %cst = arith.constant dense<0.000000e+00> : vector<16x64xf32>
    %6 = tpu.matmul %4, %5, %cst {dimension_numbers = #tpu.dot_dimension_numbers<[1], [0], [0], [1], [0, 0, 1, 1], [], []>} : vector<16x32xbf16>, vector<32x64xbf16>, vector<16x64xf32> -> vector<16x64xf32>
    %7 = arith.addf %3, %6 : vector<16x64xf32>
    %c0_6 = arith.constant 0 : index
    %c0_7 = arith.constant 0 : index
    %8 = vector.load %arg7[%c0_6, %c0_7] : memref<16x64xf32, #tpu.memory_space<vmem>>, vector<16x64xf32>
    tpu.vector_store %arg7[%c0_6, %c0_7], %7 {strides = array<i32>} : memref<16x64xf32, #tpu.memory_space<vmem>>, vector<16x64xf32>,
    %c0_i32_8 = arith.constant 0 : i32
    %9 = arith.cmpi eq, %arg2, %c0_i32_8 : i32
    %10 = arith.extui %9 : i1 to i32
    %c0_i32_9 = arith.constant 0 : i32
    %11 = arith.cmpi ne, %10, %c0_i32_9 : i32
    scf.if %11 {
      %c0_10 = arith.constant 0 : index
      %c0_11 = arith.constant 0 : index
      %12 = vector.load %arg7[%c0_10, %c0_11] : memref<16x64xf32, #tpu.memory_space<vmem>>, vector<16x64xf32>
      %c0_12 = arith.constant 0 : index
      %c0_13 = arith.constant 0 : index
      %13 = vector.load %arg5[%c0_12, %c0_13] : memref<1x64xf32, #tpu.memory_space<vmem>>, vector<1x64xf32>
      %14 = vector.broadcast %13 : vector<1x64xf32> to vector<16x64xf32>
      %15 = arith.addf %12, %14 : vector<16x64xf32>
      %cst_14 = arith.constant 0.000000e+00 : f32
      %16 = vector.broadcast %cst_14 : f32 to vector<16x64xf32>
      %17 = arith.maximumf %15, %16 : vector<16x64xf32>
      %18 = arith.truncf %17 : vector<16x64xf32> to vector<16x64xbf16>
      %c0_15 = arith.constant 0 : index
      %c0_16 = arith.constant 0 : index
      %19 = vector.load %arg6[%c0_15, %c0_16] : memref<16x64xbf16, #tpu.memory_space<vmem>>, vector<16x64xbf16>
      tpu.vector_store %arg6[%c0_15, %c0_16], %18 {strides = array<i32>} : memref<16x64xbf16, #tpu.memory_space<vmem>>, vector<16x64xbf16>,
    } else {
    }
    return
  }
  func.func @transform_0(%arg0: i32, %arg1: i32, %arg2: i32) -> (i32, i32) {
    %c0_i32 = arith.constant 0 : i32
    return %arg0, %arg2 : i32, i32
  }
  func.func @transform_1(%arg0: i32, %arg1: i32, %arg2: i32) -> (i32, i32) {
    %c0_i32 = arith.constant 0 : i32
    return %arg2, %arg1 : i32, i32
  }
  func.func @transform_2(%arg0: i32, %arg1: i32, %arg2: i32) -> (i32, i32) {
    %c0_i32 = arith.constant 0 : i32
    %c0_i32_0 = arith.constant 0 : i32
    return %c0_i32, %arg1 : i32, i32
  }
  func.func @transform_3(%arg0: i32, %arg1: i32, %arg2: i32) -> (i32, i32) {
    %c0_i32 = arith.constant 0 : i32
    return %arg0, %arg1 : i32, i32
  }
}

module attributes {stable_mosaic.version = 11 : i64} {
  func.func @_flash_attn_kernel(%arg0: i32, %arg1: i32, %arg2: i32, %arg3: memref<1x1x8x32xbf16, #tpu.memory_space<vmem>>, %arg4: memref<1x1x8x32xbf16, #tpu.memory_space<vmem>>, %arg5: memref<1x1x8x32xbf16, #tpu.memory_space<vmem>>, %arg6: memref<1x1x8xf32, #tpu.memory_space<vmem>>, %arg7: memref<1x8x32xbf16, #tpu.memory_space<vmem>>, %arg8: memref<8x32xf32, #tpu.memory_space<vmem>>, %arg9: memref<8x32xf32, #tpu.memory_space<vmem>>, %arg10: memref<8x32xf32, #tpu.memory_space<vmem>>) attributes {dimension_semantics = [#tpu.dimension_semantics<parallel>, #tpu.dimension_semantics<parallel>, #tpu.dimension_semantics<arbitrary>], iteration_bounds = array<i64: 2, 1, 1>, scalar_prefetch = 0 : i64, scratch_operands = 3 : i64, tpu.core_type = #tpu.core_type<tc>, window_params = [{transform_indices = @transform_0, window_bounds = array<i64: 1, 1, 8, 32>}, {transform_indices = @transform_1, window_bounds = array<i64: 1, 1, 8, 32>}, {transform_indices = @transform_2, window_bounds = array<i64: 1, 1, 8, 32>}, {transform_indices = @transform_3, window_bounds = array<i64: 1, 1, 8>}, {transform_indices = @transform_4, window_bounds = array<i64: 1, 8, 32>}]} {
    %c0_i32 = arith.constant 0 : i32
    %0 = arith.cmpi eq, %arg2, %c0_i32 : i32
    %1 = arith.extui %0 : i1 to i32
    %c0_i32_0 = arith.constant 0 : i32
    %2 = arith.cmpi ne, %1, %c0_i32_0 : i32
    scf.if %2 {
      %cst_120 = arith.constant -1.000000e+30 : f32
      %165 = vector.broadcast %cst_120 : f32 to vector<8x32xf32>
      %c0_121 = arith.constant 0 : index
      %c0_122 = arith.constant 0 : index
      %166 = vector.load %arg9[%c0_121, %c0_122] : memref<8x32xf32, #tpu.memory_space<vmem>>, vector<8x32xf32>
      tpu.vector_store %arg9[%c0_121, %c0_122], %165 {strides = array<i32>} : memref<8x32xf32, #tpu.memory_space<vmem>>, vector<8x32xf32>,
      %cst_123 = arith.constant 0.000000e+00 : f32
      %167 = vector.broadcast %cst_123 : f32 to vector<8x32xf32>
      %c0_124 = arith.constant 0 : index
      %c0_125 = arith.constant 0 : index
      %168 = vector.load %arg10[%c0_124, %c0_125] : memref<8x32xf32, #tpu.memory_space<vmem>>, vector<8x32xf32>
      tpu.vector_store %arg10[%c0_124, %c0_125], %167 {strides = array<i32>} : memref<8x32xf32, #tpu.memory_space<vmem>>, vector<8x32xf32>,
      %cst_126 = arith.constant 0.000000e+00 : f32
      %169 = vector.broadcast %cst_126 : f32 to vector<8x32xf32>
      %c0_127 = arith.constant 0 : index
      %c0_128 = arith.constant 0 : index
      %170 = vector.load %arg8[%c0_127, %c0_128] : memref<8x32xf32, #tpu.memory_space<vmem>>, vector<8x32xf32>
      tpu.vector_store %arg8[%c0_127, %c0_128], %169 {strides = array<i32>} : memref<8x32xf32, #tpu.memory_space<vmem>>, vector<8x32xf32>,
    } else {
    }
    %c0 = arith.constant 0 : index
    %c0_1 = arith.constant 0 : index
    %c0_2 = arith.constant 0 : index
    %3 = vector.load %arg6[%c0, %c0_1, %c0_2] : memref<1x1x8xf32, #tpu.memory_space<vmem>>, vector<1x1x8xf32>
    %4 = vector.shape_cast %3 : vector<1x1x8xf32> to vector<1x8xf32>
    %cst = arith.constant 0.000000e+00 : f32
    %5 = vector.broadcast %cst : f32 to vector<1x8xf32>
    %6 = arith.cmpf oeq, %4, %5 : vector<1x8xf32>
    %cst_3 = arith.constant -1.000000e+09 : f32
    %cst_4 = arith.constant 0.000000e+00 : f32
    %7 = vector.broadcast %cst_3 : f32 to vector<1x8xf32>
    %8 = vector.broadcast %cst_4 : f32 to vector<1x8xf32>
    %9 = arith.select %6, %7, %8 : vector<1x8xi1>, vector<1x8xf32>
    %c0_5 = arith.constant 0 : index
    %c0_6 = arith.constant 0 : index
    %c0_7 = arith.constant 0 : index
    %c0_8 = arith.constant 0 : index
    %10 = vector.load %arg3[%c0_5, %c0_6, %c0_7, %c0_8] : memref<1x1x8x32xbf16, #tpu.memory_space<vmem>>, vector<1x1x8x8xbf16>
    %11 = vector.shape_cast %10 : vector<1x1x8x8xbf16> to vector<8x8xbf16>
    %cst_9 = arith.constant 3.535160e-01 : bf16
    %12 = vector.broadcast %cst_9 : bf16 to vector<8x8xbf16>
    %13 = arith.mulf %11, %12 : vector<8x8xbf16>
    %c0_10 = arith.constant 0 : index
    %c0_11 = arith.constant 0 : index
    %c0_12 = arith.constant 0 : index
    %c0_13 = arith.constant 0 : index
    %14 = vector.load %arg4[%c0_10, %c0_11, %c0_12, %c0_13] : memref<1x1x8x32xbf16, #tpu.memory_space<vmem>>, vector<1x1x8x8xbf16>
    %15 = vector.shape_cast %14 : vector<1x1x8x8xbf16> to vector<8x8xbf16>
    %cst_14 = arith.constant dense<0.000000e+00> : vector<8x8xf32>
    %16 = tpu.matmul %13, %15, %cst_14 {dimension_numbers = #tpu.dot_dimension_numbers<[1], [1], [0], [0], [0, 0, 1, 0], [], []>} : vector<8x8xbf16>, vector<8x8xbf16>, vector<8x8xf32> -> vector<8x8xf32>
    %17 = vector.broadcast %9 : vector<1x8xf32> to vector<8x8xf32>
    %18 = arith.addf %16, %17 : vector<8x8xf32>
    %c0_15 = arith.constant 0 : index
    %c0_16 = arith.constant 0 : index
    %19 = vector.load %arg9[%c0_15, %c0_16] : memref<8x32xf32, #tpu.memory_space<vmem>>, vector<8x1xf32>
    %cst_17 = arith.constant dense<0xFF800000> : vector<8xf32>
    %20 = vector.multi_reduction <maximumf>, %18, %cst_17 [1] : vector<8x8xf32> to vector<8xf32>
    %21 = vector.shape_cast %20 : vector<8xf32> to vector<8x1xf32>
    %22 = arith.maximumf %19, %21 : vector<8x1xf32>
    %23 = arith.subf %19, %22 : vector<8x1xf32>
    %24 = math.exp %23 : vector<8x1xf32>
    %25 = vector.broadcast %22 : vector<8x1xf32> to vector<8x8xf32>
    %26 = arith.subf %18, %25 : vector<8x8xf32>
    %27 = math.exp %26 : vector<8x8xf32>
    %c0_18 = arith.constant 0 : index
    %c0_19 = arith.constant 0 : index
    %28 = vector.load %arg10[%c0_18, %c0_19] : memref<8x32xf32, #tpu.memory_space<vmem>>, vector<8x1xf32>
    %29 = arith.mulf %24, %28 : vector<8x1xf32>
    %cst_20 = arith.constant dense<0.000000e+00> : vector<8xf32>
    %30 = vector.multi_reduction <add>, %27, %cst_20 [1] : vector<8x8xf32> to vector<8xf32>
    %31 = vector.shape_cast %30 : vector<8xf32> to vector<8x1xf32>
    %32 = arith.addf %29, %31 : vector<8x1xf32>
    %c0_21 = arith.constant 0 : index
    %c0_22 = arith.constant 0 : index
    %33 = vector.load %arg8[%c0_21, %c0_22] : memref<8x32xf32, #tpu.memory_space<vmem>>, vector<8x8xf32>
    %34 = vector.broadcast %24 : vector<8x1xf32> to vector<8x8xf32>
    %35 = arith.mulf %34, %33 : vector<8x8xf32>
    %36 = arith.truncf %27 : vector<8x8xf32> to vector<8x8xbf16>
    %c0_23 = arith.constant 0 : index
    %c0_24 = arith.constant 0 : index
    %c0_25 = arith.constant 0 : index
    %c0_26 = arith.constant 0 : index
    %37 = vector.load %arg5[%c0_23, %c0_24, %c0_25, %c0_26] : memref<1x1x8x32xbf16, #tpu.memory_space<vmem>>, vector<1x1x8x8xbf16>
    %38 = vector.shape_cast %37 : vector<1x1x8x8xbf16> to vector<8x8xbf16>
    %cst_27 = arith.constant dense<0.000000e+00> : vector<8x8xf32>
    %39 = tpu.matmul %36, %38, %cst_27 {dimension_numbers = #tpu.dot_dimension_numbers<[1], [0], [0], [1], [0, 0, 1, 1], [], []>} : vector<8x8xbf16>, vector<8x8xbf16>, vector<8x8xf32> -> vector<8x8xf32>
    %40 = arith.addf %35, %39 : vector<8x8xf32>
    %c0_28 = arith.constant 0 : index
    %c0_29 = arith.constant 0 : index
    %41 = vector.load %arg8[%c0_28, %c0_29] : memref<8x32xf32, #tpu.memory_space<vmem>>, vector<8x8xf32>
    tpu.vector_store %arg8[%c0_28, %c0_29], %40 {strides = array<i32>} : memref<8x32xf32, #tpu.memory_space<vmem>>, vector<8x8xf32>,
    %42 = vector.shape_cast %22 : vector<8x1xf32> to vector<8x1xf32>
    %43 = vector.broadcast %42 : vector<8x1xf32> to vector<8x8xf32>
    %c0_30 = arith.constant 0 : index
    %c0_31 = arith.constant 0 : index
    %44 = vector.load %arg9[%c0_30, %c0_31] : memref<8x32xf32, #tpu.memory_space<vmem>>, vector<8x8xf32>
    tpu.vector_store %arg9[%c0_30, %c0_31], %43 {strides = array<i32>} : memref<8x32xf32, #tpu.memory_space<vmem>>, vector<8x8xf32>,
    %45 = vector.shape_cast %32 : vector<8x1xf32> to vector<8x1xf32>
    %46 = vector.broadcast %45 : vector<8x1xf32> to vector<8x8xf32>
    %c0_32 = arith.constant 0 : index
    %c0_33 = arith.constant 0 : index
    %47 = vector.load %arg10[%c0_32, %c0_33] : memref<8x32xf32, #tpu.memory_space<vmem>>, vector<8x8xf32>
    tpu.vector_store %arg10[%c0_32, %c0_33], %46 {strides = array<i32>} : memref<8x32xf32, #tpu.memory_space<vmem>>, vector<8x8xf32>,
    %c0_34 = arith.constant 0 : index
    %c0_35 = arith.constant 0 : index
    %c0_36 = arith.constant 0 : index
    %c8 = arith.constant 8 : index
    %48 = vector.load %arg3[%c0_34, %c0_35, %c0_36, %c8] : memref<1x1x8x32xbf16, #tpu.memory_space<vmem>>, vector<1x1x8x8xbf16>
    %49 = vector.shape_cast %48 : vector<1x1x8x8xbf16> to vector<8x8xbf16>
    %cst_37 = arith.constant 3.535160e-01 : bf16
    %50 = vector.broadcast %cst_37 : bf16 to vector<8x8xbf16>
    %51 = arith.mulf %49, %50 : vector<8x8xbf16>
    %c0_38 = arith.constant 0 : index
    %c0_39 = arith.constant 0 : index
    %c0_40 = arith.constant 0 : index
    %c8_41 = arith.constant 8 : index
    %52 = vector.load %arg4[%c0_38, %c0_39, %c0_40, %c8_41] : memref<1x1x8x32xbf16, #tpu.memory_space<vmem>>, vector<1x1x8x8xbf16>
    %53 = vector.shape_cast %52 : vector<1x1x8x8xbf16> to vector<8x8xbf16>
    %cst_42 = arith.constant dense<0.000000e+00> : vector<8x8xf32>
    %54 = tpu.matmul %51, %53, %cst_42 {dimension_numbers = #tpu.dot_dimension_numbers<[1], [1], [0], [0], [0, 0, 1, 0], [], []>} : vector<8x8xbf16>, vector<8x8xbf16>, vector<8x8xf32> -> vector<8x8xf32>
    %55 = vector.broadcast %9 : vector<1x8xf32> to vector<8x8xf32>
    %56 = arith.addf %54, %55 : vector<8x8xf32>
    %c0_43 = arith.constant 0 : index
    %c8_44 = arith.constant 8 : index
    %57 = vector.load %arg9[%c0_43, %c8_44] : memref<8x32xf32, #tpu.memory_space<vmem>>, vector<8x1xf32>
    %cst_45 = arith.constant dense<0xFF800000> : vector<8xf32>
    %58 = vector.multi_reduction <maximumf>, %56, %cst_45 [1] : vector<8x8xf32> to vector<8xf32>
    %59 = vector.shape_cast %58 : vector<8xf32> to vector<8x1xf32>
    %60 = arith.maximumf %57, %59 : vector<8x1xf32>
    %61 = arith.subf %57, %60 : vector<8x1xf32>
    %62 = math.exp %61 : vector<8x1xf32>
    %63 = vector.broadcast %60 : vector<8x1xf32> to vector<8x8xf32>
    %64 = arith.subf %56, %63 : vector<8x8xf32>
    %65 = math.exp %64 : vector<8x8xf32>
    %c0_46 = arith.constant 0 : index
    %c8_47 = arith.constant 8 : index
    %66 = vector.load %arg10[%c0_46, %c8_47] : memref<8x32xf32, #tpu.memory_space<vmem>>, vector<8x1xf32>
    %67 = arith.mulf %62, %66 : vector<8x1xf32>
    %cst_48 = arith.constant dense<0.000000e+00> : vector<8xf32>
    %68 = vector.multi_reduction <add>, %65, %cst_48 [1] : vector<8x8xf32> to vector<8xf32>
    %69 = vector.shape_cast %68 : vector<8xf32> to vector<8x1xf32>
    %70 = arith.addf %67, %69 : vector<8x1xf32>
    %c0_49 = arith.constant 0 : index
    %c8_50 = arith.constant 8 : index
    %71 = vector.load %arg8[%c0_49, %c8_50] : memref<8x32xf32, #tpu.memory_space<vmem>>, vector<8x8xf32>
    %72 = vector.broadcast %62 : vector<8x1xf32> to vector<8x8xf32>
    %73 = arith.mulf %72, %71 : vector<8x8xf32>
    %74 = arith.truncf %65 : vector<8x8xf32> to vector<8x8xbf16>
    %c0_51 = arith.constant 0 : index
    %c0_52 = arith.constant 0 : index
    %c0_53 = arith.constant 0 : index
    %c8_54 = arith.constant 8 : index
    %75 = vector.load %arg5[%c0_51, %c0_52, %c0_53, %c8_54] : memref<1x1x8x32xbf16, #tpu.memory_space<vmem>>, vector<1x1x8x8xbf16>
    %76 = vector.shape_cast %75 : vector<1x1x8x8xbf16> to vector<8x8xbf16>
    %cst_55 = arith.constant dense<0.000000e+00> : vector<8x8xf32>
    %77 = tpu.matmul %74, %76, %cst_55 {dimension_numbers = #tpu.dot_dimension_numbers<[1], [0], [0], [1], [0, 0, 1, 1], [], []>} : vector<8x8xbf16>, vector<8x8xbf16>, vector<8x8xf32> -> vector<8x8xf32>
    %78 = arith.addf %73, %77 : vector<8x8xf32>
    %c0_56 = arith.constant 0 : index
    %c8_57 = arith.constant 8 : index
    %79 = vector.load %arg8[%c0_56, %c8_57] : memref<8x32xf32, #tpu.memory_space<vmem>>, vector<8x8xf32>
    tpu.vector_store %arg8[%c0_56, %c8_57], %78 {strides = array<i32>} : memref<8x32xf32, #tpu.memory_space<vmem>>, vector<8x8xf32>,
    %80 = vector.shape_cast %60 : vector<8x1xf32> to vector<8x1xf32>
    %81 = vector.broadcast %80 : vector<8x1xf32> to vector<8x8xf32>
    %c0_58 = arith.constant 0 : index
    %c8_59 = arith.constant 8 : index
    %82 = vector.load %arg9[%c0_58, %c8_59] : memref<8x32xf32, #tpu.memory_space<vmem>>, vector<8x8xf32>
    tpu.vector_store %arg9[%c0_58, %c8_59], %81 {strides = array<i32>} : memref<8x32xf32, #tpu.memory_space<vmem>>, vector<8x8xf32>,
    %83 = vector.shape_cast %70 : vector<8x1xf32> to vector<8x1xf32>
    %84 = vector.broadcast %83 : vector<8x1xf32> to vector<8x8xf32>
    %c0_60 = arith.constant 0 : index
    %c8_61 = arith.constant 8 : index
    %85 = vector.load %arg10[%c0_60, %c8_61] : memref<8x32xf32, #tpu.memory_space<vmem>>, vector<8x8xf32>
    tpu.vector_store %arg10[%c0_60, %c8_61], %84 {strides = array<i32>} : memref<8x32xf32, #tpu.memory_space<vmem>>, vector<8x8xf32>,
    %c0_62 = arith.constant 0 : index
    %c0_63 = arith.constant 0 : index
    %c0_64 = arith.constant 0 : index
    %c16 = arith.constant 16 : index
    %86 = vector.load %arg3[%c0_62, %c0_63, %c0_64, %c16] : memref<1x1x8x32xbf16, #tpu.memory_space<vmem>>, vector<1x1x8x8xbf16>
    %87 = vector.shape_cast %86 : vector<1x1x8x8xbf16> to vector<8x8xbf16>
    %cst_65 = arith.constant 3.535160e-01 : bf16
    %88 = vector.broadcast %cst_65 : bf16 to vector<8x8xbf16>
    %89 = arith.mulf %87, %88 : vector<8x8xbf16>
    %c0_66 = arith.constant 0 : index
    %c0_67 = arith.constant 0 : index
    %c0_68 = arith.constant 0 : index
    %c16_69 = arith.constant 16 : index
    %90 = vector.load %arg4[%c0_66, %c0_67, %c0_68, %c16_69] : memref<1x1x8x32xbf16, #tpu.memory_space<vmem>>, vector<1x1x8x8xbf16>
    %91 = vector.shape_cast %90 : vector<1x1x8x8xbf16> to vector<8x8xbf16>
    %cst_70 = arith.constant dense<0.000000e+00> : vector<8x8xf32>
    %92 = tpu.matmul %89, %91, %cst_70 {dimension_numbers = #tpu.dot_dimension_numbers<[1], [1], [0], [0], [0, 0, 1, 0], [], []>} : vector<8x8xbf16>, vector<8x8xbf16>, vector<8x8xf32> -> vector<8x8xf32>
    %93 = vector.broadcast %9 : vector<1x8xf32> to vector<8x8xf32>
    %94 = arith.addf %92, %93 : vector<8x8xf32>
    %c0_71 = arith.constant 0 : index
    %c16_72 = arith.constant 16 : index
    %95 = vector.load %arg9[%c0_71, %c16_72] : memref<8x32xf32, #tpu.memory_space<vmem>>, vector<8x1xf32>
    %cst_73 = arith.constant dense<0xFF800000> : vector<8xf32>
    %96 = vector.multi_reduction <maximumf>, %94, %cst_73 [1] : vector<8x8xf32> to vector<8xf32>
    %97 = vector.shape_cast %96 : vector<8xf32> to vector<8x1xf32>
    %98 = arith.maximumf %95, %97 : vector<8x1xf32>
    %99 = arith.subf %95, %98 : vector<8x1xf32>
    %100 = math.exp %99 : vector<8x1xf32>
    %101 = vector.broadcast %98 : vector<8x1xf32> to vector<8x8xf32>
    %102 = arith.subf %94, %101 : vector<8x8xf32>
    %103 = math.exp %102 : vector<8x8xf32>
    %c0_74 = arith.constant 0 : index
    %c16_75 = arith.constant 16 : index
    %104 = vector.load %arg10[%c0_74, %c16_75] : memref<8x32xf32, #tpu.memory_space<vmem>>, vector<8x1xf32>
    %105 = arith.mulf %100, %104 : vector<8x1xf32>
    %cst_76 = arith.constant dense<0.000000e+00> : vector<8xf32>
    %106 = vector.multi_reduction <add>, %103, %cst_76 [1] : vector<8x8xf32> to vector<8xf32>
    %107 = vector.shape_cast %106 : vector<8xf32> to vector<8x1xf32>
    %108 = arith.addf %105, %107 : vector<8x1xf32>
    %c0_77 = arith.constant 0 : index
    %c16_78 = arith.constant 16 : index
    %109 = vector.load %arg8[%c0_77, %c16_78] : memref<8x32xf32, #tpu.memory_space<vmem>>, vector<8x8xf32>
    %110 = vector.broadcast %100 : vector<8x1xf32> to vector<8x8xf32>
    %111 = arith.mulf %110, %109 : vector<8x8xf32>
    %112 = arith.truncf %103 : vector<8x8xf32> to vector<8x8xbf16>
    %c0_79 = arith.constant 0 : index
    %c0_80 = arith.constant 0 : index
    %c0_81 = arith.constant 0 : index
    %c16_82 = arith.constant 16 : index
    %113 = vector.load %arg5[%c0_79, %c0_80, %c0_81, %c16_82] : memref<1x1x8x32xbf16, #tpu.memory_space<vmem>>, vector<1x1x8x8xbf16>
    %114 = vector.shape_cast %113 : vector<1x1x8x8xbf16> to vector<8x8xbf16>
    %cst_83 = arith.constant dense<0.000000e+00> : vector<8x8xf32>
    %115 = tpu.matmul %112, %114, %cst_83 {dimension_numbers = #tpu.dot_dimension_numbers<[1], [0], [0], [1], [0, 0, 1, 1], [], []>} : vector<8x8xbf16>, vector<8x8xbf16>, vector<8x8xf32> -> vector<8x8xf32>
    %116 = arith.addf %111, %115 : vector<8x8xf32>
    %c0_84 = arith.constant 0 : index
    %c16_85 = arith.constant 16 : index
    %117 = vector.load %arg8[%c0_84, %c16_85] : memref<8x32xf32, #tpu.memory_space<vmem>>, vector<8x8xf32>
    tpu.vector_store %arg8[%c0_84, %c16_85], %116 {strides = array<i32>} : memref<8x32xf32, #tpu.memory_space<vmem>>, vector<8x8xf32>,
    %118 = vector.shape_cast %98 : vector<8x1xf32> to vector<8x1xf32>
    %119 = vector.broadcast %118 : vector<8x1xf32> to vector<8x8xf32>
    %c0_86 = arith.constant 0 : index
    %c16_87 = arith.constant 16 : index
    %120 = vector.load %arg9[%c0_86, %c16_87] : memref<8x32xf32, #tpu.memory_space<vmem>>, vector<8x8xf32>
    tpu.vector_store %arg9[%c0_86, %c16_87], %119 {strides = array<i32>} : memref<8x32xf32, #tpu.memory_space<vmem>>, vector<8x8xf32>,
    %121 = vector.shape_cast %108 : vector<8x1xf32> to vector<8x1xf32>
    %122 = vector.broadcast %121 : vector<8x1xf32> to vector<8x8xf32>
    %c0_88 = arith.constant 0 : index
    %c16_89 = arith.constant 16 : index
    %123 = vector.load %arg10[%c0_88, %c16_89] : memref<8x32xf32, #tpu.memory_space<vmem>>, vector<8x8xf32>
    tpu.vector_store %arg10[%c0_88, %c16_89], %122 {strides = array<i32>} : memref<8x32xf32, #tpu.memory_space<vmem>>, vector<8x8xf32>,
    %c0_90 = arith.constant 0 : index
    %c0_91 = arith.constant 0 : index
    %c0_92 = arith.constant 0 : index
    %c24 = arith.constant 24 : index
    %124 = vector.load %arg3[%c0_90, %c0_91, %c0_92, %c24] : memref<1x1x8x32xbf16, #tpu.memory_space<vmem>>, vector<1x1x8x8xbf16>
    %125 = vector.shape_cast %124 : vector<1x1x8x8xbf16> to vector<8x8xbf16>
    %cst_93 = arith.constant 3.535160e-01 : bf16
    %126 = vector.broadcast %cst_93 : bf16 to vector<8x8xbf16>
    %127 = arith.mulf %125, %126 : vector<8x8xbf16>
    %c0_94 = arith.constant 0 : index
    %c0_95 = arith.constant 0 : index
    %c0_96 = arith.constant 0 : index
    %c24_97 = arith.constant 24 : index
    %128 = vector.load %arg4[%c0_94, %c0_95, %c0_96, %c24_97] : memref<1x1x8x32xbf16, #tpu.memory_space<vmem>>, vector<1x1x8x8xbf16>
    %129 = vector.shape_cast %128 : vector<1x1x8x8xbf16> to vector<8x8xbf16>
    %cst_98 = arith.constant dense<0.000000e+00> : vector<8x8xf32>
    %130 = tpu.matmul %127, %129, %cst_98 {dimension_numbers = #tpu.dot_dimension_numbers<[1], [1], [0], [0], [0, 0, 1, 0], [], []>} : vector<8x8xbf16>, vector<8x8xbf16>, vector<8x8xf32> -> vector<8x8xf32>
    %131 = vector.broadcast %9 : vector<1x8xf32> to vector<8x8xf32>
    %132 = arith.addf %130, %131 : vector<8x8xf32>
    %c0_99 = arith.constant 0 : index
    %c24_100 = arith.constant 24 : index
    %133 = vector.load %arg9[%c0_99, %c24_100] : memref<8x32xf32, #tpu.memory_space<vmem>>, vector<8x1xf32>
    %cst_101 = arith.constant dense<0xFF800000> : vector<8xf32>
    %134 = vector.multi_reduction <maximumf>, %132, %cst_101 [1] : vector<8x8xf32> to vector<8xf32>
    %135 = vector.shape_cast %134 : vector<8xf32> to vector<8x1xf32>
    %136 = arith.maximumf %133, %135 : vector<8x1xf32>
    %137 = arith.subf %133, %136 : vector<8x1xf32>
    %138 = math.exp %137 : vector<8x1xf32>
    %139 = vector.broadcast %136 : vector<8x1xf32> to vector<8x8xf32>
    %140 = arith.subf %132, %139 : vector<8x8xf32>
    %141 = math.exp %140 : vector<8x8xf32>
    %c0_102 = arith.constant 0 : index
    %c24_103 = arith.constant 24 : index
    %142 = vector.load %arg10[%c0_102, %c24_103] : memref<8x32xf32, #tpu.memory_space<vmem>>, vector<8x1xf32>
    %143 = arith.mulf %138, %142 : vector<8x1xf32>
    %cst_104 = arith.constant dense<0.000000e+00> : vector<8xf32>
    %144 = vector.multi_reduction <add>, %141, %cst_104 [1] : vector<8x8xf32> to vector<8xf32>
    %145 = vector.shape_cast %144 : vector<8xf32> to vector<8x1xf32>
    %146 = arith.addf %143, %145 : vector<8x1xf32>
    %c0_105 = arith.constant 0 : index
    %c24_106 = arith.constant 24 : index
    %147 = vector.load %arg8[%c0_105, %c24_106] : memref<8x32xf32, #tpu.memory_space<vmem>>, vector<8x8xf32>
    %148 = vector.broadcast %138 : vector<8x1xf32> to vector<8x8xf32>
    %149 = arith.mulf %148, %147 : vector<8x8xf32>
    %150 = arith.truncf %141 : vector<8x8xf32> to vector<8x8xbf16>
    %c0_107 = arith.constant 0 : index
    %c0_108 = arith.constant 0 : index
    %c0_109 = arith.constant 0 : index
    %c24_110 = arith.constant 24 : index
    %151 = vector.load %arg5[%c0_107, %c0_108, %c0_109, %c24_110] : memref<1x1x8x32xbf16, #tpu.memory_space<vmem>>, vector<1x1x8x8xbf16>
    %152 = vector.shape_cast %151 : vector<1x1x8x8xbf16> to vector<8x8xbf16>
    %cst_111 = arith.constant dense<0.000000e+00> : vector<8x8xf32>
    %153 = tpu.matmul %150, %152, %cst_111 {dimension_numbers = #tpu.dot_dimension_numbers<[1], [0], [0], [1], [0, 0, 1, 1], [], []>} : vector<8x8xbf16>, vector<8x8xbf16>, vector<8x8xf32> -> vector<8x8xf32>
    %154 = arith.addf %149, %153 : vector<8x8xf32>
    %c0_112 = arith.constant 0 : index
    %c24_113 = arith.constant 24 : index
    %155 = vector.load %arg8[%c0_112, %c24_113] : memref<8x32xf32, #tpu.memory_space<vmem>>, vector<8x8xf32>
    tpu.vector_store %arg8[%c0_112, %c24_113], %154 {strides = array<i32>} : memref<8x32xf32, #tpu.memory_space<vmem>>, vector<8x8xf32>,
    %156 = vector.shape_cast %136 : vector<8x1xf32> to vector<8x1xf32>
    %157 = vector.broadcast %156 : vector<8x1xf32> to vector<8x8xf32>
    %c0_114 = arith.constant 0 : index
    %c24_115 = arith.constant 24 : index
    %158 = vector.load %arg9[%c0_114, %c24_115] : memref<8x32xf32, #tpu.memory_space<vmem>>, vector<8x8xf32>
    tpu.vector_store %arg9[%c0_114, %c24_115], %157 {strides = array<i32>} : memref<8x32xf32, #tpu.memory_space<vmem>>, vector<8x8xf32>,
    %159 = vector.shape_cast %146 : vector<8x1xf32> to vector<8x1xf32>
    %160 = vector.broadcast %159 : vector<8x1xf32> to vector<8x8xf32>
    %c0_116 = arith.constant 0 : index
    %c24_117 = arith.constant 24 : index
    %161 = vector.load %arg10[%c0_116, %c24_117] : memref<8x32xf32, #tpu.memory_space<vmem>>, vector<8x8xf32>
    tpu.vector_store %arg10[%c0_116, %c24_117], %160 {strides = array<i32>} : memref<8x32xf32, #tpu.memory_space<vmem>>, vector<8x8xf32>,
    %c0_i32_118 = arith.constant 0 : i32
    %162 = arith.cmpi eq, %arg2, %c0_i32_118 : i32
    %163 = arith.extui %162 : i1 to i32
    %c0_i32_119 = arith.constant 0 : i32
    %164 = arith.cmpi ne, %163, %c0_i32_119 : i32
    scf.if %164 {
      %c0_120 = arith.constant 0 : index
      %c0_121 = arith.constant 0 : index
      %165 = vector.load %arg8[%c0_120, %c0_121] : memref<8x32xf32, #tpu.memory_space<vmem>>, vector<8x32xf32>
      %c0_122 = arith.constant 0 : index
      %c0_123 = arith.constant 0 : index
      %166 = vector.load %arg10[%c0_122, %c0_123] : memref<8x32xf32, #tpu.memory_space<vmem>>, vector<8x32xf32>
      %167 = tpu.reciprocal %166 {approx = true} : vector<8x32xf32> -> vector<8x32xf32>
      %168 = arith.mulf %165, %167 : vector<8x32xf32>
      %169 = arith.truncf %168 : vector<8x32xf32> to vector<8x32xbf16>
      %c0_124 = arith.constant 0 : index
      %c0_125 = arith.constant 0 : index
      %c0_126 = arith.constant 0 : index
      %170 = vector.load %arg7[%c0_124, %c0_125, %c0_126] : memref<1x8x32xbf16, #tpu.memory_space<vmem>>, vector<1x8x32xbf16>
      %171 = vector.shape_cast %170 : vector<1x8x32xbf16> to vector<8x32xbf16>
      %172 = vector.shape_cast %169 : vector<8x32xbf16> to vector<1x8x32xbf16>
      tpu.vector_store %arg7[%c0_124, %c0_125, %c0_126], %172 {strides = array<i32>} : memref<1x8x32xbf16, #tpu.memory_space<vmem>>, vector<1x8x32xbf16>,
    } else {
    }
    return
  }
  func.func @transform_0(%arg0: i32, %arg1: i32, %arg2: i32) -> (i32, i32, i32, i32) {
    %c0_i32 = arith.constant 0 : i32
    %c0_i32_0 = arith.constant 0 : i32
    %c0_i32_1 = arith.constant 0 : i32
    return %c0_i32, %arg0, %arg1, %c0_i32_0 : i32, i32, i32, i32
  }
  func.func @transform_1(%arg0: i32, %arg1: i32, %arg2: i32) -> (i32, i32, i32, i32) {
    %c1_i32 = arith.constant 1 : i32
    %c0_i32 = arith.constant 0 : i32
    %c0_i32_0 = arith.constant 0 : i32
    return %c1_i32, %arg0, %arg2, %c0_i32 : i32, i32, i32, i32
  }
  func.func @transform_2(%arg0: i32, %arg1: i32, %arg2: i32) -> (i32, i32, i32, i32) {
    %c2_i32 = arith.constant 2 : i32
    %c0_i32 = arith.constant 0 : i32
    %c0_i32_0 = arith.constant 0 : i32
    return %c2_i32, %arg0, %arg2, %c0_i32 : i32, i32, i32, i32
  }
  func.func @transform_3(%arg0: i32, %arg1: i32, %arg2: i32) -> (i32, i32, i32) {
    %c0_i32 = arith.constant 0 : i32
    %c0_i32_0 = arith.constant 0 : i32
    return %arg0, %c0_i32, %arg2 : i32, i32, i32
  }
  func.func @transform_4(%arg0: i32, %arg1: i32, %arg2: i32) -> (i32, i32, i32) {
    %c0_i32 = arith.constant 0 : i32
    %c0_i32_0 = arith.constant 0 : i32
    return %arg0, %arg1, %c0_i32 : i32, i32, i32
  }
}

module attributes {stable_mosaic.version = 11 : i64} {
  func.func @_linear_addln_kernel(%arg0: i32, %arg1: i32, %arg2: memref<16x64xbf16, #tpu.memory_space<vmem>>, %arg3: memref<64x32xbf16, #tpu.memory_space<vmem>>, %arg4: memref<1x32xf32, #tpu.memory_space<vmem>>, %arg5: memref<16x32xbf16, #tpu.memory_space<vmem>>, %arg6: memref<1x32xf32, #tpu.memory_space<vmem>>, %arg7: memref<1x32xf32, #tpu.memory_space<vmem>>, %arg8: memref<16x32xbf16, #tpu.memory_space<vmem>>, %arg9: memref<16x32xf32, #tpu.memory_space<vmem>>) attributes {dimension_semantics = [#tpu.dimension_semantics<parallel>, #tpu.dimension_semantics<arbitrary>], iteration_bounds = array<i64: 1, 1>, scalar_prefetch = 0 : i64, scratch_operands = 1 : i64, tpu.core_type = #tpu.core_type<tc>, window_params = [{transform_indices = @transform_0, window_bounds = array<i64: 16, 64>}, {transform_indices = @transform_1, window_bounds = array<i64: 64, 32>}, {pipeline_mode = #tpu.pipeline_mode<synchronous>, transform_indices = @transform_2, window_bounds = array<i64: 1, 32>}, {transform_indices = @transform_3, window_bounds = array<i64: 16, 32>}, {pipeline_mode = #tpu.pipeline_mode<synchronous>, transform_indices = @transform_4, window_bounds = array<i64: 1, 32>}, {pipeline_mode = #tpu.pipeline_mode<synchronous>, transform_indices = @transform_5, window_bounds = array<i64: 1, 32>}, {transform_indices = @transform_6, window_bounds = array<i64: 16, 32>}]} {
    %c0_i32 = arith.constant 0 : i32
    %0 = arith.cmpi eq, %arg1, %c0_i32 : i32
    %1 = arith.extui %0 : i1 to i32
    %c0_i32_0 = arith.constant 0 : i32
    %2 = arith.cmpi ne, %1, %c0_i32_0 : i32
    scf.if %2 {
      %cst_10 = arith.constant 0.000000e+00 : f32
      %12 = vector.broadcast %cst_10 : f32 to vector<16x32xf32>
      %c0_11 = arith.constant 0 : index
      %c0_12 = arith.constant 0 : index
      %13 = vector.load %arg9[%c0_11, %c0_12] : memref<16x32xf32, #tpu.memory_space<vmem>>, vector<16x32xf32>
      tpu.vector_store %arg9[%c0_11, %c0_12], %12 {strides = array<i32>} : memref<16x32xf32, #tpu.memory_space<vmem>>, vector<16x32xf32>,
    } else {
    }
    %c0 = arith.constant 0 : index
    %c0_1 = arith.constant 0 : index
    %3 = vector.load %arg9[%c0, %c0_1] : memref<16x32xf32, #tpu.memory_space<vmem>>, vector<16x32xf32>
    %c0_2 = arith.constant 0 : index
    %c0_3 = arith.constant 0 : index
    %4 = vector.load %arg2[%c0_2, %c0_3] : memref<16x64xbf16, #tpu.memory_space<vmem>>, vector<16x64xbf16>
    %c0_4 = arith.constant 0 : index
    %c0_5 = arith.constant 0 : index
    %5 = vector.load %arg3[%c0_4, %c0_5] : memref<64x32xbf16, #tpu.memory_space<vmem>>, vector<64x32xbf16>
    %cst = arith.constant dense<0.000000e+00> : vector<16x32xf32>
    %6 = tpu.matmul %4, %5, %cst {dimension_numbers = #tpu.dot_dimension_numbers<[1], [0], [0], [1], [0, 0, 1, 1], [], []>} : vector<16x64xbf16>, vector<64x32xbf16>, vector<16x32xf32> -> vector<16x32xf32>
    %7 = arith.addf %3, %6 : vector<16x32xf32>
    %c0_6 = arith.constant 0 : index
    %c0_7 = arith.constant 0 : index
    %8 = vector.load %arg9[%c0_6, %c0_7] : memref<16x32xf32, #tpu.memory_space<vmem>>, vector<16x32xf32>
    tpu.vector_store %arg9[%c0_6, %c0_7], %7 {strides = array<i32>} : memref<16x32xf32, #tpu.memory_space<vmem>>, vector<16x32xf32>,
    %c0_i32_8 = arith.constant 0 : i32
    %9 = arith.cmpi eq, %arg1, %c0_i32_8 : i32
    %10 = arith.extui %9 : i1 to i32
    %c0_i32_9 = arith.constant 0 : i32
    %11 = arith.cmpi ne, %10, %c0_i32_9 : i32
    scf.if %11 {
      %c0_10 = arith.constant 0 : index
      %c0_11 = arith.constant 0 : index
      %12 = vector.load %arg9[%c0_10, %c0_11] : memref<16x32xf32, #tpu.memory_space<vmem>>, vector<16x32xf32>
      %c0_12 = arith.constant 0 : index
      %c0_13 = arith.constant 0 : index
      %13 = vector.load %arg4[%c0_12, %c0_13] : memref<1x32xf32, #tpu.memory_space<vmem>>, vector<1x32xf32>
      %14 = vector.broadcast %13 : vector<1x32xf32> to vector<16x32xf32>
      %15 = arith.addf %12, %14 : vector<16x32xf32>
      %c0_14 = arith.constant 0 : index
      %c0_15 = arith.constant 0 : index
      %16 = vector.load %arg5[%c0_14, %c0_15] : memref<16x32xbf16, #tpu.memory_space<vmem>>, vector<16x32xbf16>
      %17 = arith.extf %16 : vector<16x32xbf16> to vector<16x32xf32>
      %18 = arith.addf %15, %17 : vector<16x32xf32>
      %cst_16 = arith.constant dense<0.000000e+00> : vector<16xf32>
      %19 = vector.multi_reduction <add>, %18, %cst_16 [1] : vector<16x32xf32> to vector<16xf32>
      %20 = vector.shape_cast %19 : vector<16xf32> to vector<16x1xf32>
      %cst_17 = arith.constant 3.200000e+01 : f32
      %21 = vector.broadcast %cst_17 : f32 to vector<16x1xf32>
      %22 = arith.divf %20, %21 : vector<16x1xf32>
      %23 = vector.broadcast %22 : vector<16x1xf32> to vector<16x32xf32>
      %24 = arith.subf %18, %23 : vector<16x32xf32>
      %25 = arith.mulf %24, %24 : vector<16x32xf32>
      %cst_18 = arith.constant dense<0.000000e+00> : vector<16xf32>
      %26 = vector.multi_reduction <add>, %25, %cst_18 [1] : vector<16x32xf32> to vector<16xf32>
      %27 = vector.shape_cast %26 : vector<16xf32> to vector<16x1xf32>
      %cst_19 = arith.constant 3.200000e+01 : f32
      %28 = vector.broadcast %cst_19 : f32 to vector<16x1xf32>
      %29 = arith.divf %27, %28 : vector<16x1xf32>
      %30 = vector.broadcast %22 : vector<16x1xf32> to vector<16x32xf32>
      %31 = arith.subf %18, %30 : vector<16x32xf32>
      %cst_20 = arith.constant 9.99999974E-6 : f32
      %32 = vector.broadcast %cst_20 : f32 to vector<16x1xf32>
      %33 = arith.addf %29, %32 : vector<16x1xf32>
      %34 = math.rsqrt %33 : vector<16x1xf32>
      %35 = vector.broadcast %34 : vector<16x1xf32> to vector<16x32xf32>
      %36 = arith.mulf %31, %35 : vector<16x32xf32>
      %c0_21 = arith.constant 0 : index
      %c0_22 = arith.constant 0 : index
      %37 = vector.load %arg6[%c0_21, %c0_22] : memref<1x32xf32, #tpu.memory_space<vmem>>, vector<1x32xf32>
      %38 = vector.broadcast %37 : vector<1x32xf32> to vector<16x32xf32>
      %39 = arith.mulf %36, %38 : vector<16x32xf32>
      %c0_23 = arith.constant 0 : index
      %c0_24 = arith.constant 0 : index
      %40 = vector.load %arg7[%c0_23, %c0_24] : memref<1x32xf32, #tpu.memory_space<vmem>>, vector<1x32xf32>
      %41 = vector.broadcast %40 : vector<1x32xf32> to vector<16x32xf32>
      %42 = arith.addf %39, %41 : vector<16x32xf32>
      %43 = arith.truncf %42 : vector<16x32xf32> to vector<16x32xbf16>
      %c0_25 = arith.constant 0 : index
      %c0_26 = arith.constant 0 : index
      %44 = vector.load %arg8[%c0_25, %c0_26] : memref<16x32xbf16, #tpu.memory_space<vmem>>, vector<16x32xbf16>
      tpu.vector_store %arg8[%c0_25, %c0_26], %43 {strides = array<i32>} : memref<16x32xbf16, #tpu.memory_space<vmem>>, vector<16x32xbf16>,
    } else {
    }
    return
  }
  func.func @transform_0(%arg0: i32, %arg1: i32) -> (i32, i32) {
    %c0_i32 = arith.constant 0 : i32
    return %arg0, %arg1 : i32, i32
  }
  func.func @transform_1(%arg0: i32, %arg1: i32) -> (i32, i32) {
    %c0_i32 = arith.constant 0 : i32
    %c0_i32_0 = arith.constant 0 : i32
    return %arg1, %c0_i32 : i32, i32
  }
  func.func @transform_2(%arg0: i32, %arg1: i32) -> (i32, i32) {
    %c0_i32 = arith.constant 0 : i32
    %c0_i32_0 = arith.constant 0 : i32
    %c0_i32_1 = arith.constant 0 : i32
    return %c0_i32, %c0_i32_0 : i32, i32
  }
  func.func @transform_3(%arg0: i32, %arg1: i32) -> (i32, i32) {
    %c0_i32 = arith.constant 0 : i32
    %c0_i32_0 = arith.constant 0 : i32
    return %arg0, %c0_i32 : i32, i32
  }
  func.func @transform_4(%arg0: i32, %arg1: i32) -> (i32, i32) {
    %c0_i32 = arith.constant 0 : i32
    %c0_i32_0 = arith.constant 0 : i32
    %c0_i32_1 = arith.constant 0 : i32
    return %c0_i32, %c0_i32_0 : i32, i32
  }
  func.func @transform_5(%arg0: i32, %arg1: i32) -> (i32, i32) {
    %c0_i32 = arith.constant 0 : i32
    %c0_i32_0 = arith.constant 0 : i32
    %c0_i32_1 = arith.constant 0 : i32
    return %c0_i32, %c0_i32_0 : i32, i32
  }
  func.func @transform_6(%arg0: i32, %arg1: i32) -> (i32, i32) {
    %c0_i32 = arith.constant 0 : i32
    %c0_i32_0 = arith.constant 0 : i32
    return %arg0, %c0_i32 : i32, i32
  }
}

</mosaic_0001>

<llo_original>
// kernel: encoder_forward.10
$region0: #{encoder_forward.10}
  #allocation0 [shape = 'u32[]', space=smem, size = 0x4, offset = 0x4, fixed_abs, tag = 'smem constant byte address 0x4 - core index']
  #allocation1 [shape = 'u32[144,128]{1,0:T(1,128)}', space=vmem, size = 0x12000, scoped, tag = 'internal scratch']
  #allocation2 [shape = 'f32[16,32]{1,0:T(8,128)}', space=vmem, size = 0x2000, scoped, tag = 'scratch operand']
  %s0 = inlined_call_operand.vmem [shape: bf16[16,32], index: 0, kind: input, shape index: {}]
  %s1 = inlined_call_operand.vmem [shape: bf16[3,32,32], index: 1, kind: input, shape index: {}]
  %s2 = inlined_call_operand.vmem [shape: f32[3,1,32], index: 2, kind: input, shape index: {}]
  %s3 = inlined_call_operand.vmem [shape: bf16[3,16,32], index: 3, kind: output, shape index: {}]
  %s4 = sld [smem:[#allocation0]]
  $region53: #{encoder_forward.10} parent=0
    _
  %s6 = ssub.s32 1, %s4
  %s7 = scalar_select 0, %s6, %s4
  loop: start=0, step=1, limit=5
  $region2: #{encoder_forward.10} parent=0 // loop_pre_header
    _
  $region3: #{encoder_forward.10} parent=0 // loop_header
    %s9 = sphi 0, %s13
    %p10 = scmp.ge.s32.totalorder %s9, 5
    %s16 = sphi 0, %s42
    %s17 = sphi 0, %s38
    %s18 = sphi 0, %s34
    %s19 = sphi 0, %s30
    %s20 = sphi 0, %s16
    %s21 = sphi 0, %s17
    %s22 = sphi 0, %s18
    %s23 = sphi 0, %s19
    %s24 = sphi 0, %s20
    %s25 = sphi 0, %s21
    %s26 = sphi 0, %s22
    %s27 = sphi 0, %s23
    %s47 = sphi 0, %s49
    %s50 = sphi 0, %s47
    %s51 = sphi 0, %s50
    %s67 = sphi 0, %s51
    %s77 = sphi 0, %s79
    %s80 = sphi 0, %s77
    %s81 = sphi 0, %s80
    %s97 = sphi 0, %s81
    %s105 = sphi 0, %s107
    %s108 = sphi 0, %s105
    %s109 = sphi 0, %s108
    %s125 = sphi 0, %s109
    %s135 = sphi 0, %s137
    %s138 = sphi 0, %s135
    %s139 = sphi 0, %s138
    %s155 = sphi 0, %s139
  $region4: #{encoder_forward.10} parent=0 // loop_header_branch
    %12 = sbr.rel (%p10) target = $region8
  $region5: #{encoder_forward.10} parent=0 // loop_body
    %s14 = ssub.s32 %s9, 1
    %s15 = ssub.s32 %s9, 2
    %s28 = sadd.s32 1, %s19
    %p29 = scmp.ge.s32.totalorder %s28, 1
    %s30 = scalar_select %p29, 0, %s28
    %s31 = sadd.s32 1, %s18
    %s32 = scalar_select %p29, %s31, %s18
    %p33 = scmp.ge.s32.totalorder %s32, 1
    %s34 = scalar_select %p33, 0, %s32
    %s35 = sadd.s32 1, %s17
    %s36 = scalar_select %p33, %s35, %s17
    %p37 = scmp.ge.s32.totalorder %s36, 1
    %s38 = scalar_select %p37, 0, %s36
    %s39 = sadd.s32 1, %s16
    %s40 = scalar_select %p37, %s39, %s16
    %p41 = scmp.ge.s32.totalorder %s40, 3
    %s42 = scalar_select %p41, 0, %s40
    %s43 = ssub.s32 %s17, %s38
    %s44 = ssub.s32 %s19, %s30
    %s45 = sor.u32 %s43, %s44
    %p46 = scmp.eq.s32.totalorder %s45, 0
    %s48 = sadd.s32 %s47, 1
    %s49 = scalar_select %p46, %s47, %s48
    %p52 = pneg %p46
    %p53 = scmp.eq.s32.totalorder %s9, 2
    %p54 = por %p52, %p53
    %p55 = scmp.ne.s32.totalorder %s47, %s50
    %p56 = scmp.eq.s32.totalorder %s9, 0
    %p57 = por %p55, %p56
    %p58 = scmp.ne.s32.totalorder %s47, %s50
    %p59 = scmp.eq.s32.totalorder %s14, 2
    %p60 = por %p58, %p59
    %p61 = scmp.ne.s32.totalorder %s50, %s51
    %p62 = scmp.eq.s32.totalorder %s14, 0
    %p63 = por %p61, %p62
    %p64 = scmp.ne.s32.totalorder %s50, %s51
    %p65 = scmp.eq.s32.totalorder %s15, 2
    %p66 = por %p64, %p65
    %p68 = scmp.ne.s32.totalorder %s51, %s67
    %p69 = scmp.eq.s32.totalorder %s15, 0
    %p70 = por %p68, %p69
    %s71 = ssub.s32 %s16, %s42
    %s72 = ssub.s32 %s19, %s30
    %s73 = sor.u32 %s71, %s72
    %s74 = ssub.s32 %s18, %s34
    %s75 = sor.u32 %s73, %s74
    %p76 = scmp.eq.s32.totalorder %s75, 0
    %s78 = sadd.s32 %s77, 1
    %s79 = scalar_select %p76, %s77, %s78
    %p82 = pneg %p76
    %p83 = scmp.eq.s32.totalorder %s9, 2
    %p84 = por %p82, %p83
    %p85 = scmp.ne.s32.totalorder %s77, %s80
    %p86 = scmp.eq.s32.totalorder %s9, 0
    %p87 = por %p85, %p86
    %p88 = scmp.ne.s32.totalorder %s77, %s80
    %p89 = scmp.eq.s32.totalorder %s14, 2
    %p90 = por %p88, %p89
    %p91 = scmp.ne.s32.totalorder %s80, %s81
    %p92 = scmp.eq.s32.totalorder %s14, 0
    %p93 = por %p91, %p92
    %p94 = scmp.ne.s32.totalorder %s80, %s81
    %p95 = scmp.eq.s32.totalorder %s15, 2
    %p96 = por %p94, %p95
    %p98 = scmp.ne.s32.totalorder %s81, %s97
    %p99 = scmp.eq.s32.totalorder %s15, 0
    %p100 = por %p98, %p99
    %s101 = ssub.s32 %s16, %s42
    %s102 = ssub.s32 %s18, %s34
    %s103 = sor.u32 %s101, %s102
    %p104 = scmp.eq.s32.totalorder %s103, 0
    %s106 = sadd.s32 %s105, 1
    %s107 = scalar_select %p104, %s105, %s106
    %p110 = pneg %p104
    %p111 = scmp.eq.s32.totalorder %s9, 2
    %p112 = por %p110, %p111
    %p113 = scmp.ne.s32.totalorder %s105, %s108
    %p114 = scmp.eq.s32.totalorder %s9, 0
    %p115 = por %p113, %p114
    %p116 = scmp.ne.s32.totalorder %s105, %s108
    %p117 = scmp.eq.s32.totalorder %s14, 2
    %p118 = por %p116, %p117
    %p119 = scmp.ne.s32.totalorder %s108, %s109
    %p120 = scmp.eq.s32.totalorder %s14, 0
    %p121 = por %p119, %p120
    %p122 = scmp.ne.s32.totalorder %s108, %s109
    %p123 = scmp.eq.s32.totalorder %s15, 2
    %p124 = por %p122, %p123
    %p126 = scmp.ne.s32.totalorder %s109, %s125
    %p127 = scmp.eq.s32.totalorder %s15, 0
    %p128 = por %p126, %p127
    %s129 = ssub.s32 %s16, %s42
    %s130 = ssub.s32 %s17, %s38
    %s131 = sor.u32 %s129, %s130
    %s132 = ssub.s32 %s18, %s34
    %s133 = sor.u32 %s131, %s132
    %p134 = scmp.eq.s32.totalorder %s133, 0
    %s136 = sadd.s32 %s135, 1
    %s137 = scalar_select %p134, %s135, %s136
    %p140 = pneg %p134
    %p141 = scmp.eq.s32.totalorder %s9, 2
    %p142 = por %p140, %p141
    %p143 = scmp.ne.s32.totalorder %s135, %s138
    %p144 = scmp.eq.s32.totalorder %s9, 0
    %p145 = por %p143, %p144
    %p146 = scmp.ne.s32.totalorder %s135, %s138
    %p147 = scmp.eq.s32.totalorder %s14, 2
    %p148 = por %p146, %p147
    %p149 = scmp.ne.s32.totalorder %s138, %s139
    %p150 = scmp.eq.s32.totalorder %s14, 0
    %p151 = por %p149, %p150
    %p152 = scmp.ne.s32.totalorder %s138, %s139
    %p153 = scmp.eq.s32.totalorder %s15, 2
    %p154 = por %p152, %p153
    %p156 = scmp.ne.s32.totalorder %s139, %s155
    %p157 = scmp.eq.s32.totalorder %s15, 0
    %p158 = por %p156, %p157
    %p159 = scmp.le.s32.totalorder 1, %s9
    %p160 = scmp.lt.s32.totalorder %s9, 4
    %p161 = pnand %p159, %p160
    %p162 = pneg %p161
    // Predicated region
    $region9: #{encoder_forward.10} parent=5 // pred_check
      _
    $region10: #{encoder_forward.10} parent=5 // pred_check_branch
      %164 = sbr.rel (%p161) target = $region12
    $region11: #{encoder_forward.10} parent=5 // pred_region
      %s165 = ssub.s32 %s9, 1
      // Predicated region
      $region13: #{encoder_forward.10} parent=11 // pred_check
        %p166 = pneg %p63
      $region14: #{encoder_forward.10} parent=11 // pred_check_branch
        %168 = sbr.rel (%p166) target = $region16
      $region15: #{encoder_forward.10} parent=11 // pred_region
        %s169 = smul.u32 2, %s21
        %p170 = scmp.lt.s32.totalorder %s169, 1
        %s171 = scalar_select %p170, %s169, 1
        %p172 = scmp.lt.s32.totalorder %s23, 0
        %s173 = scalar_select %p172, %s23, 0
        %s174 = sadd.s32 %s173, %s171
        %s175 = smul.addr %s174, 4
        %s176 = scalar_lea.vmem %s0, %s175
        %s177 = smul.u32 2, %s21
      $region16: #{encoder_forward.10} parent=11 // pred_fallthru
        _
    $region12: #{encoder_forward.10} parent=5 // pred_fallthru
      _
    %p178 = scmp.lt.s32.totalorder %s9, 3
    // Predicated region
    $region17: #{encoder_forward.10} parent=5 // pred_check
      %p179 = pneg %p178
    $region18: #{encoder_forward.10} parent=5 // pred_check_branch
      %181 = sbr.rel (%p179) target = $region20
    $region19: #{encoder_forward.10} parent=5 // pred_region
      // Predicated region
      $region21: #{encoder_forward.10} parent=19 // pred_check
        %p182 = pneg %p87
      $region22: #{encoder_forward.10} parent=19 // pred_check_branch
        %184 = sbr.rel (%p182) target = $region24
      $region23: #{encoder_forward.10} parent=19 // pred_region
        %s185 = smul.u32 4, %s19
        %p186 = scmp.lt.s32.totalorder %s16, 2
        %s187 = scalar_select %p186, %s16, 2
        %p188 = scmp.lt.s32.totalorder %s185, 3
        %s189 = scalar_select %p188, %s185, 3
        %p190 = scmp.lt.s32.totalorder %s18, 0
        %s191 = scalar_select %p190, %s18, 0
        %s192 = sadd.s32 %s191, %s189
        %s193 = smul.addr %s187, 4
        %s194 = sadd.s32 %s192, %s193
        %s195 = smul.addr %s194, 4
        %s196 = scalar_lea.vmem %s1, %s195
        %s197 = smul.u32 4, %s19
      $region24: #{encoder_forward.10} parent=19 // pred_fallthru
        _
      // Predicated region
      $region25: #{encoder_forward.10} parent=19 // pred_check
        %p198 = pneg %p115
      $region26: #{encoder_forward.10} parent=19 // pred_check_branch
        %200 = sbr.rel (%p198) target = $region28
      $region27: #{encoder_forward.10} parent=19 // pred_region
        %p201 = scmp.lt.s32.totalorder %s16, 2
        %s202 = scalar_select %p201, %s16, 2
        %p203 = scmp.lt.s32.totalorder %s18, 0
        %s204 = scalar_select %p203, %s18, 0
        %s205 = sadd.s32 %s204, %s202
        %s206 = scalar_lea.vmem %s2, %s205
      $region28: #{encoder_forward.10} parent=19 // pred_fallthru
        _
    $region20: #{encoder_forward.10} parent=5 // pred_fallthru
      _
    %p207 = scmp.le.s32.totalorder 1, %s9
    %p208 = scmp.lt.s32.totalorder %s9, 4
    %p209 = pnand %p207, %p208
    %p210 = pneg %p209
    // Predicated region
    $region29: #{encoder_forward.10} parent=5 // pred_check
      _
    $region30: #{encoder_forward.10} parent=5 // pred_check_branch
      %212 = sbr.rel (%p209) target = $region32
    $region31: #{encoder_forward.10} parent=5 // pred_region
      %s213 = ssub.s32 %s9, 1
      %s214 = smul.u32 2, %s21
      %p215 = scmp.lt.s32.totalorder %s214, 1
      %s216 = scalar_select %p215, %s214, 1
      %p217 = scmp.lt.s32.totalorder %s23, 0
      %s218 = scalar_select %p217, %s23, 0
      %s219 = sadd.s32 %s218, %s216
      %s220 = smul.addr %s219, 4
      %s221 = scalar_lea.vmem %s0, %s220
      %p222 = pneg %p63
      %p223 = pneg %p60
      %s224 = smul.u32 4, %s23
      %p225 = scmp.lt.s32.totalorder %s20, 2
      %s226 = scalar_select %p225, %s20, 2
      %p227 = scmp.lt.s32.totalorder %s224, 3
      %s228 = scalar_select %p227, %s224, 3
      %p229 = scmp.lt.s32.totalorder %s22, 0
      %s230 = scalar_select %p229, %s22, 0
      %s231 = sadd.s32 %s230, %s228
      %s232 = smul.addr %s226, 4
      %s233 = sadd.s32 %s231, %s232
      %s234 = smul.addr %s233, 4
      %s235 = scalar_lea.vmem %s1, %s234
      %p236 = pneg %p93
      %p237 = pneg %p90
      %p238 = scmp.lt.s32.totalorder %s20, 2
      %s239 = scalar_select %p238, %s20, 2
      %p240 = scmp.lt.s32.totalorder %s22, 0
      %s241 = scalar_select %p240, %s22, 0
      %s242 = sadd.s32 %s241, %s239
      %s243 = scalar_lea.vmem %s2, %s242
      %p244 = pneg %p121
      %p245 = pneg %p118
      %p246 = pneg %p151
      %p247 = pneg %p148
      %s248 = smul.u32 2, %s21
      %p249 = scmp.lt.s32.totalorder %s20, 2
      %s250 = scalar_select %p249, %s20, 2
      %p251 = scmp.lt.s32.totalorder %s248, 1
      %s252 = scalar_select %p251, %s248, 1
      %p253 = scmp.lt.s32.totalorder %s22, 0
      %s254 = scalar_select %p253, %s22, 0
      %s255 = sadd.s32 %s254, %s252
      %s256 = smul.addr %s250, 2
      %s257 = sadd.s32 %s255, %s256
      %s258 = smul.addr %s257, 4
      %s259 = scalar_lea.vmem %s3, %s258
      %s260 = smul.u32 2, %s21
      %p261 = scmp.lt.s32.totalorder %s260, 1
      %s262 = scalar_select %p261, %s260, 1
      %p263 = scmp.lt.s32.totalorder %s23, 0
      %s264 = scalar_select %p263, %s23, 0
      %s265 = sadd.s32 %s264, %s262
      %s266 = smul.addr %s265, 4
      %s267 = scalar_lea.vmem %s0, %s266
      %s268 = smul.u32 2, %s21
      %s269 = smul.u32 4, %s23
      %p270 = scmp.lt.s32.totalorder %s20, 2
      %s271 = scalar_select %p270, %s20, 2
      %p272 = scmp.lt.s32.totalorder %s269, 3
      %s273 = scalar_select %p272, %s269, 3
      %p274 = scmp.lt.s32.totalorder %s22, 0
      %s275 = scalar_select %p274, %s22, 0
      %s276 = sadd.s32 %s275, %s273
      %s277 = smul.addr %s271, 4
      %s278 = sadd.s32 %s276, %s277
      %s279 = smul.addr %s278, 4
      %s280 = scalar_lea.vmem %s1, %s279
      %s281 = smul.u32 4, %s23
      %p282 = scmp.lt.s32.totalorder %s20, 2
      %s283 = scalar_select %p282, %s20, 2
      %p284 = scmp.lt.s32.totalorder %s22, 0
      %s285 = scalar_select %p284, %s22, 0
      %s286 = sadd.s32 %s285, %s283
      %s287 = scalar_lea.vmem %s2, %s286
      %s288 = smul.u32 2, %s21
      %p289 = scmp.lt.s32.totalorder %s20, 2
      %s290 = scalar_select %p289, %s20, 2
      %p291 = scmp.lt.s32.totalorder %s288, 1
      %s292 = scalar_select %p291, %s288, 1
      %p293 = scmp.lt.s32.totalorder %s22, 0
      %s294 = scalar_select %p293, %s22, 0
      %s295 = sadd.s32 %s294, %s292
      %s296 = smul.addr %s290, 2
      %s297 = sadd.s32 %s295, %s296
      %s298 = smul.addr %s297, 4
      %s299 = scalar_lea.vmem %s3, %s298
      %s300 = smul.u32 2, %s21
      %p302 = scmp.eq.s32.totalorder %s23, 0
      // Predicated region
      $region33: #{encoder_forward.10} parent=31 // pred_check
        %p303 = pneg %p302
      $region34: #{encoder_forward.10} parent=31 // pred_check_branch
        %305 = sbr.rel (%p303) target = $region36
      $region35: #{encoder_forward.10} parent=31 // pred_region
        %vm306 = vcmask 261120
        %307 = vst.msk [vmem:[#allocation2] sm:$0xff] %vm306, 0.0
        %308 = vst.msk [vmem:[#allocation2 + $0x8] sm:$0xff] %vm306, 0.0
      $region36: #{encoder_forward.10} parent=31 // pred_fallthru
        _
      %v309 = vld [vmem:[#allocation2] sm:$0xff]
      %v310 = vld [vmem:[#allocation2 + $0x8] sm:$0xff]
      %v311 = vld [vmem:[%s267] sm:$0xf]
      %v312 = vld [vmem:[%s267 + $0x4] sm:$0xf]
      %v313 = vld [vmem:[%s280] sm:$0xf]
      %v314 = vld [vmem:[%s280 + $0x4] sm:$0xf]
      %v315 = vld [vmem:[%s280 + $0x8] sm:$0xf]
      %v316 = vld [vmem:[%s280 + $0xc] sm:$0xf]
      %v319 = vunpack.c.l.b16 %v311
      %v320 = vunpack.c.l.b16 %v312
      %v321 = vpack.c.b16 %v320, %v319
      %v326 = vunpack.c.l.b16 %v313
      %v327 = vunpack.c.l.b16 %v314
      %v328 = vunpack.c.l.b16 %v315
      %v329 = vunpack.c.l.b16 %v316
      %v330 = vpack.c.b16 %v327, %v326
      %v331 = vpack.c.b16 %v329, %v328
      %vm334 = vcmask 261120
      %v336 = vsel %vm334, %v321, 0
      %338 = vmatprep.subr.bf16.mxu0 0
      %339 = vmatpush1.bf16.msra.mxu0 %v330
      %340 = vmatprep.subr.bf16.mxu0 0
      %341 = vmatpush1.bf16.msra.mxu0 %v331
      %342 = vmatprep.subr.bf16.mxu0 0
      %343 = vmatpush1.bf16.msra.mxu0 0
      %344 = vmatprep.subr.bf16.mxu0 0
      %345 = vmatpush1.bf16.msra.mxu0 0
      %346 = vmatprep.subr.bf16.mxu0 0
      %347 = vmatpush1.bf16.msra.mxu0 0
      %348 = vmatprep.subr.bf16.mxu0 0
      %349 = vmatpush1.bf16.msra.mxu0 0
      %350 = vmatprep.subr.bf16.mxu0 0
      %351 = vmatpush1.bf16.msra.mxu0 0
      %352 = vmatprep.subr.bf16.mxu0 0
      %353 = vmatpush1.bf16.msra.mxu0 0
      %354 = vmatprep.subr.bf16.mxu0 0
      %355 = vmatpush1.bf16.msra.mxu0 0
      %356 = vmatprep.subr.bf16.mxu0 0
      %357 = vmatpush1.bf16.msra.mxu0 0
      %358 = vmatprep.subr.bf16.mxu0 0
      %359 = vmatpush1.bf16.msra.mxu0 0
      %360 = vmatprep.subr.bf16.mxu0 0
      %361 = vmatpush1.bf16.msra.mxu0 0
      %362 = vmatprep.subr.bf16.mxu0 0
      %363 = vmatpush1.bf16.msra.mxu0 0
      %364 = vmatprep.subr.bf16.mxu0 0
      %365 = vmatpush1.bf16.msra.mxu0 0
      %366 = vmatprep.subr.bf16.mxu0 0
      %367 = vmatpush1.bf16.msra.mxu0 0
      %368 = vmatprep.subr.bf16.mxu0 0
      %369 = vmatpush1.bf16.msra.mxu0 0
      %370 = vmatprep.mubr.bf16.mxu0 0
      %371 = vmatmul.mubr.bf16.gmra.mrb[0].mxu0 %v336
      %v372 = vpop.f32.mrb[0].mxu0
      %v373 = vadd.f32 0.0, %v372
      %v374 = vpop.f32.mrb[0].mxu0
      %v375 = vpop.f32.mrb[0].mxu0
      %v376 = vadd.f32 0.0, %v375
      %v377 = vpop.f32.mrb[0].mxu0
      %378 = vdwg.mxu0
      %v379 = vadd.f32 %v309, %v373
      %v380 = vadd.f32 %v310, %v376
      %381 = vst.msk [vmem:[#allocation2] sm:$0xff] %vm334, %v379
      %382 = vst.msk [vmem:[#allocation2 + $0x8] sm:$0xff] %vm334, %v380
      // Predicated region
      $region37: #{encoder_forward.10} parent=31 // pred_check
        %p383 = pneg %p302
      $region38: #{encoder_forward.10} parent=31 // pred_check_branch
        %385 = sbr.rel (%p383) target = $region40
      $region39: #{encoder_forward.10} parent=31 // pred_region
        %v386 = vld [vmem:[#allocation2] sm:$0xff]
        %v387 = vld [vmem:[#allocation2 + $0x8] sm:$0xff]
        %v388 = vld [vmem:[%s287] sm:$0x1]
        %v390 = vlaneseq
        %v391 = vshrl.u32 %v390, 7
        %v392 = vsub.s32 0, %v391
        %v393 = vrot.slane %v388, %v392
        %v395 = vadd.f32 %v386, %v393
        %v396 = vadd.f32 %v387, %v393
        %v397 = vpack.c.bf16 %v396, %v395
        %v399 = vunpack.c.l.b16 %v397
        %v400 = vunpack.c.h.b16 %v397
        %v401 = vpack.c.b16 %v399, %v399
        %v402 = vpack.c.b16 %v400, %v400
        %vm405 = vcmask 257024
        %406 = vst.msk [vmem:[%s299] sm:$0xf] %vm405, %v401
        %407 = vst.msk [vmem:[%s299 + $0x4] sm:$0xf] %vm405, %v402
      $region40: #{encoder_forward.10} parent=31 // pred_fallthru
        _
      %s408 = smul.u32 2, %s21
      %p409 = scmp.lt.s32.totalorder %s20, 2
      %s410 = scalar_select %p409, %s20, 2
      %p411 = scmp.lt.s32.totalorder %s408, 1
      %s412 = scalar_select %p411, %s408, 1
      %p413 = scmp.lt.s32.totalorder %s22, 0
      %s414 = scalar_select %p413, %s22, 0
      %s415 = sadd.s32 %s414, %s412
      %s416 = smul.addr %s410, 2
      %s417 = sadd.s32 %s415, %s416
      %s418 = smul.addr %s417, 4
      %s419 = scalar_lea.vmem %s3, %s418
      // Predicated region
      $region41: #{encoder_forward.10} parent=31 // pred_check
        %p420 = pneg %p148
      $region42: #{encoder_forward.10} parent=31 // pred_check_branch
        %422 = sbr.rel (%p420) target = $region44
      $region43: #{encoder_forward.10} parent=31 // pred_region
        %s423 = smul.u32 2, %s21
      $region44: #{encoder_forward.10} parent=31 // pred_fallthru
        _
    $region32: #{encoder_forward.10} parent=5 // pred_fallthru
      _
    %p424 = scmp.le.s32.totalorder 2, %s9
    // Predicated region
    $region45: #{encoder_forward.10} parent=5 // pred_check
      %p425 = pneg %p424
    $region46: #{encoder_forward.10} parent=5 // pred_check_branch
      %427 = sbr.rel (%p425) target = $region48
    $region47: #{encoder_forward.10} parent=5 // pred_region
      %s428 = ssub.s32 %s9, 2
      // Predicated region
      $region49: #{encoder_forward.10} parent=47 // pred_check
        %p429 = pneg %p154
      $region50: #{encoder_forward.10} parent=47 // pred_check_branch
        %431 = sbr.rel (%p429) target = $region52
      $region51: #{encoder_forward.10} parent=47 // pred_region
        %s432 = smul.u32 2, %s25
        %p433 = scmp.lt.s32.totalorder %s24, 2
        %s434 = scalar_select %p433, %s24, 2
        %p435 = scmp.lt.s32.totalorder %s432, 1
        %s436 = scalar_select %p435, %s432, 1
        %p437 = scmp.lt.s32.totalorder %s26, 0
        %s438 = scalar_select %p437, %s26, 0
        %s439 = sadd.s32 %s438, %s436
        %s440 = smul.addr %s434, 2
        %s441 = sadd.s32 %s439, %s440
        %s442 = smul.addr %s441, 4
        %s443 = scalar_lea.vmem %s3, %s442
      $region52: #{encoder_forward.10} parent=47 // pred_fallthru
        _
    $region48: #{encoder_forward.10} parent=5 // pred_fallthru
      _
  $region6: #{encoder_forward.10} parent=0 // loop_footer
    %s13 = sadd.s32 1, %s9
  $region7: #{encoder_forward.10} parent=0 // loop_footer_branch
    %8 = sbr.rel target = $region3
  $region8: #{encoder_forward.10} parent=0 // loop_exit
    _

// kernel: encoder_forward.12
$region0: #{encoder_forward.12}
  #allocation0 [shape = 'u32[]', space=smem, size = 0x4, offset = 0x4, fixed_abs, tag = 'smem constant byte address 0x4 - core index']
  #allocation1 [shape = 'u32[144,128]{1,0:T(1,128)}', space=vmem, size = 0x12000, scoped, tag = 'internal scratch']
  #allocation2 [shape = 'f32[16,32]{1,0:T(8,128)}', space=vmem, size = 0x2000, scoped, tag = 'scratch operand']
  %s0 = inlined_call_operand.vmem [shape: bf16[16,32], index: 0, kind: input, shape index: {}]
  %s1 = inlined_call_operand.vmem [shape: bf16[32,32], index: 1, kind: input, shape index: {}]
  %s2 = inlined_call_operand.vmem [shape: f32[1,32], index: 2, kind: input, shape index: {}]
  %s3 = inlined_call_operand.vmem [shape: bf16[16,32], index: 3, kind: input, shape index: {}]
  %s4 = inlined_call_operand.vmem [shape: f32[1,32], index: 4, kind: input, shape index: {}]
  %s5 = inlined_call_operand.vmem [shape: f32[1,32], index: 5, kind: input, shape index: {}]
  %s6 = inlined_call_operand.vmem [shape: bf16[16,32], index: 6, kind: output, shape index: {}]
  %s7 = sld [smem:[#allocation0]]
  $region42: #{encoder_forward.12} parent=0
    _
  %s9 = ssub.s32 1, %s7
  %s10 = scalar_select 0, %s9, %s7
  // Predicated region
  $region2: #{encoder_forward.12} parent=0 // pred_check
    _
  $region3: #{encoder_forward.12} parent=0 // pred_check_branch
    %12 = sbr.rel (0) target = $region5
  $region4: #{encoder_forward.12} parent=0 // pred_region
    _
  $region5: #{encoder_forward.12} parent=0 // pred_fallthru
    _
  // Predicated region
  $region6: #{encoder_forward.12} parent=0 // pred_check
    _
  $region7: #{encoder_forward.12} parent=0 // pred_check_branch
    %14 = sbr.rel (0) target = $region9
  $region8: #{encoder_forward.12} parent=0 // pred_region
    _
  $region9: #{encoder_forward.12} parent=0 // pred_fallthru
    _
  // Predicated region
  $region10: #{encoder_forward.12} parent=0 // pred_check
    _
  $region11: #{encoder_forward.12} parent=0 // pred_check_branch
    %16 = sbr.rel (0) target = $region13
  $region12: #{encoder_forward.12} parent=0 // pred_region
    _
  $region13: #{encoder_forward.12} parent=0 // pred_fallthru
    _
  // Predicated region
  $region14: #{encoder_forward.12} parent=0 // pred_check
    _
  $region15: #{encoder_forward.12} parent=0 // pred_check_branch
    %18 = sbr.rel (0) target = $region17
  $region16: #{encoder_forward.12} parent=0 // pred_region
    _
  $region17: #{encoder_forward.12} parent=0 // pred_fallthru
    _
  // Predicated region
  $region18: #{encoder_forward.12} parent=0 // pred_check
    _
  $region19: #{encoder_forward.12} parent=0 // pred_check_branch
    %20 = sbr.rel (0) target = $region21
  $region20: #{encoder_forward.12} parent=0 // pred_region
    _
  $region21: #{encoder_forward.12} parent=0 // pred_fallthru
    _
  // Predicated region
  $region22: #{encoder_forward.12} parent=0 // pred_check
    _
  $region23: #{encoder_forward.12} parent=0 // pred_check_branch
    %22 = sbr.rel (0) target = $region25
  $region24: #{encoder_forward.12} parent=0 // pred_region
    _
  $region25: #{encoder_forward.12} parent=0 // pred_fallthru
    _
  %p24 = scmp.eq.s32.totalorder 0, 0
  // Predicated region
  $region26: #{encoder_forward.12} parent=0 // pred_check
    %p25 = pneg %p24
  $region27: #{encoder_forward.12} parent=0 // pred_check_branch
    %27 = sbr.rel (%p25) target = $region29
  $region28: #{encoder_forward.12} parent=0 // pred_region
    %vm28 = vcmask 261120
    %29 = vst.msk [vmem:[#allocation2] sm:$0xff] %vm28, 0.0
    %30 = vst.msk [vmem:[#allocation2 + $0x8] sm:$0xff] %vm28, 0.0
  $region29: #{encoder_forward.12} parent=0 // pred_fallthru
    _
  %v31 = vld [vmem:[#allocation2] sm:$0xff]
  %v32 = vld [vmem:[#allocation2 + $0x8] sm:$0xff]
  %v33 = vld [vmem:[%s0] sm:$0xf]
  %v34 = vld [vmem:[%s0 + $0x4] sm:$0xf]
  %v35 = vld [vmem:[%s1] sm:$0xf]
  %v36 = vld [vmem:[%s1 + $0x4] sm:$0xf]
  %v37 = vld [vmem:[%s1 + $0x8] sm:$0xf]
  %v38 = vld [vmem:[%s1 + $0xc] sm:$0xf]
  %v41 = vunpack.c.l.b16 %v33
  %v42 = vunpack.c.l.b16 %v34
  %v43 = vpack.c.b16 %v42, %v41
  %v48 = vunpack.c.l.b16 %v35
  %v49 = vunpack.c.l.b16 %v36
  %v50 = vunpack.c.l.b16 %v37
  %v51 = vunpack.c.l.b16 %v38
  %v52 = vpack.c.b16 %v49, %v48
  %v53 = vpack.c.b16 %v51, %v50
  %vm56 = vcmask 261120
  %v58 = vsel %vm56, %v43, 0
  %60 = vmatprep.subr.bf16.mxu0 0
  %61 = vmatpush1.bf16.msra.mxu0 %v52
  %62 = vmatprep.subr.bf16.mxu0 0
  %63 = vmatpush1.bf16.msra.mxu0 %v53
  %64 = vmatprep.subr.bf16.mxu0 0
  %65 = vmatpush1.bf16.msra.mxu0 0
  %66 = vmatprep.subr.bf16.mxu0 0
  %67 = vmatpush1.bf16.msra.mxu0 0
  %68 = vmatprep.subr.bf16.mxu0 0
  %69 = vmatpush1.bf16.msra.mxu0 0
  %70 = vmatprep.subr.bf16.mxu0 0
  %71 = vmatpush1.bf16.msra.mxu0 0
  %72 = vmatprep.subr.bf16.mxu0 0
  %73 = vmatpush1.bf16.msra.mxu0 0
  %74 = vmatprep.subr.bf16.mxu0 0
  %75 = vmatpush1.bf16.msra.mxu0 0
  %76 = vmatprep.subr.bf16.mxu0 0
  %77 = vmatpush1.bf16.msra.mxu0 0
  %78 = vmatprep.subr.bf16.mxu0 0
  %79 = vmatpush1.bf16.msra.mxu0 0
  %80 = vmatprep.subr.bf16.mxu0 0
  %81 = vmatpush1.bf16.msra.mxu0 0
  %82 = vmatprep.subr.bf16.mxu0 0
  %83 = vmatpush1.bf16.msra.mxu0 0
  %84 = vmatprep.subr.bf16.mxu0 0
  %85 = vmatpush1.bf16.msra.mxu0 0
  %86 = vmatprep.subr.bf16.mxu0 0
  %87 = vmatpush1.bf16.msra.mxu0 0
  %88 = vmatprep.subr.bf16.mxu0 0
  %89 = vmatpush1.bf16.msra.mxu0 0
  %90 = vmatprep.subr.bf16.mxu0 0
  %91 = vmatpush1.bf16.msra.mxu0 0
  %92 = vmatprep.mubr.bf16.mxu0 0
  %93 = vmatmul.mubr.bf16.gmra.mrb[0].mxu0 %v58
  %v94 = vpop.f32.mrb[0].mxu0
  %v95 = vadd.f32 0.0, %v94
  %v96 = vpop.f32.mrb[0].mxu0
  %v97 = vpop.f32.mrb[0].mxu0
  %v98 = vadd.f32 0.0, %v97
  %v99 = vpop.f32.mrb[0].mxu0
  %100 = vdwg.mxu0
  %v101 = vadd.f32 %v31, %v95
  %v102 = vadd.f32 %v32, %v98
  %103 = vst.msk [vmem:[#allocation2] sm:$0xff] %vm56, %v101
  %104 = vst.msk [vmem:[#allocation2 + $0x8] sm:$0xff] %vm56, %v102
  // Predicated region
  $region30: #{encoder_forward.12} parent=0 // pred_check
    %p105 = pneg %p24
  $region31: #{encoder_forward.12} parent=0 // pred_check_branch
    %107 = sbr.rel (%p105) target = $region33
  $region32: #{encoder_forward.12} parent=0 // pred_region
    %v108 = vld [vmem:[#allocation2] sm:$0xff]
    %v109 = vld [vmem:[#allocation2 + $0x8] sm:$0xff]
    %v110 = vld [vmem:[%s2] sm:$0x1]
    %v112 = vlaneseq
    %v113 = vshrl.u32 %v112, 7
    %v114 = vsub.s32 0, %v113
    %v115 = vrot.slane %v110, %v114
    %v117 = vadd.f32 %v108, %v115
    %v118 = vadd.f32 %v109, %v115
    %v119 = vld [vmem:[%s3] sm:$0xf]
    %v120 = vld [vmem:[%s3 + $0x4] sm:$0xf]
    %v121 = vunpack.c.l.bf16 %v119
    %v122 = vunpack.c.l.bf16 %v120
    %v123 = vadd.f32 %v117, %v121
    %v124 = vadd.f32 %v118, %v122
    %v125 = vsel %vm56, %v123, 0.0
    %126 = vadd.xlane.f32.xlu0 %v125
    %v127 = vpop.xlane.xlu0 %126
    %v128 = vsel %vm56, %v124, 0.0
    %129 = vadd.xlane.f32.xlu0 %v128
    %v130 = vpop.xlane.xlu0 %129
    %v131 = vrcp.pop 32.0
    %v132 = vmul.f32 %v127, %v131
    %v133 = vmul.f32 %v130, %v131
    %v134 = vsub.f32 %v123, %v132
    %v135 = vsub.f32 %v124, %v133
    %v136 = vmul.f32 %v134, %v134
    %v137 = vmul.f32 %v135, %v135
    %v138 = vsel %vm56, %v136, 0.0
    %139 = vadd.xlane.f32.xlu0 %v138
    %v140 = vpop.xlane.xlu0 %139
    %v141 = vsel %vm56, %v137, 0.0
    %142 = vadd.xlane.f32.xlu0 %v141
    %v143 = vpop.xlane.xlu0 %142
    %v144 = vmul.f32 %v140, %v131
    %v145 = vmul.f32 %v143, %v131
    %v146 = vadd.f32 %v144, 1e-05
    %v147 = vadd.f32 %v145, 1e-05
    %v148 = vrsqrt.pop %v146
    %v149 = vrsqrt.pop %v147
    %v150 = vmul.f32 %v134, %v148
    %v151 = vmul.f32 %v135, %v149
    %v152 = vld [vmem:[%s4] sm:$0x1]
    %v154 = vlaneseq
    %v155 = vshrl.u32 %v154, 7
    %v156 = vsub.s32 0, %v155
    %v157 = vrot.slane %v152, %v156
    %v159 = vmul.f32 %v150, %v157
    %v160 = vmul.f32 %v151, %v157
    %v161 = vld [vmem:[%s5] sm:$0x1]
    %v163 = vlaneseq
    %v164 = vshrl.u32 %v163, 7
    %v165 = vsub.s32 0, %v164
    %v166 = vrot.slane %v161, %v165
    %v168 = vadd.f32 %v159, %v166
    %v169 = vadd.f32 %v160, %v166
    %v170 = vpack.c.bf16 %v169, %v168
    %v172 = vunpack.c.l.b16 %v170
    %v173 = vunpack.c.h.b16 %v170
    %v174 = vpack.c.b16 %v172, %v172
    %v175 = vpack.c.b16 %v173, %v173
    %vm178 = vcmask 257024
    %179 = vst.msk [vmem:[%s6] sm:$0xf] %vm178, %v174
    %180 = vst.msk [vmem:[%s6 + $0x4] sm:$0xf] %vm178, %v175
  $region33: #{encoder_forward.12} parent=0 // pred_fallthru
    _
  // Predicated region
  $region34: #{encoder_forward.12} parent=0 // pred_check
    _
  $region35: #{encoder_forward.12} parent=0 // pred_check_branch
    %182 = sbr.rel (0) target = $region37
  $region36: #{encoder_forward.12} parent=0 // pred_region
    _
  $region37: #{encoder_forward.12} parent=0 // pred_fallthru
    _
  // Predicated region
  $region38: #{encoder_forward.12} parent=0 // pred_check
    _
  $region39: #{encoder_forward.12} parent=0 // pred_check_branch
    %184 = sbr.rel (0) target = $region41
  $region40: #{encoder_forward.12} parent=0 // pred_region
    _
  $region41: #{encoder_forward.12} parent=0 // pred_fallthru
    _

// kernel: encoder_forward.13
$region0: #{encoder_forward.13}
  #allocation0 [shape = 'u32[]', space=smem, size = 0x4, offset = 0x4, fixed_abs, tag = 'smem constant byte address 0x4 - core index']
  #allocation1 [shape = 'u32[144,128]{1,0:T(1,128)}', space=vmem, size = 0x12000, scoped, tag = 'internal scratch']
  #allocation2 [shape = 'f32[16,64]{1,0:T(8,128)}', space=vmem, size = 0x2000, scoped, tag = 'scratch operand']
  %s0 = inlined_call_operand.vmem [shape: bf16[16,32], index: 0, kind: input, shape index: {}]
  %s1 = inlined_call_operand.vmem [shape: bf16[32,64], index: 1, kind: input, shape index: {}]
  %s2 = inlined_call_operand.vmem [shape: f32[1,64], index: 2, kind: input, shape index: {}]
  %s3 = inlined_call_operand.vmem [shape: bf16[16,64], index: 3, kind: output, shape index: {}]
  %s4 = sld [smem:[#allocation0]]
  $region30: #{encoder_forward.13} parent=0
    _
  %s6 = ssub.s32 1, %s4
  %s7 = scalar_select 0, %s6, %s4
  // Predicated region
  $region2: #{encoder_forward.13} parent=0 // pred_check
    _
  $region3: #{encoder_forward.13} parent=0 // pred_check_branch
    %9 = sbr.rel (0) target = $region5
  $region4: #{encoder_forward.13} parent=0 // pred_region
    _
  $region5: #{encoder_forward.13} parent=0 // pred_fallthru
    _
  // Predicated region
  $region6: #{encoder_forward.13} parent=0 // pred_check
    _
  $region7: #{encoder_forward.13} parent=0 // pred_check_branch
    %11 = sbr.rel (0) target = $region9
  $region8: #{encoder_forward.13} parent=0 // pred_region
    _
  $region9: #{encoder_forward.13} parent=0 // pred_fallthru
    _
  // Predicated region
  $region10: #{encoder_forward.13} parent=0 // pred_check
    _
  $region11: #{encoder_forward.13} parent=0 // pred_check_branch
    %13 = sbr.rel (0) target = $region13
  $region12: #{encoder_forward.13} parent=0 // pred_region
    _
  $region13: #{encoder_forward.13} parent=0 // pred_fallthru
    _
  %p15 = scmp.eq.s32.totalorder 0, 0
  // Predicated region
  $region14: #{encoder_forward.13} parent=0 // pred_check
    %p16 = pneg %p15
  $region15: #{encoder_forward.13} parent=0 // pred_check_branch
    %18 = sbr.rel (%p16) target = $region17
  $region16: #{encoder_forward.13} parent=0 // pred_region
    %vm19 = vcmask 523264
    %20 = vst.msk [vmem:[#allocation2] sm:$0xff] %vm19, 0.0
    %21 = vst.msk [vmem:[#allocation2 + $0x8] sm:$0xff] %vm19, 0.0
  $region17: #{encoder_forward.13} parent=0 // pred_fallthru
    _
  %v22 = vld [vmem:[#allocation2] sm:$0xff]
  %v23 = vld [vmem:[#allocation2 + $0x8] sm:$0xff]
  %v24 = vld [vmem:[%s0] sm:$0xf]
  %v25 = vld [vmem:[%s0 + $0x4] sm:$0xf]
  %v26 = vld [vmem:[%s1] sm:$0xf]
  %v27 = vld [vmem:[%s1 + $0x4] sm:$0xf]
  %v28 = vld [vmem:[%s1 + $0x8] sm:$0xf]
  %v29 = vld [vmem:[%s1 + $0xc] sm:$0xf]
  %v32 = vunpack.c.l.b16 %v24
  %v33 = vunpack.c.l.b16 %v25
  %v34 = vpack.c.b16 %v33, %v32
  %v39 = vunpack.c.l.b16 %v26
  %v40 = vunpack.c.l.b16 %v27
  %v41 = vunpack.c.l.b16 %v28
  %v42 = vunpack.c.l.b16 %v29
  %v43 = vpack.c.b16 %v40, %v39
  %v44 = vpack.c.b16 %v42, %v41
  %vm47 = vcmask 261120
  %v49 = vsel %vm47, %v34, 0
  %51 = vmatprep.subr.bf16.mxu0 0
  %52 = vmatpush1.bf16.msra.mxu0 %v43
  %53 = vmatprep.subr.bf16.mxu0 0
  %54 = vmatpush1.bf16.msra.mxu0 %v44
  %55 = vmatprep.subr.bf16.mxu0 0
  %56 = vmatpush1.bf16.msra.mxu0 0
  %57 = vmatprep.subr.bf16.mxu0 0
  %58 = vmatpush1.bf16.msra.mxu0 0
  %59 = vmatprep.subr.bf16.mxu0 0
  %60 = vmatpush1.bf16.msra.mxu0 0
  %61 = vmatprep.subr.bf16.mxu0 0
  %62 = vmatpush1.bf16.msra.mxu0 0
  %63 = vmatprep.subr.bf16.mxu0 0
  %64 = vmatpush1.bf16.msra.mxu0 0
  %65 = vmatprep.subr.bf16.mxu0 0
  %66 = vmatpush1.bf16.msra.mxu0 0
  %67 = vmatprep.subr.bf16.mxu0 0
  %68 = vmatpush1.bf16.msra.mxu0 0
  %69 = vmatprep.subr.bf16.mxu0 0
  %70 = vmatpush1.bf16.msra.mxu0 0
  %71 = vmatprep.subr.bf16.mxu0 0
  %72 = vmatpush1.bf16.msra.mxu0 0
  %73 = vmatprep.subr.bf16.mxu0 0
  %74 = vmatpush1.bf16.msra.mxu0 0
  %75 = vmatprep.subr.bf16.mxu0 0
  %76 = vmatpush1.bf16.msra.mxu0 0
  %77 = vmatprep.subr.bf16.mxu0 0
  %78 = vmatpush1.bf16.msra.mxu0 0
  %79 = vmatprep.subr.bf16.mxu0 0
  %80 = vmatpush1.bf16.msra.mxu0 0
  %81 = vmatprep.subr.bf16.mxu0 0
  %82 = vmatpush1.bf16.msra.mxu0 0
  %83 = vmatprep.mubr.bf16.mxu0 0
  %84 = vmatmul.mubr.bf16.gmra.mrb[0].mxu0 %v49
  %v85 = vpop.f32.mrb[0].mxu0
  %v86 = vadd.f32 0.0, %v85
  %v87 = vpop.f32.mrb[0].mxu0
  %v88 = vpop.f32.mrb[0].mxu0
  %v89 = vadd.f32 0.0, %v88
  %v90 = vpop.f32.mrb[0].mxu0
  %91 = vdwg.mxu0
  %v92 = vadd.f32 %v22, %v86
  %v93 = vadd.f32 %v23, %v89
  %vm94 = vcmask 523264
  %95 = vst.msk [vmem:[#allocation2] sm:$0xff] %vm94, %v92
  %96 = vst.msk [vmem:[#allocation2 + $0x8] sm:$0xff] %vm94, %v93
  // Predicated region
  $region18: #{encoder_forward.13} parent=0 // pred_check
    %p97 = pneg %p15
  $region19: #{encoder_forward.13} parent=0 // pred_check_branch
    %99 = sbr.rel (%p97) target = $region21
  $region20: #{encoder_forward.13} parent=0 // pred_region
    %v100 = vld [vmem:[#allocation2] sm:$0xff]
    %v101 = vld [vmem:[#allocation2 + $0x8] sm:$0xff]
    %v102 = vld [vmem:[%s2] sm:$0x1]
    %v104 = vlaneseq
    %v105 = vshrl.u32 %v104, 7
    %v106 = vsub.s32 0, %v105
    %v107 = vrot.slane %v102, %v106
    %v109 = vadd.f32 %v100, %v107
    %v110 = vadd.f32 %v101, %v107
    %v111 = vmax.f32 %v109, 0.0
    %v112 = vmax.f32 %v110, 0.0
    %v113 = vpack.c.bf16 %v112, %v111
    %v115 = vunpack.c.l.b16 %v113
    %v116 = vunpack.c.h.b16 %v113
    %v117 = vpack.c.b16 %v115, %v115
    %v118 = vpack.c.b16 %v116, %v116
    %vm121 = vcmask 519168
    %122 = vst.msk [vmem:[%s3] sm:$0xf] %vm121, %v117
    %123 = vst.msk [vmem:[%s3 + $0x4] sm:$0xf] %vm121, %v118
  $region21: #{encoder_forward.13} parent=0 // pred_fallthru
    _
  // Predicated region
  $region22: #{encoder_forward.13} parent=0 // pred_check
    _
  $region23: #{encoder_forward.13} parent=0 // pred_check_branch
    %125 = sbr.rel (0) target = $region25
  $region24: #{encoder_forward.13} parent=0 // pred_region
    _
  $region25: #{encoder_forward.13} parent=0 // pred_fallthru
    _
  // Predicated region
  $region26: #{encoder_forward.13} parent=0 // pred_check
    _
  $region27: #{encoder_forward.13} parent=0 // pred_check_branch
    %127 = sbr.rel (0) target = $region29
  $region28: #{encoder_forward.13} parent=0 // pred_region
    _
  $region29: #{encoder_forward.13} parent=0 // pred_fallthru
    _

// kernel: encoder_forward.11
$region0: #{encoder_forward.11}
  #allocation0 [shape = 'u32[]', space=smem, size = 0x4, offset = 0x4, fixed_abs, tag = 'smem constant byte address 0x4 - core index']
  #allocation1 [shape = 'u32[144,128]{1,0:T(1,128)}', space=vmem, size = 0x12000, scoped, tag = 'internal scratch']
  #allocation2 [shape = 'f32[8,32]{1,0:T(8,128)}', space=vmem, size = 0x1000, scoped, tag = 'scratch operand']
  #allocation3 [shape = 'f32[8,32]{1,0:T(8,128)}', space=vmem, size = 0x1000, scoped, tag = 'scratch operand']
  #allocation4 [shape = 'f32[8,32]{1,0:T(8,128)}', space=vmem, size = 0x1000, scoped, tag = 'scratch operand']
  %s0 = inlined_call_operand.vmem [shape: bf16[3,2,8,32], index: 0, kind: input, shape index: {}, may-alias: {0,1,2}]
  %s1 = inlined_call_operand.vmem [shape: bf16[3,2,8,32], index: 1, kind: input, shape index: {}, may-alias: {0,1,2}]
  %s2 = inlined_call_operand.vmem [shape: bf16[3,2,8,32], index: 2, kind: input, shape index: {}, may-alias: {0,1,2}]
  %s3 = inlined_call_operand.vmem [shape: f32[2,1,8], index: 3, kind: input, shape index: {}]
  %s4 = inlined_call_operand.vmem [shape: bf16[2,8,32], index: 4, kind: output, shape index: {}]
  %s5 = sld [smem:[#allocation0]]
  $region57: #{encoder_forward.11} parent=0
    _
  %s7 = ssub.s32 1, %s5
  %s8 = scalar_select 0, %s7, %s5
  loop: start=0, step=1, limit=4
  $region2: #{encoder_forward.11} parent=0 // loop_pre_header
    _
  $region3: #{encoder_forward.11} parent=0 // loop_header
    %s10 = sphi 0, %s14
    %p11 = scmp.ge.s32.totalorder %s10, 4
    %s17 = sphi 0, %s36
    %s18 = sphi 0, %s32
    %s19 = sphi 0, %s28
    %s20 = sphi 0, %s17
    %s21 = sphi 0, %s18
    %s22 = sphi 0, %s19
    %s23 = sphi 0, %s20
    %s24 = sphi 0, %s21
    %s25 = sphi 0, %s22
    %s41 = sphi 0, %s43
    %s44 = sphi 0, %s41
    %s45 = sphi 0, %s44
    %s61 = sphi 0, %s45
    %s69 = sphi 0, %s71
    %s72 = sphi 0, %s69
    %s73 = sphi 0, %s72
    %s89 = sphi 0, %s73
    %s97 = sphi 0, %s99
    %s100 = sphi 0, %s97
    %s101 = sphi 0, %s100
    %s117 = sphi 0, %s101
    %s125 = sphi 0, %s127
    %s128 = sphi 0, %s125
    %s129 = sphi 0, %s128
    %s145 = sphi 0, %s129
    %s153 = sphi 0, %s155
    %s156 = sphi 0, %s153
    %s157 = sphi 0, %s156
    %s173 = sphi 0, %s157
  $region4: #{encoder_forward.11} parent=0 // loop_header_branch
    %13 = sbr.rel (%p11) target = $region8
  $region5: #{encoder_forward.11} parent=0 // loop_body
    %s15 = ssub.s32 %s10, 1
    %s16 = ssub.s32 %s10, 2
    %s26 = sadd.s32 1, %s19
    %p27 = scmp.ge.s32.totalorder %s26, 1
    %s28 = scalar_select %p27, 0, %s26
    %s29 = sadd.s32 1, %s18
    %s30 = scalar_select %p27, %s29, %s18
    %p31 = scmp.ge.s32.totalorder %s30, 1
    %s32 = scalar_select %p31, 0, %s30
    %s33 = sadd.s32 1, %s17
    %s34 = scalar_select %p31, %s33, %s17
    %p35 = scmp.ge.s32.totalorder %s34, 2
    %s36 = scalar_select %p35, 0, %s34
    %s37 = ssub.s32 %s17, %s36
    %s38 = ssub.s32 %s18, %s32
    %s39 = sor.u32 %s37, %s38
    %p40 = scmp.eq.s32.totalorder %s39, 0
    %s42 = sadd.s32 %s41, 1
    %s43 = scalar_select %p40, %s41, %s42
    %p46 = pneg %p40
    %p47 = scmp.eq.s32.totalorder %s10, 1
    %p48 = por %p46, %p47
    %p49 = scmp.ne.s32.totalorder %s41, %s44
    %p50 = scmp.eq.s32.totalorder %s10, 0
    %p51 = por %p49, %p50
    %p52 = scmp.ne.s32.totalorder %s41, %s44
    %p53 = scmp.eq.s32.totalorder %s15, 1
    %p54 = por %p52, %p53
    %p55 = scmp.ne.s32.totalorder %s44, %s45
    %p56 = scmp.eq.s32.totalorder %s15, 0
    %p57 = por %p55, %p56
    %p58 = scmp.ne.s32.totalorder %s44, %s45
    %p59 = scmp.eq.s32.totalorder %s16, 1
    %p60 = por %p58, %p59
    %p62 = scmp.ne.s32.totalorder %s45, %s61
    %p63 = scmp.eq.s32.totalorder %s16, 0
    %p64 = por %p62, %p63
    %s65 = ssub.s32 %s17, %s36
    %s66 = ssub.s32 %s19, %s28
    %s67 = sor.u32 %s65, %s66
    %p68 = scmp.eq.s32.totalorder %s67, 0
    %s70 = sadd.s32 %s69, 1
    %s71 = scalar_select %p68, %s69, %s70
    %p74 = pneg %p68
    %p75 = scmp.eq.s32.totalorder %s10, 1
    %p76 = por %p74, %p75
    %p77 = scmp.ne.s32.totalorder %s69, %s72
    %p78 = scmp.eq.s32.totalorder %s10, 0
    %p79 = por %p77, %p78
    %p80 = scmp.ne.s32.totalorder %s69, %s72
    %p81 = scmp.eq.s32.totalorder %s15, 1
    %p82 = por %p80, %p81
    %p83 = scmp.ne.s32.totalorder %s72, %s73
    %p84 = scmp.eq.s32.totalorder %s15, 0
    %p85 = por %p83, %p84
    %p86 = scmp.ne.s32.totalorder %s72, %s73
    %p87 = scmp.eq.s32.totalorder %s16, 1
    %p88 = por %p86, %p87
    %p90 = scmp.ne.s32.totalorder %s73, %s89
    %p91 = scmp.eq.s32.totalorder %s16, 0
    %p92 = por %p90, %p91
    %s93 = ssub.s32 %s17, %s36
    %s94 = ssub.s32 %s19, %s28
    %s95 = sor.u32 %s93, %s94
    %p96 = scmp.eq.s32.totalorder %s95, 0
    %s98 = sadd.s32 %s97, 1
    %s99 = scalar_select %p96, %s97, %s98
    %p102 = pneg %p96
    %p103 = scmp.eq.s32.totalorder %s10, 1
    %p104 = por %p102, %p103
    %p105 = scmp.ne.s32.totalorder %s97, %s100
    %p106 = scmp.eq.s32.totalorder %s10, 0
    %p107 = por %p105, %p106
    %p108 = scmp.ne.s32.totalorder %s97, %s100
    %p109 = scmp.eq.s32.totalorder %s15, 1
    %p110 = por %p108, %p109
    %p111 = scmp.ne.s32.totalorder %s100, %s101
    %p112 = scmp.eq.s32.totalorder %s15, 0
    %p113 = por %p111, %p112
    %p114 = scmp.ne.s32.totalorder %s100, %s101
    %p115 = scmp.eq.s32.totalorder %s16, 1
    %p116 = por %p114, %p115
    %p118 = scmp.ne.s32.totalorder %s101, %s117
    %p119 = scmp.eq.s32.totalorder %s16, 0
    %p120 = por %p118, %p119
    %s121 = ssub.s32 %s17, %s36
    %s122 = ssub.s32 %s19, %s28
    %s123 = sor.u32 %s121, %s122
    %p124 = scmp.eq.s32.totalorder %s123, 0
    %s126 = sadd.s32 %s125, 1
    %s127 = scalar_select %p124, %s125, %s126
    %p130 = pneg %p124
    %p131 = scmp.eq.s32.totalorder %s10, 1
    %p132 = por %p130, %p131
    %p133 = scmp.ne.s32.totalorder %s125, %s128
    %p134 = scmp.eq.s32.totalorder %s10, 0
    %p135 = por %p133, %p134
    %p136 = scmp.ne.s32.totalorder %s125, %s128
    %p137 = scmp.eq.s32.totalorder %s15, 1
    %p138 = por %p136, %p137
    %p139 = scmp.ne.s32.totalorder %s128, %s129
    %p140 = scmp.eq.s32.totalorder %s15, 0
    %p141 = por %p139, %p140
    %p142 = scmp.ne.s32.totalorder %s128, %s129
    %p143 = scmp.eq.s32.totalorder %s16, 1
    %p144 = por %p142, %p143
    %p146 = scmp.ne.s32.totalorder %s129, %s145
    %p147 = scmp.eq.s32.totalorder %s16, 0
    %p148 = por %p146, %p147
    %s149 = ssub.s32 %s17, %s36
    %s150 = ssub.s32 %s18, %s32
    %s151 = sor.u32 %s149, %s150
    %p152 = scmp.eq.s32.totalorder %s151, 0
    %s154 = sadd.s32 %s153, 1
    %s155 = scalar_select %p152, %s153, %s154
    %p158 = pneg %p152
    %p159 = scmp.eq.s32.totalorder %s10, 1
    %p160 = por %p158, %p159
    %p161 = scmp.ne.s32.totalorder %s153, %s156
    %p162 = scmp.eq.s32.totalorder %s10, 0
    %p163 = por %p161, %p162
    %p164 = scmp.ne.s32.totalorder %s153, %s156
    %p165 = scmp.eq.s32.totalorder %s15, 1
    %p166 = por %p164, %p165
    %p167 = scmp.ne.s32.totalorder %s156, %s157
    %p168 = scmp.eq.s32.totalorder %s15, 0
    %p169 = por %p167, %p168
    %p170 = scmp.ne.s32.totalorder %s156, %s157
    %p171 = scmp.eq.s32.totalorder %s16, 1
    %p172 = por %p170, %p171
    %p174 = scmp.ne.s32.totalorder %s157, %s173
    %p175 = scmp.eq.s32.totalorder %s16, 0
    %p176 = por %p174, %p175
    %p177 = scmp.le.s32.totalorder 1, %s10
    %p178 = scmp.lt.s32.totalorder %s10, 3
    %p179 = pnand %p177, %p178
    %p180 = pneg %p179
    // Predicated region
    $region9: #{encoder_forward.11} parent=5 // pred_check
      _
    $region10: #{encoder_forward.11} parent=5 // pred_check_branch
      %182 = sbr.rel (%p179) target = $region12
    $region11: #{encoder_forward.11} parent=5 // pred_region
      %s183 = ssub.s32 %s10, 1
    $region12: #{encoder_forward.11} parent=5 // pred_fallthru
      _
    %p184 = scmp.lt.s32.totalorder %s10, 2
    // Predicated region
    $region13: #{encoder_forward.11} parent=5 // pred_check
      %p185 = pneg %p184
    $region14: #{encoder_forward.11} parent=5 // pred_check_branch
      %187 = sbr.rel (%p185) target = $region16
    $region15: #{encoder_forward.11} parent=5 // pred_region
      // Predicated region
      $region17: #{encoder_forward.11} parent=15 // pred_check
        %p188 = pneg %p51
      $region18: #{encoder_forward.11} parent=15 // pred_check_branch
        %190 = sbr.rel (%p188) target = $region20
      $region19: #{encoder_forward.11} parent=15 // pred_region
        %p191 = scmp.lt.s32.totalorder %s17, 1
        %s192 = scalar_select %p191, %s17, 1
        %p193 = scmp.lt.s32.totalorder %s18, 0
        %s194 = scalar_select %p193, %s18, 0
        %s195 = sadd.s32 %s194, %s192
        %s196 = smul.addr %s195, 4
        %s197 = scalar_lea.vmem %s0, %s196
      $region20: #{encoder_forward.11} parent=15 // pred_fallthru
        _
      // Predicated region
      $region21: #{encoder_forward.11} parent=15 // pred_check
        %p198 = pneg %p79
      $region22: #{encoder_forward.11} parent=15 // pred_check_branch
        %200 = sbr.rel (%p198) target = $region24
      $region23: #{encoder_forward.11} parent=15 // pred_region
        %p201 = scmp.lt.s32.totalorder %s17, 1
        %s202 = scalar_select %p201, %s17, 1
        %p203 = scmp.lt.s32.totalorder %s19, 0
        %s204 = scalar_select %p203, %s19, 0
        %s205 = sadd.s32 %s204, %s202
        %s206 = sadd.s32 %s205, 2
        %s207 = smul.addr %s206, 4
        %s208 = scalar_lea.vmem %s1, %s207
      $region24: #{encoder_forward.11} parent=15 // pred_fallthru
        _
      // Predicated region
      $region25: #{encoder_forward.11} parent=15 // pred_check
        %p209 = pneg %p107
      $region26: #{encoder_forward.11} parent=15 // pred_check_branch
        %211 = sbr.rel (%p209) target = $region28
      $region27: #{encoder_forward.11} parent=15 // pred_region
        %p212 = scmp.lt.s32.totalorder %s17, 1
        %s213 = scalar_select %p212, %s17, 1
        %p214 = scmp.lt.s32.totalorder %s19, 0
        %s215 = scalar_select %p214, %s19, 0
        %s216 = sadd.s32 %s215, %s213
        %s217 = sadd.s32 %s216, 4
        %s218 = smul.addr %s217, 4
        %s219 = scalar_lea.vmem %s2, %s218
      $region28: #{encoder_forward.11} parent=15 // pred_fallthru
        _
      // Predicated region
      $region29: #{encoder_forward.11} parent=15 // pred_check
        %p220 = pneg %p135
      $region30: #{encoder_forward.11} parent=15 // pred_check_branch
        %222 = sbr.rel (%p220) target = $region32
      $region31: #{encoder_forward.11} parent=15 // pred_region
        %p223 = scmp.lt.s32.totalorder %s17, 1
        %s224 = scalar_select %p223, %s17, 1
        %p225 = scmp.lt.s32.totalorder %s19, 0
        %s226 = scalar_select %p225, %s19, 0
        %s227 = sadd.s32 %s226, %s224
        %s228 = scalar_lea.vmem %s3, %s227
      $region32: #{encoder_forward.11} parent=15 // pred_fallthru
        _
    $region16: #{encoder_forward.11} parent=5 // pred_fallthru
      _
    %p229 = scmp.le.s32.totalorder 1, %s10
    %p230 = scmp.lt.s32.totalorder %s10, 3
    %p231 = pnand %p229, %p230
    %p232 = pneg %p231
    // Predicated region
    $region33: #{encoder_forward.11} parent=5 // pred_check
      _
    $region34: #{encoder_forward.11} parent=5 // pred_check_branch
      %234 = sbr.rel (%p231) target = $region36
    $region35: #{encoder_forward.11} parent=5 // pred_region
      %s235 = ssub.s32 %s10, 1
      %p236 = scmp.lt.s32.totalorder %s20, 1
      %s237 = scalar_select %p236, %s20, 1
      %p238 = scmp.lt.s32.totalorder %s21, 0
      %s239 = scalar_select %p238, %s21, 0
      %s240 = sadd.s32 %s239, %s237
      %s241 = smul.addr %s240, 4
      %s242 = scalar_lea.vmem %s0, %s241
      %p243 = pneg %p57
      %p244 = pneg %p54
      %p245 = scmp.lt.s32.totalorder %s20, 1
      %s246 = scalar_select %p245, %s20, 1
      %p247 = scmp.lt.s32.totalorder %s22, 0
      %s248 = scalar_select %p247, %s22, 0
      %s249 = sadd.s32 %s248, %s246
      %s250 = sadd.s32 %s249, 2
      %s251 = smul.addr %s250, 4
      %s252 = scalar_lea.vmem %s1, %s251
      %p253 = pneg %p85
      %p254 = pneg %p82
      %p255 = scmp.lt.s32.totalorder %s20, 1
      %s256 = scalar_select %p255, %s20, 1
      %p257 = scmp.lt.s32.totalorder %s22, 0
      %s258 = scalar_select %p257, %s22, 0
      %s259 = sadd.s32 %s258, %s256
      %s260 = sadd.s32 %s259, 4
      %s261 = smul.addr %s260, 4
      %s262 = scalar_lea.vmem %s2, %s261
      %p263 = pneg %p113
      %p264 = pneg %p110
      %p265 = scmp.lt.s32.totalorder %s20, 1
      %s266 = scalar_select %p265, %s20, 1
      %p267 = scmp.lt.s32.totalorder %s22, 0
      %s268 = scalar_select %p267, %s22, 0
      %s269 = sadd.s32 %s268, %s266
      %s270 = scalar_lea.vmem %s3, %s269
      %p271 = pneg %p141
      %p272 = pneg %p138
      %p273 = pneg %p169
      %p274 = pneg %p166
      %p275 = scmp.lt.s32.totalorder %s20, 1
      %s276 = scalar_select %p275, %s20, 1
      %p277 = scmp.lt.s32.totalorder %s21, 0
      %s278 = scalar_select %p277, %s21, 0
      %s279 = sadd.s32 %s278, %s276
      %s280 = smul.addr %s279, 4
      %s281 = scalar_lea.vmem %s4, %s280
      %p282 = scmp.lt.s32.totalorder %s20, 1
      %s283 = scalar_select %p282, %s20, 1
      %p284 = scmp.lt.s32.totalorder %s21, 0
      %s285 = scalar_select %p284, %s21, 0
      %s286 = sadd.s32 %s285, %s283
      %s287 = smul.addr %s286, 4
      %s288 = scalar_lea.vmem %s0, %s287
      %p289 = scmp.lt.s32.totalorder %s20, 1
      %s290 = scalar_select %p289, %s20, 1
      %p291 = scmp.lt.s32.totalorder %s22, 0
      %s292 = scalar_select %p291, %s22, 0
      %s293 = sadd.s32 %s292, %s290
      %s294 = sadd.s32 %s293, 2
      %s295 = smul.addr %s294, 4
      %s296 = scalar_lea.vmem %s1, %s295
      %p297 = scmp.lt.s32.totalorder %s20, 1
      %s298 = scalar_select %p297, %s20, 1
      %p299 = scmp.lt.s32.totalorder %s22, 0
      %s300 = scalar_select %p299, %s22, 0
      %s301 = sadd.s32 %s300, %s298
      %s302 = sadd.s32 %s301, 4
      %s303 = smul.addr %s302, 4
      %s304 = scalar_lea.vmem %s2, %s303
      %p305 = scmp.lt.s32.totalorder %s20, 1
      %s306 = scalar_select %p305, %s20, 1
      %p307 = scmp.lt.s32.totalorder %s22, 0
      %s308 = scalar_select %p307, %s22, 0
      %s309 = sadd.s32 %s308, %s306
      %s310 = scalar_lea.vmem %s3, %s309
      %p311 = scmp.lt.s32.totalorder %s20, 1
      %s312 = scalar_select %p311, %s20, 1
      %p313 = scmp.lt.s32.totalorder %s21, 0
      %s314 = scalar_select %p313, %s21, 0
      %s315 = sadd.s32 %s314, %s312
      %s316 = smul.addr %s315, 4
      %s317 = scalar_lea.vmem %s4, %s316
      %p320 = scmp.eq.s32.totalorder %s22, 0
      // Predicated region
      $region37: #{encoder_forward.11} parent=35 // pred_check
        %p321 = pneg %p320
      $region38: #{encoder_forward.11} parent=35 // pred_check_branch
        %323 = sbr.rel (%p321) target = $region40
      $region39: #{encoder_forward.11} parent=35 // pred_region
        %vm324 = vcmask 261120
        %325 = vst.msk [vmem:[#allocation3] sm:$0xff] %vm324, -1e+30
        %326 = vst.msk [vmem:[#allocation4] sm:$0xff] %vm324, 0.0
        %327 = vst.msk [vmem:[#allocation2] sm:$0xff] %vm324, 0.0
      $region40: #{encoder_forward.11} parent=35 // pred_fallthru
        _
      %v328 = vld [vmem:[%s310] sm:$0x1]
      %vm329 = vcmp.eq.f32.partialorder %v328, 0.0
      %v330 = vsel %vm329, -1e+09, 0.0
      %v331 = vld [vmem:[%s288] sm:$0xf]
      %v332 = vmul.bf16 %v331, 1052065461
      %v333 = vld [vmem:[%s296] sm:$0xf]
      %v335 = vlaneseq
      %v336 = vshrl.u32 %v335, 7
      %v337 = vsub.s32 0, %v336
      %v338 = vrot.slane %v330, %v337
      %vm340 = vcmask 64512
      %v342 = vsel %vm340, %v332, 0
      %v345 = vsel %vm340, %v333, 0
      %347 = vmatprep.subr.bf16.mxu0 0
      %348 = vmatpush1.bf16.xpose.msra.mxu0 %v345
      %349 = vmatprep.subr.bf16.mxu0 0
      %350 = vmatpush1.bf16.xpose.msra.mxu0 0
      %351 = vmatprep.subr.bf16.mxu0 0
      %352 = vmatpush1.bf16.xpose.msra.mxu0 0
      %353 = vmatprep.subr.bf16.mxu0 0
      %354 = vmatpush1.bf16.xpose.msra.mxu0 0
      %355 = vmatprep.subr.bf16.mxu0 0
      %356 = vmatpush1.bf16.xpose.msra.mxu0 0
      %357 = vmatprep.subr.bf16.mxu0 0
      %358 = vmatpush1.bf16.xpose.msra.mxu0 0
      %359 = vmatprep.subr.bf16.mxu0 0
      %360 = vmatpush1.bf16.xpose.msra.mxu0 0
      %361 = vmatprep.subr.bf16.mxu0 0
      %362 = vmatpush1.bf16.xpose.msra.mxu0 0
      %363 = vmatprep.subr.bf16.mxu0 0
      %364 = vmatpush1.bf16.xpose.msra.mxu0 0
      %365 = vmatprep.subr.bf16.mxu0 0
      %366 = vmatpush1.bf16.xpose.msra.mxu0 0
      %367 = vmatprep.subr.bf16.mxu0 0
      %368 = vmatpush1.bf16.xpose.msra.mxu0 0
      %369 = vmatprep.subr.bf16.mxu0 0
      %370 = vmatpush1.bf16.xpose.msra.mxu0 0
      %371 = vmatprep.subr.bf16.mxu0 0
      %372 = vmatpush1.bf16.xpose.msra.mxu0 0
      %373 = vmatprep.subr.bf16.mxu0 0
      %374 = vmatpush1.bf16.xpose.msra.mxu0 0
      %375 = vmatprep.subr.bf16.mxu0 0
      %376 = vmatpush1.bf16.xpose.msra.mxu0 0
      %377 = vmatprep.subr.bf16.mxu0 0
      %378 = vmatpush1.bf16.xpose.msra.mxu0 0
      %379 = vmatprep.mubr.bf16.mxu0 0
      %380 = vmatmul.mubr.bf16.gmra.mrb[0].mxu0 %v342
      %v381 = vpop.f32.mrb[0].mxu0
      %v382 = vadd.f32 %v338, %v381
      %v383 = vpop.f32.mrb[0].mxu0
      %v384 = vpop.f32.mrb[0].mxu0
      %v385 = vpop.f32.mrb[0].mxu0
      %386 = vdwg.mxu0
      %v387 = vld [vmem:[#allocation3] sm:$0xff]
      %v388 = vsel %vm340, %v382, -inf
      %389 = vmax.xlane.f32.xlu0 %v388
      %v390 = vpop.xlane.xlu0 %389
      %v391 = vmax.f32 %v387, %v390
      %v392 = vsub.f32 %v387, %v391
      %v393 = vmul.f32 %v392, 1.442695
      %v394 = vpow.pop %v393
      %396 = vset.pattern.permute.xlu0 0
      %397 = vperm.xlu0 %396, %v391
      %v398 = vpop.permute.xlu0 %397
      %v400 = vsub.f32 %v382, %v398
      %v401 = vmul.f32 %v400, 1.442695
      %v402 = vpow.pop %v401
      %v403 = vld [vmem:[#allocation4] sm:$0xff]
      %v404 = vmul.f32 %v394, %v403
      %v405 = vsel %vm340, %v402, 0.0
      %406 = vadd.xlane.f32.xlu0 %v405
      %v407 = vpop.xlane.xlu0 %406
      %v408 = vadd.f32 %v404, %v407
      %v409 = vld [vmem:[#allocation2] sm:$0xff]
      %411 = vset.pattern.permute.xlu0 0
      %412 = vperm.xlu0 %411, %v394
      %v413 = vpop.permute.xlu0 %412
      %v415 = vmul.f32 %v413, %v409
      %v416 = vpack.c.bf16 %v402, %v402
      %v417 = vld [vmem:[%s304] sm:$0xf]
      %v419 = vsel %vm340, %v416, 0
      %vm421 = vcmask 1043456
      %v423 = vsel %vm421, %v417, 0
      %425 = vmatprep.subr.bf16.mxu0 0
      %426 = vmatpush1.bf16.msra.mxu0 %v423
      %427 = vmatprep.subr.bf16.mxu0 0
      %428 = vmatpush1.bf16.msra.mxu0 0
      %429 = vmatprep.subr.bf16.mxu0 0
      %430 = vmatpush1.bf16.msra.mxu0 0
      %431 = vmatprep.subr.bf16.mxu0 0
      %432 = vmatpush1.bf16.msra.mxu0 0
      %433 = vmatprep.subr.bf16.mxu0 0
      %434 = vmatpush1.bf16.msra.mxu0 0
      %435 = vmatprep.subr.bf16.mxu0 0
      %436 = vmatpush1.bf16.msra.mxu0 0
      %437 = vmatprep.subr.bf16.mxu0 0
      %438 = vmatpush1.bf16.msra.mxu0 0
      %439 = vmatprep.subr.bf16.mxu0 0
      %440 = vmatpush1.bf16.msra.mxu0 0
      %441 = vmatprep.subr.bf16.mxu0 0
      %442 = vmatpush1.bf16.msra.mxu0 0
      %443 = vmatprep.subr.bf16.mxu0 0
      %444 = vmatpush1.bf16.msra.mxu0 0
      %445 = vmatprep.subr.bf16.mxu0 0
      %446 = vmatpush1.bf16.msra.mxu0 0
      %447 = vmatprep.subr.bf16.mxu0 0
      %448 = vmatpush1.bf16.msra.mxu0 0
      %449 = vmatprep.subr.bf16.mxu0 0
      %450 = vmatpush1.bf16.msra.mxu0 0
      %451 = vmatprep.subr.bf16.mxu0 0
      %452 = vmatpush1.bf16.msra.mxu0 0
      %453 = vmatprep.subr.bf16.mxu0 0
      %454 = vmatpush1.bf16.msra.mxu0 0
      %455 = vmatprep.subr.bf16.mxu0 0
      %456 = vmatpush1.bf16.msra.mxu0 0
      %457 = vmatprep.mubr.bf16.mxu0 0
      %458 = vmatmul.mubr.bf16.gmra.mrb[0].mxu0 %v419
      %v459 = vpop.f32.mrb[0].mxu0
      %v460 = vadd.f32 0.0, %v459
      %v461 = vpop.f32.mrb[0].mxu0
      %v462 = vpop.f32.mrb[0].mxu0
      %v463 = vpop.f32.mrb[0].mxu0
      %464 = vdwg.mxu0
      %v465 = vadd.f32 %v415, %v460
      %466 = vst.msk [vmem:[#allocation2] sm:$0xff] %vm340, %v465
      %467 = vst.msk [vmem:[#allocation3] sm:$0xff] %vm340, %v398
      %469 = vset.pattern.permute.xlu0 0
      %470 = vperm.xlu0 %469, %v408
      %v471 = vpop.permute.xlu0 %470
      %473 = vst.msk [vmem:[#allocation4] sm:$0xff] %vm340, %v471
      %v474 = vld [vmem:[%s288] sm:$0xf]
      %v475 = vmul.bf16 %v474, 1052065461
      %v476 = vld [vmem:[%s296] sm:$0xf]
      %v478 = vunpack.c.l.b16 %v475
      %v479 = vpack.c.b16 %v478, %v478
      %480 = vrot.lane.b32.xlu0 %v479, 120
      %v481 = vpop.permute.xlu0 %480
      %v483 = vunpack.c.l.b16 %v476
      %v484 = vpack.c.b16 %v483, %v483
      %485 = vrot.lane.b32.xlu0 %v484, 120
      %v486 = vpop.permute.xlu0 %485
      %v488 = vsel %vm340, %v481, 0
      %v491 = vsel %vm340, %v486, 0
      %493 = vmatprep.subr.bf16.mxu0 0
      %494 = vmatpush1.bf16.xpose.msra.mxu0 %v491
      %495 = vmatprep.subr.bf16.mxu0 0
      %496 = vmatpush1.bf16.xpose.msra.mxu0 0
      %497 = vmatprep.subr.bf16.mxu0 0
      %498 = vmatpush1.bf16.xpose.msra.mxu0 0
      %499 = vmatprep.subr.bf16.mxu0 0
      %500 = vmatpush1.bf16.xpose.msra.mxu0 0
      %501 = vmatprep.subr.bf16.mxu0 0
      %502 = vmatpush1.bf16.xpose.msra.mxu0 0
      %503 = vmatprep.subr.bf16.mxu0 0
      %504 = vmatpush1.bf16.xpose.msra.mxu0 0
      %505 = vmatprep.subr.bf16.mxu0 0
      %506 = vmatpush1.bf16.xpose.msra.mxu0 0
      %507 = vmatprep.subr.bf16.mxu0 0
      %508 = vmatpush1.bf16.xpose.msra.mxu0 0
      %509 = vmatprep.subr.bf16.mxu0 0
      %510 = vmatpush1.bf16.xpose.msra.mxu0 0
      %511 = vmatprep.subr.bf16.mxu0 0
      %512 = vmatpush1.bf16.xpose.msra.mxu0 0
      %513 = vmatprep.subr.bf16.mxu0 0
      %514 = vmatpush1.bf16.xpose.msra.mxu0 0
      %515 = vmatprep.subr.bf16.mxu0 0
      %516 = vmatpush1.bf16.xpose.msra.mxu0 0
      %517 = vmatprep.subr.bf16.mxu0 0
      %518 = vmatpush1.bf16.xpose.msra.mxu0 0
      %519 = vmatprep.subr.bf16.mxu0 0
      %520 = vmatpush1.bf16.xpose.msra.mxu0 0
      %521 = vmatprep.subr.bf16.mxu0 0
      %522 = vmatpush1.bf16.xpose.msra.mxu0 0
      %523 = vmatprep.subr.bf16.mxu0 0
      %524 = vmatpush1.bf16.xpose.msra.mxu0 0
      %525 = vmatprep.mubr.bf16.mxu0 0
      %526 = vmatmul.mubr.bf16.gmra.mrb[0].mxu0 %v488
      %v527 = vpop.f32.mrb[0].mxu0
      %v528 = vadd.f32 %v338, %v527
      %v529 = vpop.f32.mrb[0].mxu0
      %v530 = vpop.f32.mrb[0].mxu0
      %v531 = vpop.f32.mrb[0].mxu0
      %532 = vdwg.mxu0
      %v533 = vld [vmem:[#allocation3] sm:$0xff]
      %v534 = vsel %vm340, %v528, -inf
      %535 = vmax.xlane.f32.xlu0 %v534
      %v536 = vpop.xlane.xlu0 %535
      %v537 = vmax.f32 %v533, %v536
      %v538 = vsub.f32 %v533, %v537
      %v539 = vmul.f32 %v538, 1.442695
      %v540 = vpow.pop %v539
      %542 = vset.pattern.permute.xlu0 8
      %543 = vperm.xlu0 %542, %v537
      %v544 = vpop.permute.xlu0 %543
      %v546 = vsub.f32 %v528, %v544
      %v547 = vmul.f32 %v546, 1.442695
      %v548 = vpow.pop %v547
      %v549 = vld [vmem:[#allocation4] sm:$0xff]
      %v550 = vmul.f32 %v540, %v549
      %v551 = vsel %vm340, %v548, 0.0
      %552 = vadd.xlane.f32.xlu0 %v551
      %v553 = vpop.xlane.xlu0 %552
      %v554 = vadd.f32 %v550, %v553
      %v555 = vld [vmem:[#allocation2] sm:$0xff]
      %557 = vset.pattern.permute.xlu0 8
      %558 = vperm.xlu0 %557, %v540
      %v559 = vpop.permute.xlu0 %558
      %v561 = vmul.f32 %v559, %v555
      %v562 = vpack.c.bf16 %v548, %v548
      %v563 = vld [vmem:[%s304] sm:$0xf]
      %v565 = vunpack.c.l.b16 %v563
      %v566 = vpack.c.b16 %v565, %v565
      %567 = vrot.lane.b32.xlu0 %v566, 120
      %v568 = vpop.permute.xlu0 %567
      %v570 = vsel %vm340, %v562, 0
      %v573 = vsel %vm421, %v568, 0
      %575 = vmatprep.subr.bf16.mxu0 0
      %576 = vmatpush1.bf16.msra.mxu0 %v573
      %577 = vmatprep.subr.bf16.mxu0 0
      %578 = vmatpush1.bf16.msra.mxu0 0
      %579 = vmatprep.subr.bf16.mxu0 0
      %580 = vmatpush1.bf16.msra.mxu0 0
      %581 = vmatprep.subr.bf16.mxu0 0
      %582 = vmatpush1.bf16.msra.mxu0 0
      %583 = vmatprep.subr.bf16.mxu0 0
      %584 = vmatpush1.bf16.msra.mxu0 0
      %585 = vmatprep.subr.bf16.mxu0 0
      %586 = vmatpush1.bf16.msra.mxu0 0
      %587 = vmatprep.subr.bf16.mxu0 0
      %588 = vmatpush1.bf16.msra.mxu0 0
      %589 = vmatprep.subr.bf16.mxu0 0
      %590 = vmatpush1.bf16.msra.mxu0 0
      %591 = vmatprep.subr.bf16.mxu0 0
      %592 = vmatpush1.bf16.msra.mxu0 0
      %593 = vmatprep.subr.bf16.mxu0 0
      %594 = vmatpush1.bf16.msra.mxu0 0
      %595 = vmatprep.subr.bf16.mxu0 0
      %596 = vmatpush1.bf16.msra.mxu0 0
      %597 = vmatprep.subr.bf16.mxu0 0
      %598 = vmatpush1.bf16.msra.mxu0 0
      %599 = vmatprep.subr.bf16.mxu0 0
      %600 = vmatpush1.bf16.msra.mxu0 0
      %601 = vmatprep.subr.bf16.mxu0 0
      %602 = vmatpush1.bf16.msra.mxu0 0
      %603 = vmatprep.subr.bf16.mxu0 0
      %604 = vmatpush1.bf16.msra.mxu0 0
      %605 = vmatprep.subr.bf16.mxu0 0
      %606 = vmatpush1.bf16.msra.mxu0 0
      %607 = vmatprep.mubr.bf16.mxu0 0
      %608 = vmatmul.mubr.bf16.gmra.mrb[0].mxu0 %v570
      %v609 = vpop.f32.mrb[0].mxu0
      %v610 = vadd.f32 0.0, %v609
      %v611 = vpop.f32.mrb[0].mxu0
      %v612 = vpop.f32.mrb[0].mxu0
      %v613 = vpop.f32.mrb[0].mxu0
      %614 = vdwg.mxu0
      %616 = vrot.lane.b32.xlu0 %v610, 8
      %v617 = vpop.permute.xlu0 %616
      %v619 = vadd.f32 %v561, %v617
      %vm620 = vcmask 130112
      %621 = vst.msk [vmem:[#allocation2] sm:$0xff] %vm620, %v619
      %622 = vst.msk [vmem:[#allocation3] sm:$0xff] %vm620, %v544
      %624 = vset.pattern.permute.xlu0 8
      %625 = vperm.xlu0 %624, %v554
      %v626 = vpop.permute.xlu0 %625
      %628 = vst.msk [vmem:[#allocation4] sm:$0xff] %vm620, %v626
      %v629 = vld [vmem:[%s288] sm:$0xf]
      %v630 = vmul.bf16 %v629, 1052065461
      %v631 = vld [vmem:[%s296] sm:$0xf]
      %v633 = vunpack.c.l.b16 %v630
      %v634 = vpack.c.b16 %v633, %v633
      %635 = vrot.lane.b32.xlu0 %v634, 112
      %v636 = vpop.permute.xlu0 %635
      %v638 = vunpack.c.l.b16 %v631
      %v639 = vpack.c.b16 %v638, %v638
      %640 = vrot.lane.b32.xlu0 %v639, 112
      %v641 = vpop.permute.xlu0 %640
      %v643 = vsel %vm340, %v636, 0
      %v646 = vsel %vm340, %v641, 0
      %648 = vmatprep.subr.bf16.mxu0 0
      %649 = vmatpush1.bf16.xpose.msra.mxu0 %v646
      %650 = vmatprep.subr.bf16.mxu0 0
      %651 = vmatpush1.bf16.xpose.msra.mxu0 0
      %652 = vmatprep.subr.bf16.mxu0 0
      %653 = vmatpush1.bf16.xpose.msra.mxu0 0
      %654 = vmatprep.subr.bf16.mxu0 0
      %655 = vmatpush1.bf16.xpose.msra.mxu0 0
      %656 = vmatprep.subr.bf16.mxu0 0
      %657 = vmatpush1.bf16.xpose.msra.mxu0 0
      %658 = vmatprep.subr.bf16.mxu0 0
      %659 = vmatpush1.bf16.xpose.msra.mxu0 0
      %660 = vmatprep.subr.bf16.mxu0 0
      %661 = vmatpush1.bf16.xpose.msra.mxu0 0
      %662 = vmatprep.subr.bf16.mxu0 0
      %663 = vmatpush1.bf16.xpose.msra.mxu0 0
      %664 = vmatprep.subr.bf16.mxu0 0
      %665 = vmatpush1.bf16.xpose.msra.mxu0 0
      %666 = vmatprep.subr.bf16.mxu0 0
      %667 = vmatpush1.bf16.xpose.msra.mxu0 0
      %668 = vmatprep.subr.bf16.mxu0 0
      %669 = vmatpush1.bf16.xpose.msra.mxu0 0
      %670 = vmatprep.subr.bf16.mxu0 0
      %671 = vmatpush1.bf16.xpose.msra.mxu0 0
      %672 = vmatprep.subr.bf16.mxu0 0
      %673 = vmatpush1.bf16.xpose.msra.mxu0 0
      %674 = vmatprep.subr.bf16.mxu0 0
      %675 = vmatpush1.bf16.xpose.msra.mxu0 0
      %676 = vmatprep.subr.bf16.mxu0 0
      %677 = vmatpush1.bf16.xpose.msra.mxu0 0
      %678 = vmatprep.subr.bf16.mxu0 0
      %679 = vmatpush1.bf16.xpose.msra.mxu0 0
      %680 = vmatprep.mubr.bf16.mxu0 0
      %681 = vmatmul.mubr.bf16.gmra.mrb[0].mxu0 %v643
      %v682 = vpop.f32.mrb[0].mxu0
      %v683 = vadd.f32 %v338, %v682
      %v684 = vpop.f32.mrb[0].mxu0
      %v685 = vpop.f32.mrb[0].mxu0
      %v686 = vpop.f32.mrb[0].mxu0
      %687 = vdwg.mxu0
      %v688 = vld [vmem:[#allocation3] sm:$0xff]
      %v689 = vsel %vm340, %v683, -inf
      %690 = vmax.xlane.f32.xlu0 %v689
      %v691 = vpop.xlane.xlu0 %690
      %v692 = vmax.f32 %v688, %v691
      %v693 = vsub.f32 %v688, %v692
      %v694 = vmul.f32 %v693, 1.442695
      %v695 = vpow.pop %v694
      %697 = vset.pattern.permute.xlu0 16
      %698 = vperm.xlu0 %697, %v692
      %v699 = vpop.permute.xlu0 %698
      %v701 = vsub.f32 %v683, %v699
      %v702 = vmul.f32 %v701, 1.442695
      %v703 = vpow.pop %v702
      %v704 = vld [vmem:[#allocation4] sm:$0xff]
      %v705 = vmul.f32 %v695, %v704
      %v706 = vsel %vm340, %v703, 0.0
      %707 = vadd.xlane.f32.xlu0 %v706
      %v708 = vpop.xlane.xlu0 %707
      %v709 = vadd.f32 %v705, %v708
      %v710 = vld [vmem:[#allocation2] sm:$0xff]
      %712 = vset.pattern.permute.xlu0 16
      %713 = vperm.xlu0 %712, %v695
      %v714 = vpop.permute.xlu0 %713
      %v716 = vmul.f32 %v714, %v710
      %v717 = vpack.c.bf16 %v703, %v703
      %v718 = vld [vmem:[%s304] sm:$0xf]
      %v720 = vunpack.c.l.b16 %v718
      %v721 = vpack.c.b16 %v720, %v720
      %722 = vrot.lane.b32.xlu0 %v721, 112
      %v723 = vpop.permute.xlu0 %722
      %v725 = vsel %vm340, %v717, 0
      %v728 = vsel %vm421, %v723, 0
      %730 = vmatprep.subr.bf16.mxu0 0
      %731 = vmatpush1.bf16.msra.mxu0 %v728
      %732 = vmatprep.subr.bf16.mxu0 0
      %733 = vmatpush1.bf16.msra.mxu0 0
      %734 = vmatprep.subr.bf16.mxu0 0
      %735 = vmatpush1.bf16.msra.mxu0 0
      %736 = vmatprep.subr.bf16.mxu0 0
      %737 = vmatpush1.bf16.msra.mxu0 0
      %738 = vmatprep.subr.bf16.mxu0 0
      %739 = vmatpush1.bf16.msra.mxu0 0
      %740 = vmatprep.subr.bf16.mxu0 0
      %741 = vmatpush1.bf16.msra.mxu0 0
      %742 = vmatprep.subr.bf16.mxu0 0
      %743 = vmatpush1.bf16.msra.mxu0 0
      %744 = vmatprep.subr.bf16.mxu0 0
      %745 = vmatpush1.bf16.msra.mxu0 0
      %746 = vmatprep.subr.bf16.mxu0 0
      %747 = vmatpush1.bf16.msra.mxu0 0
      %748 = vmatprep.subr.bf16.mxu0 0
      %749 = vmatpush1.bf16.msra.mxu0 0
      %750 = vmatprep.subr.bf16.mxu0 0
      %751 = vmatpush1.bf16.msra.mxu0 0
      %752 = vmatprep.subr.bf16.mxu0 0
      %753 = vmatpush1.bf16.msra.mxu0 0
      %754 = vmatprep.subr.bf16.mxu0 0
      %755 = vmatpush1.bf16.msra.mxu0 0
      %756 = vmatprep.subr.bf16.mxu0 0
      %757 = vmatpush1.bf16.msra.mxu0 0
      %758 = vmatprep.subr.bf16.mxu0 0
      %759 = vmatpush1.bf16.msra.mxu0 0
      %760 = vmatprep.subr.bf16.mxu0 0
      %761 = vmatpush1.bf16.msra.mxu0 0
      %762 = vmatprep.mubr.bf16.mxu0 0
      %763 = vmatmul.mubr.bf16.gmra.mrb[0].mxu0 %v725
      %v764 = vpop.f32.mrb[0].mxu0
      %v765 = vadd.f32 0.0, %v764
      %v766 = vpop.f32.mrb[0].mxu0
      %v767 = vpop.f32.mrb[0].mxu0
      %v768 = vpop.f32.mrb[0].mxu0
      %769 = vdwg.mxu0
      %771 = vrot.lane.b32.xlu0 %v765, 16
      %v772 = vpop.permute.xlu0 %771
      %v774 = vadd.f32 %v716, %v772
      %vm775 = vcmask 195712
      %776 = vst.msk [vmem:[#allocation2] sm:$0xff] %vm775, %v774
      %777 = vst.msk [vmem:[#allocation3] sm:$0xff] %vm775, %v699
      %779 = vset.pattern.permute.xlu0 16
      %780 = vperm.xlu0 %779, %v709
      %v781 = vpop.permute.xlu0 %780
      %783 = vst.msk [vmem:[#allocation4] sm:$0xff] %vm775, %v781
      %v784 = vld [vmem:[%s288] sm:$0xf]
      %v785 = vmul.bf16 %v784, 1052065461
      %v786 = vld [vmem:[%s296] sm:$0xf]
      %v788 = vunpack.c.l.b16 %v785
      %v789 = vpack.c.b16 %v788, %v788
      %790 = vrot.lane.b32.xlu0 %v789, 104
      %v791 = vpop.permute.xlu0 %790
      %v793 = vunpack.c.l.b16 %v786
      %v794 = vpack.c.b16 %v793, %v793
      %795 = vrot.lane.b32.xlu0 %v794, 104
      %v796 = vpop.permute.xlu0 %795
      %v798 = vsel %vm340, %v791, 0
      %v801 = vsel %vm340, %v796, 0
      %803 = vmatprep.subr.bf16.mxu0 0
      %804 = vmatpush1.bf16.xpose.msra.mxu0 %v801
      %805 = vmatprep.subr.bf16.mxu0 0
      %806 = vmatpush1.bf16.xpose.msra.mxu0 0
      %807 = vmatprep.subr.bf16.mxu0 0
      %808 = vmatpush1.bf16.xpose.msra.mxu0 0
      %809 = vmatprep.subr.bf16.mxu0 0
      %810 = vmatpush1.bf16.xpose.msra.mxu0 0
      %811 = vmatprep.subr.bf16.mxu0 0
      %812 = vmatpush1.bf16.xpose.msra.mxu0 0
      %813 = vmatprep.subr.bf16.mxu0 0
      %814 = vmatpush1.bf16.xpose.msra.mxu0 0
      %815 = vmatprep.subr.bf16.mxu0 0
      %816 = vmatpush1.bf16.xpose.msra.mxu0 0
      %817 = vmatprep.subr.bf16.mxu0 0
      %818 = vmatpush1.bf16.xpose.msra.mxu0 0
      %819 = vmatprep.subr.bf16.mxu0 0
      %820 = vmatpush1.bf16.xpose.msra.mxu0 0
      %821 = vmatprep.subr.bf16.mxu0 0
      %822 = vmatpush1.bf16.xpose.msra.mxu0 0
      %823 = vmatprep.subr.bf16.mxu0 0
      %824 = vmatpush1.bf16.xpose.msra.mxu0 0
      %825 = vmatprep.subr.bf16.mxu0 0
      %826 = vmatpush1.bf16.xpose.msra.mxu0 0
      %827 = vmatprep.subr.bf16.mxu0 0
      %828 = vmatpush1.bf16.xpose.msra.mxu0 0
      %829 = vmatprep.subr.bf16.mxu0 0
      %830 = vmatpush1.bf16.xpose.msra.mxu0 0
      %831 = vmatprep.subr.bf16.mxu0 0
      %832 = vmatpush1.bf16.xpose.msra.mxu0 0
      %833 = vmatprep.subr.bf16.mxu0 0
      %834 = vmatpush1.bf16.xpose.msra.mxu0 0
      %835 = vmatprep.mubr.bf16.mxu0 0
      %836 = vmatmul.mubr.bf16.gmra.mrb[0].mxu0 %v798
      %v837 = vpop.f32.mrb[0].mxu0
      %v838 = vadd.f32 %v338, %v837
      %v839 = vpop.f32.mrb[0].mxu0
      %v840 = vpop.f32.mrb[0].mxu0
      %v841 = vpop.f32.mrb[0].mxu0
      %842 = vdwg.mxu0
      %v843 = vld [vmem:[#allocation3] sm:$0xff]
      %v844 = vsel %vm340, %v838, -inf
      %845 = vmax.xlane.f32.xlu0 %v844
      %v846 = vpop.xlane.xlu0 %845
      %v847 = vmax.f32 %v843, %v846
      %v848 = vsub.f32 %v843, %v847
      %v849 = vmul.f32 %v848, 1.442695
      %v850 = vpow.pop %v849
      %852 = vset.pattern.permute.xlu0 24
      %853 = vperm.xlu0 %852, %v847
      %v854 = vpop.permute.xlu0 %853
      %v856 = vsub.f32 %v838, %v854
      %v857 = vmul.f32 %v856, 1.442695
      %v858 = vpow.pop %v857
      %v859 = vld [vmem:[#allocation4] sm:$0xff]
      %v860 = vmul.f32 %v850, %v859
      %v861 = vsel %vm340, %v858, 0.0
      %862 = vadd.xlane.f32.xlu0 %v861
      %v863 = vpop.xlane.xlu0 %862
      %v864 = vadd.f32 %v860, %v863
      %v865 = vld [vmem:[#allocation2] sm:$0xff]
      %867 = vset.pattern.permute.xlu0 24
      %868 = vperm.xlu0 %867, %v850
      %v869 = vpop.permute.xlu0 %868
      %v871 = vmul.f32 %v869, %v865
      %v872 = vpack.c.bf16 %v858, %v858
      %v873 = vld [vmem:[%s304] sm:$0xf]
      %v875 = vunpack.c.l.b16 %v873
      %v876 = vpack.c.b16 %v875, %v875
      %877 = vrot.lane.b32.xlu0 %v876, 104
      %v878 = vpop.permute.xlu0 %877
      %v880 = vsel %vm340, %v872, 0
      %v883 = vsel %vm421, %v878, 0
      %885 = vmatprep.subr.bf16.mxu0 0
      %886 = vmatpush1.bf16.msra.mxu0 %v883
      %887 = vmatprep.subr.bf16.mxu0 0
      %888 = vmatpush1.bf16.msra.mxu0 0
      %889 = vmatprep.subr.bf16.mxu0 0
      %890 = vmatpush1.bf16.msra.mxu0 0
      %891 = vmatprep.subr.bf16.mxu0 0
      %892 = vmatpush1.bf16.msra.mxu0 0
      %893 = vmatprep.subr.bf16.mxu0 0
      %894 = vmatpush1.bf16.msra.mxu0 0
      %895 = vmatprep.subr.bf16.mxu0 0
      %896 = vmatpush1.bf16.msra.mxu0 0
      %897 = vmatprep.subr.bf16.mxu0 0
      %898 = vmatpush1.bf16.msra.mxu0 0
      %899 = vmatprep.subr.bf16.mxu0 0
      %900 = vmatpush1.bf16.msra.mxu0 0
      %901 = vmatprep.subr.bf16.mxu0 0
      %902 = vmatpush1.bf16.msra.mxu0 0
      %903 = vmatprep.subr.bf16.mxu0 0
      %904 = vmatpush1.bf16.msra.mxu0 0
      %905 = vmatprep.subr.bf16.mxu0 0
      %906 = vmatpush1.bf16.msra.mxu0 0
      %907 = vmatprep.subr.bf16.mxu0 0
      %908 = vmatpush1.bf16.msra.mxu0 0
      %909 = vmatprep.subr.bf16.mxu0 0
      %910 = vmatpush1.bf16.msra.mxu0 0
      %911 = vmatprep.subr.bf16.mxu0 0
      %912 = vmatpush1.bf16.msra.mxu0 0
      %913 = vmatprep.subr.bf16.mxu0 0
      %914 = vmatpush1.bf16.msra.mxu0 0
      %915 = vmatprep.subr.bf16.mxu0 0
      %916 = vmatpush1.bf16.msra.mxu0 0
      %917 = vmatprep.mubr.bf16.mxu0 0
      %918 = vmatmul.mubr.bf16.gmra.mrb[0].mxu0 %v880
      %v919 = vpop.f32.mrb[0].mxu0
      %v920 = vadd.f32 0.0, %v919
      %v921 = vpop.f32.mrb[0].mxu0
      %v922 = vpop.f32.mrb[0].mxu0
      %v923 = vpop.f32.mrb[0].mxu0
      %924 = vdwg.mxu0
      %926 = vrot.lane.b32.xlu0 %v920, 24
      %v927 = vpop.permute.xlu0 %926
      %v929 = vadd.f32 %v871, %v927
      %vm930 = vcmask 261312
      %931 = vst.msk [vmem:[#allocation2] sm:$0xff] %vm930, %v929
      %932 = vst.msk [vmem:[#allocation3] sm:$0xff] %vm930, %v854
      %934 = vset.pattern.permute.xlu0 24
      %935 = vperm.xlu0 %934, %v864
      %v936 = vpop.permute.xlu0 %935
      %938 = vst.msk [vmem:[#allocation4] sm:$0xff] %vm930, %v936
      // Predicated region
      $region41: #{encoder_forward.11} parent=35 // pred_check
        %p939 = pneg %p320
      $region42: #{encoder_forward.11} parent=35 // pred_check_branch
        %941 = sbr.rel (%p939) target = $region44
      $region43: #{encoder_forward.11} parent=35 // pred_region
        %v942 = vld [vmem:[#allocation2] sm:$0xff]
        %v943 = vld [vmem:[#allocation4] sm:$0xff]
        %v944 = vrcp.pop %v943
        %v945 = vmul.f32 %v942, %v944
        %v946 = vpack.c.bf16 %v945, %v945
        %vm947 = vcmask 257024
        %948 = vst.msk [vmem:[%s317] sm:$0xf] %vm947, %v946
      $region44: #{encoder_forward.11} parent=35 // pred_fallthru
        _
      %p949 = scmp.lt.s32.totalorder %s20, 1
      %s950 = scalar_select %p949, %s20, 1
      %p951 = scmp.lt.s32.totalorder %s21, 0
      %s952 = scalar_select %p951, %s21, 0
      %s953 = sadd.s32 %s952, %s950
      %s954 = smul.addr %s953, 4
      %s955 = scalar_lea.vmem %s4, %s954
      // Predicated region
      $region45: #{encoder_forward.11} parent=35 // pred_check
        %p956 = pneg %p166
      $region46: #{encoder_forward.11} parent=35 // pred_check_branch
        %958 = sbr.rel (%p956) target = $region48
      $region47: #{encoder_forward.11} parent=35 // pred_region
        _
      $region48: #{encoder_forward.11} parent=35 // pred_fallthru
        _
    $region36: #{encoder_forward.11} parent=5 // pred_fallthru
      _
    %p959 = scmp.le.s32.totalorder 2, %s10
    // Predicated region
    $region49: #{encoder_forward.11} parent=5 // pred_check
      %p960 = pneg %p959
    $region50: #{encoder_forward.11} parent=5 // pred_check_branch
      %962 = sbr.rel (%p960) target = $region52
    $region51: #{encoder_forward.11} parent=5 // pred_region
      %s963 = ssub.s32 %s10, 2
      // Predicated region
      $region53: #{encoder_forward.11} parent=51 // pred_check
        %p964 = pneg %p172
      $region54: #{encoder_forward.11} parent=51 // pred_check_branch
        %966 = sbr.rel (%p964) target = $region56
      $region55: #{encoder_forward.11} parent=51 // pred_region
        %p967 = scmp.lt.s32.totalorder %s23, 1
        %s968 = scalar_select %p967, %s23, 1
        %p969 = scmp.lt.s32.totalorder %s24, 0
        %s970 = scalar_select %p969, %s24, 0
        %s971 = sadd.s32 %s970, %s968
        %s972 = smul.addr %s971, 4
        %s973 = scalar_lea.vmem %s4, %s972
      $region56: #{encoder_forward.11} parent=51 // pred_fallthru
        _
    $region52: #{encoder_forward.11} parent=5 // pred_fallthru
      _
  $region6: #{encoder_forward.11} parent=0 // loop_footer
    %s14 = sadd.s32 1, %s10
  $region7: #{encoder_forward.11} parent=0 // loop_footer_branch
    %9 = sbr.rel target = $region3
  $region8: #{encoder_forward.11} parent=0 // loop_exit
    _

// kernel: encoder_forward.14
$region0: #{encoder_forward.14}
  #allocation0 [shape = 'u32[]', space=smem, size = 0x4, offset = 0x4, fixed_abs, tag = 'smem constant byte address 0x4 - core index']
  #allocation1 [shape = 'u32[144,128]{1,0:T(1,128)}', space=vmem, size = 0x12000, scoped, tag = 'internal scratch']
  #allocation2 [shape = 'f32[16,32]{1,0:T(8,128)}', space=vmem, size = 0x2000, scoped, tag = 'scratch operand']
  %s0 = inlined_call_operand.vmem [shape: bf16[16,64], index: 0, kind: input, shape index: {}]
  %s1 = inlined_call_operand.vmem [shape: bf16[64,32], index: 1, kind: input, shape index: {}]
  %s2 = inlined_call_operand.vmem [shape: f32[1,32], index: 2, kind: input, shape index: {}]
  %s3 = inlined_call_operand.vmem [shape: bf16[16,32], index: 3, kind: input, shape index: {}]
  %s4 = inlined_call_operand.vmem [shape: f32[1,32], index: 4, kind: input, shape index: {}]
  %s5 = inlined_call_operand.vmem [shape: f32[1,32], index: 5, kind: input, shape index: {}]
  %s6 = inlined_call_operand.vmem [shape: bf16[16,32], index: 6, kind: output, shape index: {}]
  %s7 = sld [smem:[#allocation0]]
  $region42: #{encoder_forward.14} parent=0
    _
  %s9 = ssub.s32 1, %s7
  %s10 = scalar_select 0, %s9, %s7
  // Predicated region
  $region2: #{encoder_forward.14} parent=0 // pred_check
    _
  $region3: #{encoder_forward.14} parent=0 // pred_check_branch
    %12 = sbr.rel (0) target = $region5
  $region4: #{encoder_forward.14} parent=0 // pred_region
    _
  $region5: #{encoder_forward.14} parent=0 // pred_fallthru
    _
  // Predicated region
  $region6: #{encoder_forward.14} parent=0 // pred_check
    _
  $region7: #{encoder_forward.14} parent=0 // pred_check_branch
    %14 = sbr.rel (0) target = $region9
  $region8: #{encoder_forward.14} parent=0 // pred_region
    _
  $region9: #{encoder_forward.14} parent=0 // pred_fallthru
    _
  // Predicated region
  $region10: #{encoder_forward.14} parent=0 // pred_check
    _
  $region11: #{encoder_forward.14} parent=0 // pred_check_branch
    %16 = sbr.rel (0) target = $region13
  $region12: #{encoder_forward.14} parent=0 // pred_region
    _
  $region13: #{encoder_forward.14} parent=0 // pred_fallthru
    _
  // Predicated region
  $region14: #{encoder_forward.14} parent=0 // pred_check
    _
  $region15: #{encoder_forward.14} parent=0 // pred_check_branch
    %18 = sbr.rel (0) target = $region17
  $region16: #{encoder_forward.14} parent=0 // pred_region
    _
  $region17: #{encoder_forward.14} parent=0 // pred_fallthru
    _
  // Predicated region
  $region18: #{encoder_forward.14} parent=0 // pred_check
    _
  $region19: #{encoder_forward.14} parent=0 // pred_check_branch
    %20 = sbr.rel (0) target = $region21
  $region20: #{encoder_forward.14} parent=0 // pred_region
    _
  $region21: #{encoder_forward.14} parent=0 // pred_fallthru
    _
  // Predicated region
  $region22: #{encoder_forward.14} parent=0 // pred_check
    _
  $region23: #{encoder_forward.14} parent=0 // pred_check_branch
    %22 = sbr.rel (0) target = $region25
  $region24: #{encoder_forward.14} parent=0 // pred_region
    _
  $region25: #{encoder_forward.14} parent=0 // pred_fallthru
    _
  %p24 = scmp.eq.s32.totalorder 0, 0
  // Predicated region
  $region26: #{encoder_forward.14} parent=0 // pred_check
    %p25 = pneg %p24
  $region27: #{encoder_forward.14} parent=0 // pred_check_branch
    %27 = sbr.rel (%p25) target = $region29
  $region28: #{encoder_forward.14} parent=0 // pred_region
    %vm28 = vcmask 261120
    %29 = vst.msk [vmem:[#allocation2] sm:$0xff] %vm28, 0.0
    %30 = vst.msk [vmem:[#allocation2 + $0x8] sm:$0xff] %vm28, 0.0
  $region29: #{encoder_forward.14} parent=0 // pred_fallthru
    _
  %v31 = vld [vmem:[#allocation2] sm:$0xff]
  %v32 = vld [vmem:[#allocation2 + $0x8] sm:$0xff]
  %v33 = vld [vmem:[%s0] sm:$0xf]
  %v34 = vld [vmem:[%s0 + $0x4] sm:$0xf]
  %v35 = vld [vmem:[%s1] sm:$0xf]
  %v36 = vld [vmem:[%s1 + $0x4] sm:$0xf]
  %v37 = vld [vmem:[%s1 + $0x8] sm:$0xf]
  %v38 = vld [vmem:[%s1 + $0xc] sm:$0xf]
  %v39 = vld [vmem:[%s1 + $0x10] sm:$0xf]
  %v40 = vld [vmem:[%s1 + $0x14] sm:$0xf]
  %v41 = vld [vmem:[%s1 + $0x18] sm:$0xf]
  %v42 = vld [vmem:[%s1 + $0x1c] sm:$0xf]
  %v45 = vunpack.c.l.b16 %v33
  %v46 = vunpack.c.l.b16 %v34
  %v47 = vpack.c.b16 %v46, %v45
  %v56 = vunpack.c.l.b16 %v35
  %v57 = vunpack.c.l.b16 %v36
  %v58 = vunpack.c.l.b16 %v37
  %v59 = vunpack.c.l.b16 %v38
  %v60 = vunpack.c.l.b16 %v39
  %v61 = vunpack.c.l.b16 %v40
  %v62 = vunpack.c.l.b16 %v41
  %v63 = vunpack.c.l.b16 %v42
  %v64 = vpack.c.b16 %v57, %v56
  %v65 = vpack.c.b16 %v59, %v58
  %v66 = vpack.c.b16 %v61, %v60
  %v67 = vpack.c.b16 %v63, %v62
  %vm72 = vcmask 523264
  %v74 = vsel %vm72, %v47, 0
  %76 = vmatprep.subr.bf16.mxu0 0
  %77 = vmatpush1.bf16.msra.mxu0 %v64
  %78 = vmatprep.subr.bf16.mxu0 0
  %79 = vmatpush1.bf16.msra.mxu0 %v65
  %80 = vmatprep.subr.bf16.mxu0 0
  %81 = vmatpush1.bf16.msra.mxu0 %v66
  %82 = vmatprep.subr.bf16.mxu0 0
  %83 = vmatpush1.bf16.msra.mxu0 %v67
  %84 = vmatprep.subr.bf16.mxu0 0
  %85 = vmatpush1.bf16.msra.mxu0 0
  %86 = vmatprep.subr.bf16.mxu0 0
  %87 = vmatpush1.bf16.msra.mxu0 0
  %88 = vmatprep.subr.bf16.mxu0 0
  %89 = vmatpush1.bf16.msra.mxu0 0
  %90 = vmatprep.subr.bf16.mxu0 0
  %91 = vmatpush1.bf16.msra.mxu0 0
  %92 = vmatprep.subr.bf16.mxu0 0
  %93 = vmatpush1.bf16.msra.mxu0 0
  %94 = vmatprep.subr.bf16.mxu0 0
  %95 = vmatpush1.bf16.msra.mxu0 0
  %96 = vmatprep.subr.bf16.mxu0 0
  %97 = vmatpush1.bf16.msra.mxu0 0
  %98 = vmatprep.subr.bf16.mxu0 0
  %99 = vmatpush1.bf16.msra.mxu0 0
  %100 = vmatprep.subr.bf16.mxu0 0
  %101 = vmatpush1.bf16.msra.mxu0 0
  %102 = vmatprep.subr.bf16.mxu0 0
  %103 = vmatpush1.bf16.msra.mxu0 0
  %104 = vmatprep.subr.bf16.mxu0 0
  %105 = vmatpush1.bf16.msra.mxu0 0
  %106 = vmatprep.subr.bf16.mxu0 0
  %107 = vmatpush1.bf16.msra.mxu0 0
  %108 = vmatprep.mubr.bf16.mxu0 0
  %109 = vmatmul.mubr.bf16.gmra.mrb[0].mxu0 %v74
  %v110 = vpop.f32.mrb[0].mxu0
  %v111 = vadd.f32 0.0, %v110
  %v112 = vpop.f32.mrb[0].mxu0
  %v113 = vpop.f32.mrb[0].mxu0
  %v114 = vadd.f32 0.0, %v113
  %v115 = vpop.f32.mrb[0].mxu0
  %116 = vdwg.mxu0
  %v117 = vadd.f32 %v31, %v111
  %v118 = vadd.f32 %v32, %v114
  %vm119 = vcmask 261120
  %120 = vst.msk [vmem:[#allocation2] sm:$0xff] %vm119, %v117
  %121 = vst.msk [vmem:[#allocation2 + $0x8] sm:$0xff] %vm119, %v118
  // Predicated region
  $region30: #{encoder_forward.14} parent=0 // pred_check
    %p122 = pneg %p24
  $region31: #{encoder_forward.14} parent=0 // pred_check_branch
    %124 = sbr.rel (%p122) target = $region33
  $region32: #{encoder_forward.14} parent=0 // pred_region
    %v125 = vld [vmem:[#allocation2] sm:$0xff]
    %v126 = vld [vmem:[#allocation2 + $0x8] sm:$0xff]
    %v127 = vld [vmem:[%s2] sm:$0x1]
    %v129 = vlaneseq
    %v130 = vshrl.u32 %v129, 7
    %v131 = vsub.s32 0, %v130
    %v132 = vrot.slane %v127, %v131
    %v134 = vadd.f32 %v125, %v132
    %v135 = vadd.f32 %v126, %v132
    %v136 = vld [vmem:[%s3] sm:$0xf]
    %v137 = vld [vmem:[%s3 + $0x4] sm:$0xf]
    %v138 = vunpack.c.l.bf16 %v136
    %v139 = vunpack.c.l.bf16 %v137
    %v140 = vadd.f32 %v134, %v138
    %v141 = vadd.f32 %v135, %v139
    %v142 = vsel %vm119, %v140, 0.0
    %143 = vadd.xlane.f32.xlu0 %v142
    %v144 = vpop.xlane.xlu0 %143
    %v145 = vsel %vm119, %v141, 0.0
    %146 = vadd.xlane.f32.xlu0 %v145
    %v147 = vpop.xlane.xlu0 %146
    %v148 = vrcp.pop 32.0
    %v149 = vmul.f32 %v144, %v148
    %v150 = vmul.f32 %v147, %v148
    %v151 = vsub.f32 %v140, %v149
    %v152 = vsub.f32 %v141, %v150
    %v153 = vmul.f32 %v151, %v151
    %v154 = vmul.f32 %v152, %v152
    %v155 = vsel %vm119, %v153, 0.0
    %156 = vadd.xlane.f32.xlu0 %v155
    %v157 = vpop.xlane.xlu0 %156
    %v158 = vsel %vm119, %v154, 0.0
    %159 = vadd.xlane.f32.xlu0 %v158
    %v160 = vpop.xlane.xlu0 %159
    %v161 = vmul.f32 %v157, %v148
    %v162 = vmul.f32 %v160, %v148
    %v163 = vadd.f32 %v161, 1e-05
    %v164 = vadd.f32 %v162, 1e-05
    %v165 = vrsqrt.pop %v163
    %v166 = vrsqrt.pop %v164
    %v167 = vmul.f32 %v151, %v165
    %v168 = vmul.f32 %v152, %v166
    %v169 = vld [vmem:[%s4] sm:$0x1]
    %v171 = vlaneseq
    %v172 = vshrl.u32 %v171, 7
    %v173 = vsub.s32 0, %v172
    %v174 = vrot.slane %v169, %v173
    %v176 = vmul.f32 %v167, %v174
    %v177 = vmul.f32 %v168, %v174
    %v178 = vld [vmem:[%s5] sm:$0x1]
    %v180 = vlaneseq
    %v181 = vshrl.u32 %v180, 7
    %v182 = vsub.s32 0, %v181
    %v183 = vrot.slane %v178, %v182
    %v185 = vadd.f32 %v176, %v183
    %v186 = vadd.f32 %v177, %v183
    %v187 = vpack.c.bf16 %v186, %v185
    %v189 = vunpack.c.l.b16 %v187
    %v190 = vunpack.c.h.b16 %v187
    %v191 = vpack.c.b16 %v189, %v189
    %v192 = vpack.c.b16 %v190, %v190
    %vm195 = vcmask 257024
    %196 = vst.msk [vmem:[%s6] sm:$0xf] %vm195, %v191
    %197 = vst.msk [vmem:[%s6 + $0x4] sm:$0xf] %vm195, %v192
  $region33: #{encoder_forward.14} parent=0 // pred_fallthru
    _
  // Predicated region
  $region34: #{encoder_forward.14} parent=0 // pred_check
    _
  $region35: #{encoder_forward.14} parent=0 // pred_check_branch
    %199 = sbr.rel (0) target = $region37
  $region36: #{encoder_forward.14} parent=0 // pred_region
    _
  $region37: #{encoder_forward.14} parent=0 // pred_fallthru
    _
  // Predicated region
  $region38: #{encoder_forward.14} parent=0 // pred_check
    _
  $region39: #{encoder_forward.14} parent=0 // pred_check_branch
    %201 = sbr.rel (0) target = $region41
  $region40: #{encoder_forward.14} parent=0 // pred_region
    _
  $region41: #{encoder_forward.14} parent=0 // pred_fallthru
    _

</llo_original>
